<compile_context>
chip_gen: v6e
topology: v6e:2x2x1
jax: 0.10.0
libtpu: 0.0.40
codegen_flags: <defaults>
</compile_context>

<pallas_src>
import jax
import jax.numpy as jnp
from jax.experimental import pallas as pl
from jax.experimental.pallas import tpu as pltpu


# ----------------------------- fused forward kernel --------------------------

def _vae_fused_kernel(x_ref, eps_ref,
                      k1_ref, b1_ref, k2_ref, b2_ref,
                      wh_ref, bh_ref, wd1_ref, bd1_ref, wd2_ref, bd2_ref,
                      recon_ref, y_ref):
    """conv1 -> ReLU -> conv2 -> ReLU -> [mu|logvar] -> reparam -> fc1 -> ReLU -> fc2.

    The convs are applied as matmuls against their (init-time) unrolled
    convolution matrices, so the whole forward is 5 small MXU matmuls plus
    elementwise work; every intermediate lives in vregs/VMEM.
    """
    bf16 = jnp.bfloat16
    f32 = jnp.float32

    # encoder convs (as GEMMs) -------------------------------------------------
    h = jnp.dot(x_ref[...].astype(bf16), k1_ref[...],
                preferred_element_type=f32) + b1_ref[...]
    h = jnp.maximum(h, 0.0)
    h = jnp.dot(h.astype(bf16), k2_ref[...],
                preferred_element_type=f32) + b2_ref[...]
    h = jnp.maximum(h, 0.0)

    # mu / logvar heads: one matmul over the concatenated head weights ---------
    y = jnp.dot(h.astype(bf16), wh_ref[...],
                preferred_element_type=f32) + bh_ref[...]
    y_ref[...] = y                       # [N, 2L]; wrapper splits into (mu, logvar)

    # reparameterize — matches torch: clamp(-10, 10), exp(0.5*lv) + 1e-6.
    # NOTE: the returned log_var is the pre-clamp head output (as in the module:
    # the clamp lives inside reparameterize and only feeds std).
    L = eps_ref.shape[1]
    mu = y[:, :L]
    logvar = y[:, L:]
    lv = jnp.clip(logvar, -10.0, 10.0)
    std = jnp.exp(0.5 * lv) + 1e-06
    z = eps_ref[...] * std + mu

    # decoder MLP (fc1 + ReLU + fc2); intermediate never leaves VMEM -----------
    d = jnp.dot(z.astype(bf16), wd1_ref[...],
                preferred_element_type=f32) + bd1_ref[...]
    d = jnp.maximum(d, 0.0)
    r = jnp.dot(d.astype(bf16), wd2_ref[...],
                preferred_element_type=f32) + bd2_ref[...]
    recon_ref[...] = r


# ----------------------------- wrapper ---------------------------------------

def vae_cinn_forward(params, x, eps):
    """Matches VAE_CINN.forward: returns (recon, mu, log_var).

    `eps` plays the role of torch.randn_like(std); it is supplied by the caller
    so the forward is deterministic.
    """
    N, C, H, W = x.shape
    L = eps.shape[1]
    x_flat = x.reshape(N, C * H * W)                       # free reshape

    k1, b1 = params["conv1_mat"]
    k2, b2 = params["conv2_mat"]
    wh, bh = params["head"]
    wd1, bd1 = params["dec_fc1"]
    wd2, bd2 = params["dec_fc2"]
    CHW = wd2.shape[1]

    operands = (x_flat, eps, k1, b1, k2, b2, wh, bh, wd1, bd1, wd2, bd2)

    flops = 2 * N * (k1.shape[0] * k1.shape[1] + k2.shape[0] * k2.shape[1]
                     + wh.shape[0] * wh.shape[1] + wd1.shape[0] * wd1.shape[1]
                     + wd2.shape[0] * wd2.shape[1])
    bytes_accessed = (sum(int(a.size) * a.dtype.itemsize for a in operands)
                      + (N * CHW + N * 2 * L) * 4)

    vmem_spec = lambda: pl.BlockSpec(memory_space=pltpu.MemorySpace.VMEM)

    recon_flat, y = pl.pallas_call(
        _vae_fused_kernel,
        out_shape=(jax.ShapeDtypeStruct((N, CHW), jnp.float32),
                   jax.ShapeDtypeStruct((N, 2 * L), jnp.float32)),
        in_specs=[vmem_spec() for _ in operands],
        out_specs=(vmem_spec(), vmem_spec()),
        cost_estimate=pl.CostEstimate(flops=int(flops), transcendentals=N * L,
                                      bytes_accessed=int(bytes_accessed)),
        compiler_params=pltpu.CompilerParams(vmem_limit_bytes=32 * 1024 * 1024),
    )(*operands)

    mu = y[:, :L]
    logvar = y[:, L:]
    recon = recon_flat.reshape(N, C, H, W)
    return recon, mu, logvar


# ----------------------------- init-time helpers -----------------------------

def _conv2d_ref(x, w, b, stride=2, pad=1):
    """Plain-JAX NCHW conv (nn.Conv2d(k=3, stride=2, padding=1) equivalent).

    Used only at init time (to build the unrolled matrices) and as the
    correctness reference — never inside the Pallas forward.
    """
    y = jax.lax.conv_general_dilated(
        x, w, window_strides=(stride, stride),
        padding=((pad, pad), (pad, pad)),
        dimension_numbers=("NCHW", "OIHW", "NCHW"))
    return y + b[None, :, None, None]


def _unroll_conv(w, cin, h, ww):
    """K such that flatten(conv(x, w)) == flatten(x) @ K (bias excluded).

    Built once at init with the identity trick; never executed per forward.
    """
    p = cin * h * ww
    eye = jnp.eye(p, dtype=jnp.float32).reshape(p, cin, h, ww)
    cols = _conv2d_ref(eye, w, jnp.zeros((w.shape[0],), jnp.float32))
    return cols.reshape(p, -1)


def init_params(key, in_channels, latent_dim, H, W):
    c1, c2 = 8, 16
    H1, W1 = H // 2, W // 2
    H2, W2 = H // 4, W // 4
    flat = c2 * H2 * W2
    ks = jax.random.split(key, 6)

    def lin(k, fan_in, fan_out):
        kw, kb = jax.random.split(k)
        lim = 1.0 / jnp.sqrt(fan_in)
        return (jax.random.uniform(kw, (fan_in, fan_out), jnp.float32, -lim, lim),
                jax.random.uniform(kb, (fan_out,), jnp.float32, -lim, lim))

    def conv(k, cin, cout, ksz=3):
        kw, kb = jax.random.split(k)
        fan_in = cin * ksz * ksz
        lim = 1.0 / jnp.sqrt(fan_in)
        return (jax.random.uniform(kw, (cout, cin, ksz, ksz), jnp.float32, -lim, lim),
                jax.random.uniform(kb, (cout,), jnp.float32, -lim, lim))

    w1, b1 = conv(ks[0], in_channels, c1)
    w2, b2 = conv(ks[1], c1, c2)
    wmu, bmu = lin(ks[2], flat, latent_dim)
    wlv, blv = lin(ks[3], flat, latent_dim)
    wd1, bd1 = lin(ks[4], latent_dim, flat)
    wd2, bd2 = lin(ks[5], flat, in_channels * H * W)

    bf16 = jnp.bfloat16
    return {
        # raw (PyTorch-layout) parameters, kept for the pure-JAX reference check
        "raw": {"conv1": (w1, b1), "conv2": (w2, b2),
                "fc_mu": (wmu, bmu), "fc_logvar": (wlv, blv),
                "dec_fc1": (wd1, bd1), "dec_fc2": (wd2, bd2)},
        # kernel-side parameters: unrolled conv GEMMs, concatenated heads,
        # bf16 matmul operands, lane-aligned 2-D f32 biases.
        "conv1_mat": (_unroll_conv(w1, in_channels, H, W).astype(bf16),
                      jnp.repeat(b1, H1 * W1)[None, :]),
        "conv2_mat": (_unroll_conv(w2, c1, H1, W1).astype(bf16),
                      jnp.repeat(b2, H2 * W2)[None, :]),
        "head": (jnp.concatenate([wmu, wlv], axis=1).astype(bf16),     # [F, 2L]
                 jnp.concatenate([bmu, blv])[None, :]),                # [1, 2L]
        "dec_fc1": (wd1.astype(bf16), bd1[None, :]),
        "dec_fc2": (wd2.astype(bf16), bd2[None, :]),
    }


# ----------------------------- pure-JAX reference -----------------------------

def reference_forward(raw, x, eps):
    w1, b1 = raw["conv1"]
    w2, b2 = raw["conv2"]
    h = jnp.maximum(_conv2d_ref(x, w1, b1), 0.0)
    h = jnp.maximum(_conv2d_ref(h, w2, b2), 0.0)
    hf = h.reshape(x.shape[0], -1)
    wmu, bmu = raw["fc_mu"]
    wlv, blv = raw["fc_logvar"]
    mu = hf @ wmu + bmu
    logvar = hf @ wlv + blv
    lv = jnp.clip(logvar, -10.0, 10.0)
    std = jnp.exp(0.5 * lv) + 1e-06
    z = eps * std + mu
    wd1, bd1 = raw["dec_fc1"]
    wd2, bd2 = raw["dec_fc2"]
    d = jnp.maximum(z @ wd1 + bd1, 0.0)
    recon = (d @ wd2 + bd2).reshape(x.shape)
    return recon, mu, logvar


# ----------------------------- main -------------------------------------------

if __name__ == "__main__":
    key = jax.random.PRNGKey(0)
    kp, kx, ke = jax.random.split(key, 3)

    batch, in_channels, H, W = 2, 4, 16, 16
    latent_dim = 32

    params = init_params(kp, in_channels, latent_dim, H, W)
    x = jax.random.normal(kx, (batch, in_channels, H, W), dtype=jnp.float32)
    # eps ~ N(0,1) (torch.randn_like equivalent), generated deterministically.
    eps = jax.random.normal(ke, (batch, latent_dim), dtype=jnp.float32)

    fwd = jax.jit(vae_cinn_forward)
    recon, mu, logvar = fwd(params, x, eps)
    jax.block_until_ready((recon, mu, logvar))

    assert recon.shape == (batch, in_channels, H, W)
    assert mu.shape == (batch, latent_dim)
    assert logvar.shape == (batch, latent_dim)
    assert bool(jnp.all(jnp.isfinite(recon)))

    # Correctness vs. a plain-JAX f32 reference of the same encoder/decoder.
    # Tolerances are loose because the kernel uses bf16 matmul operands.
    r_ref, mu_ref, lv_ref = reference_forward(params["raw"], x, eps)
    assert float(jnp.max(jnp.abs(mu - mu_ref))) < 0.2
    assert float(jnp.max(jnp.abs(logvar - lv_ref))) < 0.2
    assert float(jnp.max(jnp.abs(recon - r_ref))) < 0.3

    print("KERNEL_OK")
</pallas_src>

<mosaic_0001>
module attributes {stable_mosaic.version = 11 : i64} {
  func.func @_vae_fused_kernel(%arg0: memref<2x1024xf32, #tpu.memory_space<vmem>>, %arg1: memref<2x32xf32, #tpu.memory_space<vmem>>, %arg2: memref<1024x512xbf16, #tpu.memory_space<vmem>>, %arg3: memref<1x512xf32, #tpu.memory_space<vmem>>, %arg4: memref<512x256xbf16, #tpu.memory_space<vmem>>, %arg5: memref<1x256xf32, #tpu.memory_space<vmem>>, %arg6: memref<256x64xbf16, #tpu.memory_space<vmem>>, %arg7: memref<1x64xf32, #tpu.memory_space<vmem>>, %arg8: memref<32x256xbf16, #tpu.memory_space<vmem>>, %arg9: memref<1x256xf32, #tpu.memory_space<vmem>>, %arg10: memref<256x1024xbf16, #tpu.memory_space<vmem>>, %arg11: memref<1x1024xf32, #tpu.memory_space<vmem>>, %arg12: memref<2x1024xf32, #tpu.memory_space<vmem>>, %arg13: memref<2x64xf32, #tpu.memory_space<vmem>>) attributes {dimension_semantics = [], scalar_prefetch = 0 : i64, scratch_operands = 0 : i64, tpu.core_type = #tpu.core_type<tc>} {
    %c0 = arith.constant 0 : index
    %c0_0 = arith.constant 0 : index
    %0 = vector.load %arg0[%c0, %c0_0] : memref<2x1024xf32, #tpu.memory_space<vmem>>, vector<2x1024xf32>
    %1 = arith.truncf %0 : vector<2x1024xf32> to vector<2x1024xbf16>
    %c0_1 = arith.constant 0 : index
    %c0_2 = arith.constant 0 : index
    %2 = vector.load %arg2[%c0_1, %c0_2] : memref<1024x512xbf16, #tpu.memory_space<vmem>>, vector<1024x512xbf16>
    %cst = arith.constant dense<0.000000e+00> : vector<2x512xf32>
    %3 = tpu.matmul %1, %2, %cst {dimension_numbers = #tpu.dot_dimension_numbers<[1], [0], [0], [1], [0, 0, 1, 1], [], []>} : vector<2x1024xbf16>, vector<1024x512xbf16>, vector<2x512xf32> -> vector<2x512xf32>
    %c0_3 = arith.constant 0 : index
    %c0_4 = arith.constant 0 : index
    %4 = vector.load %arg3[%c0_3, %c0_4] : memref<1x512xf32, #tpu.memory_space<vmem>>, vector<1x512xf32>
    %5 = vector.broadcast %4 : vector<1x512xf32> to vector<2x512xf32>
    %6 = arith.addf %3, %5 : vector<2x512xf32>
    %cst_5 = arith.constant 0.000000e+00 : f32
    %7 = vector.broadcast %cst_5 : f32 to vector<2x512xf32>
    %8 = arith.maximumf %6, %7 : vector<2x512xf32>
    %9 = arith.truncf %8 : vector<2x512xf32> to vector<2x512xbf16>
    %c0_6 = arith.constant 0 : index
    %c0_7 = arith.constant 0 : index
    %10 = vector.load %arg4[%c0_6, %c0_7] : memref<512x256xbf16, #tpu.memory_space<vmem>>, vector<512x256xbf16>
    %cst_8 = arith.constant dense<0.000000e+00> : vector<2x256xf32>
    %11 = tpu.matmul %9, %10, %cst_8 {dimension_numbers = #tpu.dot_dimension_numbers<[1], [0], [0], [1], [0, 0, 1, 1], [], []>} : vector<2x512xbf16>, vector<512x256xbf16>, vector<2x256xf32> -> vector<2x256xf32>
    %c0_9 = arith.constant 0 : index
    %c0_10 = arith.constant 0 : index
    %12 = vector.load %arg5[%c0_9, %c0_10] : memref<1x256xf32, #tpu.memory_space<vmem>>, vector<1x256xf32>
    %13 = vector.broadcast %12 : vector<1x256xf32> to vector<2x256xf32>
    %14 = arith.addf %11, %13 : vector<2x256xf32>
    %cst_11 = arith.constant 0.000000e+00 : f32
    %15 = vector.broadcast %cst_11 : f32 to vector<2x256xf32>
    %16 = arith.maximumf %14, %15 : vector<2x256xf32>
    %17 = arith.truncf %16 : vector<2x256xf32> to vector<2x256xbf16>
    %c0_12 = arith.constant 0 : index
    %c0_13 = arith.constant 0 : index
    %18 = vector.load %arg6[%c0_12, %c0_13] : memref<256x64xbf16, #tpu.memory_space<vmem>>, vector<256x64xbf16>
    %cst_14 = arith.constant dense<0.000000e+00> : vector<2x64xf32>
    %19 = tpu.matmul %17, %18, %cst_14 {dimension_numbers = #tpu.dot_dimension_numbers<[1], [0], [0], [1], [0, 0, 1, 1], [], []>} : vector<2x256xbf16>, vector<256x64xbf16>, vector<2x64xf32> -> vector<2x64xf32>
    %c0_15 = arith.constant 0 : index
    %c0_16 = arith.constant 0 : index
    %20 = vector.load %arg7[%c0_15, %c0_16] : memref<1x64xf32, #tpu.memory_space<vmem>>, vector<1x64xf32>
    %21 = vector.broadcast %20 : vector<1x64xf32> to vector<2x64xf32>
    %22 = arith.addf %19, %21 : vector<2x64xf32>
    %c0_17 = arith.constant 0 : index
    %c0_18 = arith.constant 0 : index
    %23 = vector.load %arg13[%c0_17, %c0_18] : memref<2x64xf32, #tpu.memory_space<vmem>>, vector<2x64xf32>
    tpu.vector_store %arg13[%c0_17, %c0_18], %22 {strides = array<i32>} : memref<2x64xf32, #tpu.memory_space<vmem>>, vector<2x64xf32>,
    %24 = vector.extract_strided_slice %22 {offsets = [0, 0], sizes = [2, 32], strides = [1, 1]} : vector<2x64xf32> to vector<2x32xf32>
    %25 = vector.extract_strided_slice %22 {offsets = [0, 32], sizes = [2, 32], strides = [1, 1]} : vector<2x64xf32> to vector<2x32xf32>
    %cst_19 = arith.constant -1.000000e+01 : f32
    %cst_20 = arith.constant 1.000000e+01 : f32
    %26 = vector.broadcast %cst_19 : f32 to vector<2x32xf32>
    %27 = arith.maximumf %26, %25 : vector<2x32xf32>
    %28 = vector.broadcast %cst_20 : f32 to vector<2x32xf32>
    %29 = arith.minimumf %28, %27 : vector<2x32xf32>
    %cst_21 = arith.constant 5.000000e-01 : f32
    %30 = vector.broadcast %cst_21 : f32 to vector<2x32xf32>
    %31 = arith.mulf %30, %29 : vector<2x32xf32>
    %32 = math.exp %31 : vector<2x32xf32>
    %cst_22 = arith.constant 9.99999997E-7 : f32
    %33 = vector.broadcast %cst_22 : f32 to vector<2x32xf32>
    %34 = arith.addf %32, %33 : vector<2x32xf32>
    %c0_23 = arith.constant 0 : index
    %c0_24 = arith.constant 0 : index
    %35 = vector.load %arg1[%c0_23, %c0_24] : memref<2x32xf32, #tpu.memory_space<vmem>>, vector<2x32xf32>
    %36 = arith.mulf %35, %34 : vector<2x32xf32>
    %37 = arith.addf %36, %24 : vector<2x32xf32>
    %38 = arith.truncf %37 : vector<2x32xf32> to vector<2x32xbf16>
    %c0_25 = arith.constant 0 : index
    %c0_26 = arith.constant 0 : index
    %39 = vector.load %arg8[%c0_25, %c0_26] : memref<32x256xbf16, #tpu.memory_space<vmem>>, vector<32x256xbf16>
    %cst_27 = arith.constant dense<0.000000e+00> : vector<2x256xf32>
    %40 = tpu.matmul %38, %39, %cst_27 {dimension_numbers = #tpu.dot_dimension_numbers<[1], [0], [0], [1], [0, 0, 1, 1], [], []>} : vector<2x32xbf16>, vector<32x256xbf16>, vector<2x256xf32> -> vector<2x256xf32>
    %c0_28 = arith.constant 0 : index
    %c0_29 = arith.constant 0 : index
    %41 = vector.load %arg9[%c0_28, %c0_29] : memref<1x256xf32, #tpu.memory_space<vmem>>, vector<1x256xf32>
    %42 = vector.broadcast %41 : vector<1x256xf32> to vector<2x256xf32>
    %43 = arith.addf %40, %42 : vector<2x256xf32>
    %cst_30 = arith.constant 0.000000e+00 : f32
    %44 = vector.broadcast %cst_30 : f32 to vector<2x256xf32>
    %45 = arith.maximumf %43, %44 : vector<2x256xf32>
    %46 = arith.truncf %45 : vector<2x256xf32> to vector<2x256xbf16>
    %c0_31 = arith.constant 0 : index
    %c0_32 = arith.constant 0 : index
    %47 = vector.load %arg10[%c0_31, %c0_32] : memref<256x1024xbf16, #tpu.memory_space<vmem>>, vector<256x1024xbf16>
    %cst_33 = arith.constant dense<0.000000e+00> : vector<2x1024xf32>
    %48 = tpu.matmul %46, %47, %cst_33 {dimension_numbers = #tpu.dot_dimension_numbers<[1], [0], [0], [1], [0, 0, 1, 1], [], []>} : vector<2x256xbf16>, vector<256x1024xbf16>, vector<2x1024xf32> -> vector<2x1024xf32>
    %c0_34 = arith.constant 0 : index
    %c0_35 = arith.constant 0 : index
    %49 = vector.load %arg11[%c0_34, %c0_35] : memref<1x1024xf32, #tpu.memory_space<vmem>>, vector<1x1024xf32>
    %50 = vector.broadcast %49 : vector<1x1024xf32> to vector<2x1024xf32>
    %51 = arith.addf %48, %50 : vector<2x1024xf32>
    %c0_36 = arith.constant 0 : index
    %c0_37 = arith.constant 0 : index
    %52 = vector.load %arg12[%c0_36, %c0_37] : memref<2x1024xf32, #tpu.memory_space<vmem>>, vector<2x1024xf32>
    tpu.vector_store %arg12[%c0_36, %c0_37], %51 {strides = array<i32>} : memref<2x1024xf32, #tpu.memory_space<vmem>>, vector<2x1024xf32>,
    return
  }
}

</mosaic_0001>

<llo_original>
// kernel: vae_cinn_forward.1
$region0: #{vae_cinn_forward.1}
  #allocation0 [shape = 'u32[]', space=smem, size = 0x4, offset = 0x4, fixed_abs, tag = 'smem constant byte address 0x4 - core index']
  #allocation1 [shape = 'u32[144,128]{1,0:T(1,128)}', space=vmem, size = 0x12000, scoped, tag = 'internal scratch']
  %s0 = inlined_call_operand.vmem [shape: f32[2,1024], index: 0, kind: input, shape index: {}]
  %s1 = inlined_call_operand.vmem [shape: f32[2,32], index: 1, kind: input, shape index: {}]
  %s2 = inlined_call_operand.hbm [shape: bf16[1024,512], index: 2, kind: input, shape index: {}]
  %s3 = inlined_call_operand.vmem [shape: f32[1,512], index: 3, kind: input, shape index: {}]
  %s4 = inlined_call_operand.hbm [shape: bf16[512,256], index: 4, kind: input, shape index: {}]
  %s5 = inlined_call_operand.vmem [shape: f32[1,256], index: 5, kind: input, shape index: {}]
  %s6 = inlined_call_operand.vmem [shape: bf16[256,64], index: 6, kind: input, shape index: {}]
  %s7 = inlined_call_operand.vmem [shape: f32[1,64], index: 7, kind: input, shape index: {}]
  %s8 = inlined_call_operand.vmem [shape: bf16[32,256], index: 8, kind: input, shape index: {}]
  %s9 = inlined_call_operand.vmem [shape: f32[1,256], index: 9, kind: input, shape index: {}]
  %s10 = inlined_call_operand.hbm [shape: bf16[256,1024], index: 10, kind: input, shape index: {}]
  %s11 = inlined_call_operand.vmem [shape: f32[1,1024], index: 11, kind: input, shape index: {}]
  %s12 = inlined_call_operand.vmem [shape: f32[2,1024], index: 12, kind: output, shape index: {0}]
  %s13 = inlined_call_operand.vmem [shape: f32[2,64], index: 13, kind: output, shape index: {1}]
  %14 = xla_tuple %s12, %s13
  %s15 = sld [smem:[#allocation0]]
  $region78: #{vae_cinn_forward.1} parent=0
    _
  %s17 = ssub.s32 1, %s15
  %s18 = scalar_select 0, %s17, %s15
  $region1: #{vae_cinn_forward.1} parent=0
    #allocation2 [shape = 'u8[1048576]{0}', space=vmem, size = 0x100000, scoped, tag = 'input window, operand 2, single buffered']
    #allocation3 [shape = 's32[1]{0}', space=sflag, size = 0x4, scoped, tag = 'scoped memory for vae_cinn_forward.1']
    #allocation4 [shape = 'u8[262144]{0}', space=vmem, size = 0x40000, scoped, tag = 'input window, operand 4, single buffered']
    #allocation5 [shape = 's32[1]{0}', space=sflag, size = 0x4, scoped, tag = 'scoped memory for vae_cinn_forward.1']
    #allocation6 [shape = 'u8[524288]{0}', space=vmem, size = 0x80000, scoped, tag = 'input window, operand 10, single buffered']
    %19 = vsyncpa [#allocation3], 0
    %20 = vsyncpa [#allocation5], 0
    // Predicated region
    $region2: #{vae_cinn_forward.1} parent=1 // pred_check
      _
    $region3: #{vae_cinn_forward.1} parent=1 // pred_check_branch
      %22 = sbr.rel (0) target = $region5
    $region4: #{vae_cinn_forward.1} parent=1 // pred_region
      _
    $region5: #{vae_cinn_forward.1} parent=1 // pred_fallthru
      _
    // Predicated region
    $region6: #{vae_cinn_forward.1} parent=1 // pred_check
      _
    $region7: #{vae_cinn_forward.1} parent=1 // pred_check_branch
      %24 = sbr.rel (0) target = $region9
    $region8: #{vae_cinn_forward.1} parent=1 // pred_region
      _
    $region9: #{vae_cinn_forward.1} parent=1 // pred_fallthru
      _
    // Predicated region
    $region10: #{vae_cinn_forward.1} parent=1 // pred_check
      _
    $region11: #{vae_cinn_forward.1} parent=1 // pred_check_branch
      %26 = sbr.rel (0) target = $region13
    $region12: #{vae_cinn_forward.1} parent=1 // pred_region
      %s28 = ssub.s32 32768, 32768
      %29 = vsyncadd [#allocation3], %s28
      %s30 = sshll.u32 [#allocation2], 4
      %s31 = int_to_ptr.vmem [resolvable:$true] %s30
      %36 = dma.hbm_to_vmem [thread:$0]  %s2, 32768, %s31, [#allocation3], 256, 256, 16
    $region13: #{vae_cinn_forward.1} parent=1 // pred_fallthru
      _
    // Predicated region
    $region14: #{vae_cinn_forward.1} parent=1 // pred_check
      _
    $region15: #{vae_cinn_forward.1} parent=1 // pred_check_branch
      %38 = sbr.rel (0) target = $region17
    $region16: #{vae_cinn_forward.1} parent=1 // pred_region
      _
    $region17: #{vae_cinn_forward.1} parent=1 // pred_fallthru
      _
    // Predicated region
    $region18: #{vae_cinn_forward.1} parent=1 // pred_check
      _
    $region19: #{vae_cinn_forward.1} parent=1 // pred_check_branch
      %40 = sbr.rel (0) target = $region21
    $region20: #{vae_cinn_forward.1} parent=1 // pred_region
      %s42 = ssub.s32 8192, 8192
      %43 = vsyncadd [#allocation5], %s42
      %s44 = sshll.u32 [#allocation4], 4
      %s45 = int_to_ptr.vmem [resolvable:$true] %s44
      %50 = dma.hbm_to_vmem [thread:$0]  %s4, 8192, %s45, [#allocation5], 128, 128, 8
    $region21: #{vae_cinn_forward.1} parent=1 // pred_fallthru
      _
    // Predicated region
    $region22: #{vae_cinn_forward.1} parent=1 // pred_check
      _
    $region23: #{vae_cinn_forward.1} parent=1 // pred_check_branch
      %52 = sbr.rel (0) target = $region25
    $region24: #{vae_cinn_forward.1} parent=1 // pred_region
      _
    $region25: #{vae_cinn_forward.1} parent=1 // pred_fallthru
      _
    // Predicated region
    $region26: #{vae_cinn_forward.1} parent=1 // pred_check
      _
    $region27: #{vae_cinn_forward.1} parent=1 // pred_check_branch
      %54 = sbr.rel (0) target = $region29
    $region28: #{vae_cinn_forward.1} parent=1 // pred_region
      _
    $region29: #{vae_cinn_forward.1} parent=1 // pred_fallthru
      _
    // Predicated region
    $region30: #{vae_cinn_forward.1} parent=1 // pred_check
      _
    $region31: #{vae_cinn_forward.1} parent=1 // pred_check_branch
      %56 = sbr.rel (0) target = $region33
    $region32: #{vae_cinn_forward.1} parent=1 // pred_region
      _
    $region33: #{vae_cinn_forward.1} parent=1 // pred_fallthru
      _
    // Predicated region
    $region34: #{vae_cinn_forward.1} parent=1 // pred_check
      _
    $region35: #{vae_cinn_forward.1} parent=1 // pred_check_branch
      %58 = sbr.rel (0) target = $region37
    $region36: #{vae_cinn_forward.1} parent=1 // pred_region
      _
    $region37: #{vae_cinn_forward.1} parent=1 // pred_fallthru
      _
    // Predicated region
    $region38: #{vae_cinn_forward.1} parent=1 // pred_check
      _
    $region39: #{vae_cinn_forward.1} parent=1 // pred_check_branch
      %60 = sbr.rel (0) target = $region41
    $region40: #{vae_cinn_forward.1} parent=1 // pred_region
      _
    $region41: #{vae_cinn_forward.1} parent=1 // pred_fallthru
      _
    // Predicated region
    $region42: #{vae_cinn_forward.1} parent=1 // pred_check
      _
    $region43: #{vae_cinn_forward.1} parent=1 // pred_check_branch
      %62 = sbr.rel (0) target = $region45
    $region44: #{vae_cinn_forward.1} parent=1 // pred_region
      %s64 = ssub.s32 16384, 16384
      %65 = vsyncadd [#allocation5], %s64
      %s66 = sshll.u32 [#allocation6], 4
      %s67 = int_to_ptr.vmem [resolvable:$true] %s66
      %72 = dma.hbm_to_vmem [thread:$0]  %s10, 16384, %s67, [#allocation5], 512, 512, 32
    $region45: #{vae_cinn_forward.1} parent=1 // pred_fallthru
      _
    // Predicated region
    $region46: #{vae_cinn_forward.1} parent=1 // pred_check
      _
    $region47: #{vae_cinn_forward.1} parent=1 // pred_check_branch
      %74 = sbr.rel (0) target = $region49
    $region48: #{vae_cinn_forward.1} parent=1 // pred_region
      _
    $region49: #{vae_cinn_forward.1} parent=1 // pred_fallthru
      _
    // Predicated region
    $region50: #{vae_cinn_forward.1} parent=1 // pred_check
      _
    $region51: #{vae_cinn_forward.1} parent=1 // pred_check_branch
      %76 = sbr.rel (0) target = $region53
    $region52: #{vae_cinn_forward.1} parent=1 // pred_region
      %77 = dma.done [#allocation3], 32768
    $region53: #{vae_cinn_forward.1} parent=1 // pred_fallthru
      _
    // Predicated region
    $region54: #{vae_cinn_forward.1} parent=1 // pred_check
      _
    $region55: #{vae_cinn_forward.1} parent=1 // pred_check_branch
      %79 = sbr.rel (0) target = $region57
    $region56: #{vae_cinn_forward.1} parent=1 // pred_region
      %80 = dma.done [#allocation5], 8192
    $region57: #{vae_cinn_forward.1} parent=1 // pred_fallthru
      _
    // Predicated region
    $region58: #{vae_cinn_forward.1} parent=1 // pred_check
      _
    $region59: #{vae_cinn_forward.1} parent=1 // pred_check_branch
      %82 = sbr.rel (0) target = $region61
    $region60: #{vae_cinn_forward.1} parent=1 // pred_region
      %83 = dma.done [#allocation5], 16384
    $region61: #{vae_cinn_forward.1} parent=1 // pred_fallthru
      _
    %v85 = vld [vmem:[%s0] sm:$0xff]
    %v86 = vld [vmem:[%s0 + $0x8] sm:$0xff]
    %v89 = vcombine.high %v85, %v85
    %v91 = vunpack.c.l.s4 1983009808
    %v92 = vunpack.c.0.s8 %v91
    %v93 = vlaneseq
    %v94 = vshrl.u32 %v93, 7
    %v95 = vsub.s32 %v92, %v94
    %v96 = vrot.slane %v85, %v95
    %v98 = vunpack.c.l.s4 1983009808
    %v99 = vunpack.c.0.s8 %v98
    %v100 = vlaneseq
    %v101 = vshrl.u32 %v100, 7
    %v102 = vsub.s32 %v99, %v101
    %v103 = vrot.slane %v89, %v102
    %v104 = vcombine.high %v96, %v96
    %v105 = vcombine.high %v103, %v103
    %v106 = vcombine.high %v86, %v86
    %v108 = vunpack.c.l.s4 1983009808
    %v109 = vunpack.c.0.s8 %v108
    %v110 = vlaneseq
    %v111 = vshrl.u32 %v110, 7
    %v112 = vsub.s32 %v109, %v111
    %v113 = vrot.slane %v86, %v112
    %v115 = vunpack.c.l.s4 1983009808
    %v116 = vunpack.c.0.s8 %v115
    %v117 = vlaneseq
    %v118 = vshrl.u32 %v117, 7
    %v119 = vsub.s32 %v116, %v118
    %v120 = vrot.slane %v106, %v119
    %v121 = vcombine.high %v113, %v113
    %v122 = vcombine.high %v120, %v120
    %v131 = vpack.c.bf16 %v96, %v96
    %v132 = vpack.c.bf16 %v104, %v104
    %v133 = vpack.c.bf16 %v103, %v103
    %v134 = vpack.c.bf16 %v105, %v105
    %v135 = vpack.c.bf16 %v113, %v113
    %v136 = vpack.c.bf16 %v121, %v121
    %v137 = vpack.c.bf16 %v120, %v120
    %v138 = vpack.c.bf16 %v122, %v122
    %v139 = vld [vmem:[#allocation2] sm:$0xff]
    %v140 = vld [vmem:[#allocation2 + $0x8] sm:$0xff]
    %v141 = vld [vmem:[#allocation2 + $0x10] sm:$0xff]
    %v142 = vld [vmem:[#allocation2 + $0x18] sm:$0xff]
    %v143 = vld [vmem:[#allocation2 + $0x20] sm:$0xff]
    %v144 = vld [vmem:[#allocation2 + $0x28] sm:$0xff]
    %v145 = vld [vmem:[#allocation2 + $0x30] sm:$0xff]
    %v146 = vld [vmem:[#allocation2 + $0x38] sm:$0xff]
    %v147 = vld [vmem:[#allocation2 + $0x40] sm:$0xff]
    %v148 = vld [vmem:[#allocation2 + $0x48] sm:$0xff]
    %v149 = vld [vmem:[#allocation2 + $0x50] sm:$0xff]
    %v150 = vld [vmem:[#allocation2 + $0x58] sm:$0xff]
    %v151 = vld [vmem:[#allocation2 + $0x60] sm:$0xff]
    %v152 = vld [vmem:[#allocation2 + $0x68] sm:$0xff]
    %v153 = vld [vmem:[#allocation2 + $0x70] sm:$0xff]
    %v154 = vld [vmem:[#allocation2 + $0x78] sm:$0xff]
    %v155 = vld [vmem:[#allocation2 + $0x80] sm:$0xff]
    %v156 = vld [vmem:[#allocation2 + $0x88] sm:$0xff]
    %v157 = vld [vmem:[#allocation2 + $0x90] sm:$0xff]
    %v158 = vld [vmem:[#allocation2 + $0x98] sm:$0xff]
    %v159 = vld [vmem:[#allocation2 + $0xa0] sm:$0xff]
    %v160 = vld [vmem:[#allocation2 + $0xa8] sm:$0xff]
    %v161 = vld [vmem:[#allocation2 + $0xb0] sm:$0xff]
    %v162 = vld [vmem:[#allocation2 + $0xb8] sm:$0xff]
    %v163 = vld [vmem:[#allocation2 + $0xc0] sm:$0xff]
    %v164 = vld [vmem:[#allocation2 + $0xc8] sm:$0xff]
    %v165 = vld [vmem:[#allocation2 + $0xd0] sm:$0xff]
    %v166 = vld [vmem:[#allocation2 + $0xd8] sm:$0xff]
    %v167 = vld [vmem:[#allocation2 + $0xe0] sm:$0xff]
    %v168 = vld [vmem:[#allocation2 + $0xe8] sm:$0xff]
    %v169 = vld [vmem:[#allocation2 + $0xf0] sm:$0xff]
    %v170 = vld [vmem:[#allocation2 + $0xf8] sm:$0xff]
    %v171 = vld [vmem:[#allocation2 + $0x100] sm:$0xff]
    %v172 = vld [vmem:[#allocation2 + $0x108] sm:$0xff]
    %v173 = vld [vmem:[#allocation2 + $0x110] sm:$0xff]
    %v174 = vld [vmem:[#allocation2 + $0x118] sm:$0xff]
    %v175 = vld [vmem:[#allocation2 + $0x120] sm:$0xff]
    %v176 = vld [vmem:[#allocation2 + $0x128] sm:$0xff]
    %v177 = vld [vmem:[#allocation2 + $0x130] sm:$0xff]
    %v178 = vld [vmem:[#allocation2 + $0x138] sm:$0xff]
    %v179 = vld [vmem:[#allocation2 + $0x140] sm:$0xff]
    %v180 = vld [vmem:[#allocation2 + $0x148] sm:$0xff]
    %v181 = vld [vmem:[#allocation2 + $0x150] sm:$0xff]
    %v182 = vld [vmem:[#allocation2 + $0x158] sm:$0xff]
    %v183 = vld [vmem:[#allocation2 + $0x160] sm:$0xff]
    %v184 = vld [vmem:[#allocation2 + $0x168] sm:$0xff]
    %v185 = vld [vmem:[#allocation2 + $0x170] sm:$0xff]
    %v186 = vld [vmem:[#allocation2 + $0x178] sm:$0xff]
    %v187 = vld [vmem:[#allocation2 + $0x180] sm:$0xff]
    %v188 = vld [vmem:[#allocation2 + $0x188] sm:$0xff]
    %v189 = vld [vmem:[#allocation2 + $0x190] sm:$0xff]
    %v190 = vld [vmem:[#allocation2 + $0x198] sm:$0xff]
    %v191 = vld [vmem:[#allocation2 + $0x1a0] sm:$0xff]
    %v192 = vld [vmem:[#allocation2 + $0x1a8] sm:$0xff]
    %v193 = vld [vmem:[#allocation2 + $0x1b0] sm:$0xff]
    %v194 = vld [vmem:[#allocation2 + $0x1b8] sm:$0xff]
    %v195 = vld [vmem:[#allocation2 + $0x1c0] sm:$0xff]
    %v196 = vld [vmem:[#allocation2 + $0x1c8] sm:$0xff]
    %v197 = vld [vmem:[#allocation2 + $0x1d0] sm:$0xff]
    %v198 = vld [vmem:[#allocation2 + $0x1d8] sm:$0xff]
    %v199 = vld [vmem:[#allocation2 + $0x1e0] sm:$0xff]
    %v200 = vld [vmem:[#allocation2 + $0x1e8] sm:$0xff]
    %v201 = vld [vmem:[#allocation2 + $0x1f0] sm:$0xff]
    %v202 = vld [vmem:[#allocation2 + $0x1f8] sm:$0xff]
    %v203 = vld [vmem:[#allocation2 + $0x200] sm:$0xff]
    %v204 = vld [vmem:[#allocation2 + $0x208] sm:$0xff]
    %v205 = vld [vmem:[#allocation2 + $0x210] sm:$0xff]
    %v206 = vld [vmem:[#allocation2 + $0x218] sm:$0xff]
    %v207 = vld [vmem:[#allocation2 + $0x220] sm:$0xff]
    %v208 = vld [vmem:[#allocation2 + $0x228] sm:$0xff]
    %v209 = vld [vmem:[#allocation2 + $0x230] sm:$0xff]
    %v210 = vld [vmem:[#allocation2 + $0x238] sm:$0xff]
    %v211 = vld [vmem:[#allocation2 + $0x240] sm:$0xff]
    %v212 = vld [vmem:[#allocation2 + $0x248] sm:$0xff]
    %v213 = vld [vmem:[#allocation2 + $0x250] sm:$0xff]
    %v214 = vld [vmem:[#allocation2 + $0x258] sm:$0xff]
    %v215 = vld [vmem:[#allocation2 + $0x260] sm:$0xff]
    %v216 = vld [vmem:[#allocation2 + $0x268] sm:$0xff]
    %v217 = vld [vmem:[#allocation2 + $0x270] sm:$0xff]
    %v218 = vld [vmem:[#allocation2 + $0x278] sm:$0xff]
    %v219 = vld [vmem:[#allocation2 + $0x280] sm:$0xff]
    %v220 = vld [vmem:[#allocation2 + $0x288] sm:$0xff]
    %v221 = vld [vmem:[#allocation2 + $0x290] sm:$0xff]
    %v222 = vld [vmem:[#allocation2 + $0x298] sm:$0xff]
    %v223 = vld [vmem:[#allocation2 + $0x2a0] sm:$0xff]
    %v224 = vld [vmem:[#allocation2 + $0x2a8] sm:$0xff]
    %v225 = vld [vmem:[#allocation2 + $0x2b0] sm:$0xff]
    %v226 = vld [vmem:[#allocation2 + $0x2b8] sm:$0xff]
    %v227 = vld [vmem:[#allocation2 + $0x2c0] sm:$0xff]
    %v228 = vld [vmem:[#allocation2 + $0x2c8] sm:$0xff]
    %v229 = vld [vmem:[#allocation2 + $0x2d0] sm:$0xff]
    %v230 = vld [vmem:[#allocation2 + $0x2d8] sm:$0xff]
    %v231 = vld [vmem:[#allocation2 + $0x2e0] sm:$0xff]
    %v232 = vld [vmem:[#allocation2 + $0x2e8] sm:$0xff]
    %v233 = vld [vmem:[#allocation2 + $0x2f0] sm:$0xff]
    %v234 = vld [vmem:[#allocation2 + $0x2f8] sm:$0xff]
    %v235 = vld [vmem:[#allocation2 + $0x300] sm:$0xff]
    %v236 = vld [vmem:[#allocation2 + $0x308] sm:$0xff]
    %v237 = vld [vmem:[#allocation2 + $0x310] sm:$0xff]
    %v238 = vld [vmem:[#allocation2 + $0x318] sm:$0xff]
    %v239 = vld [vmem:[#allocation2 + $0x320] sm:$0xff]
    %v240 = vld [vmem:[#allocation2 + $0x328] sm:$0xff]
    %v241 = vld [vmem:[#allocation2 + $0x330] sm:$0xff]
    %v242 = vld [vmem:[#allocation2 + $0x338] sm:$0xff]
    %v243 = vld [vmem:[#allocation2 + $0x340] sm:$0xff]
    %v244 = vld [vmem:[#allocation2 + $0x348] sm:$0xff]
    %v245 = vld [vmem:[#allocation2 + $0x350] sm:$0xff]
    %v246 = vld [vmem:[#allocation2 + $0x358] sm:$0xff]
    %v247 = vld [vmem:[#allocation2 + $0x360] sm:$0xff]
    %v248 = vld [vmem:[#allocation2 + $0x368] sm:$0xff]
    %v249 = vld [vmem:[#allocation2 + $0x370] sm:$0xff]
    %v250 = vld [vmem:[#allocation2 + $0x378] sm:$0xff]
    %v251 = vld [vmem:[#allocation2 + $0x380] sm:$0xff]
    %v252 = vld [vmem:[#allocation2 + $0x388] sm:$0xff]
    %v253 = vld [vmem:[#allocation2 + $0x390] sm:$0xff]
    %v254 = vld [vmem:[#allocation2 + $0x398] sm:$0xff]
    %v255 = vld [vmem:[#allocation2 + $0x3a0] sm:$0xff]
    %v256 = vld [vmem:[#allocation2 + $0x3a8] sm:$0xff]
    %v257 = vld [vmem:[#allocation2 + $0x3b0] sm:$0xff]
    %v258 = vld [vmem:[#allocation2 + $0x3b8] sm:$0xff]
    %v259 = vld [vmem:[#allocation2 + $0x3c0] sm:$0xff]
    %v260 = vld [vmem:[#allocation2 + $0x3c8] sm:$0xff]
    %v261 = vld [vmem:[#allocation2 + $0x3d0] sm:$0xff]
    %v262 = vld [vmem:[#allocation2 + $0x3d8] sm:$0xff]
    %v263 = vld [vmem:[#allocation2 + $0x3e0] sm:$0xff]
    %v264 = vld [vmem:[#allocation2 + $0x3e8] sm:$0xff]
    %v265 = vld [vmem:[#allocation2 + $0x3f0] sm:$0xff]
    %v266 = vld [vmem:[#allocation2 + $0x3f8] sm:$0xff]
    %v267 = vld [vmem:[#allocation2 + $0x400] sm:$0xff]
    %v268 = vld [vmem:[#allocation2 + $0x408] sm:$0xff]
    %v269 = vld [vmem:[#allocation2 + $0x410] sm:$0xff]
    %v270 = vld [vmem:[#allocation2 + $0x418] sm:$0xff]
    %v271 = vld [vmem:[#allocation2 + $0x420] sm:$0xff]
    %v272 = vld [vmem:[#allocation2 + $0x428] sm:$0xff]
    %v273 = vld [vmem:[#allocation2 + $0x430] sm:$0xff]
    %v274 = vld [vmem:[#allocation2 + $0x438] sm:$0xff]
    %v275 = vld [vmem:[#allocation2 + $0x440] sm:$0xff]
    %v276 = vld [vmem:[#allocation2 + $0x448] sm:$0xff]
    %v277 = vld [vmem:[#allocation2 + $0x450] sm:$0xff]
    %v278 = vld [vmem:[#allocation2 + $0x458] sm:$0xff]
    %v279 = vld [vmem:[#allocation2 + $0x460] sm:$0xff]
    %v280 = vld [vmem:[#allocation2 + $0x468] sm:$0xff]
    %v281 = vld [vmem:[#allocation2 + $0x470] sm:$0xff]
    %v282 = vld [vmem:[#allocation2 + $0x478] sm:$0xff]
    %v283 = vld [vmem:[#allocation2 + $0x480] sm:$0xff]
    %v284 = vld [vmem:[#allocation2 + $0x488] sm:$0xff]
    %v285 = vld [vmem:[#allocation2 + $0x490] sm:$0xff]
    %v286 = vld [vmem:[#allocation2 + $0x498] sm:$0xff]
    %v287 = vld [vmem:[#allocation2 + $0x4a0] sm:$0xff]
    %v288 = vld [vmem:[#allocation2 + $0x4a8] sm:$0xff]
    %v289 = vld [vmem:[#allocation2 + $0x4b0] sm:$0xff]
    %v290 = vld [vmem:[#allocation2 + $0x4b8] sm:$0xff]
    %v291 = vld [vmem:[#allocation2 + $0x4c0] sm:$0xff]
    %v292 = vld [vmem:[#allocation2 + $0x4c8] sm:$0xff]
    %v293 = vld [vmem:[#allocation2 + $0x4d0] sm:$0xff]
    %v294 = vld [vmem:[#allocation2 + $0x4d8] sm:$0xff]
    %v295 = vld [vmem:[#allocation2 + $0x4e0] sm:$0xff]
    %v296 = vld [vmem:[#allocation2 + $0x4e8] sm:$0xff]
    %v297 = vld [vmem:[#allocation2 + $0x4f0] sm:$0xff]
    %v298 = vld [vmem:[#allocation2 + $0x4f8] sm:$0xff]
    %v299 = vld [vmem:[#allocation2 + $0x500] sm:$0xff]
    %v300 = vld [vmem:[#allocation2 + $0x508] sm:$0xff]
    %v301 = vld [vmem:[#allocation2 + $0x510] sm:$0xff]
    %v302 = vld [vmem:[#allocation2 + $0x518] sm:$0xff]
    %v303 = vld [vmem:[#allocation2 + $0x520] sm:$0xff]
    %v304 = vld [vmem:[#allocation2 + $0x528] sm:$0xff]
    %v305 = vld [vmem:[#allocation2 + $0x530] sm:$0xff]
    %v306 = vld [vmem:[#allocation2 + $0x538] sm:$0xff]
    %v307 = vld [vmem:[#allocation2 + $0x540] sm:$0xff]
    %v308 = vld [vmem:[#allocation2 + $0x548] sm:$0xff]
    %v309 = vld [vmem:[#allocation2 + $0x550] sm:$0xff]
    %v310 = vld [vmem:[#allocation2 + $0x558] sm:$0xff]
    %v311 = vld [vmem:[#allocation2 + $0x560] sm:$0xff]
    %v312 = vld [vmem:[#allocation2 + $0x568] sm:$0xff]
    %v313 = vld [vmem:[#allocation2 + $0x570] sm:$0xff]
    %v314 = vld [vmem:[#allocation2 + $0x578] sm:$0xff]
    %v315 = vld [vmem:[#allocation2 + $0x580] sm:$0xff]
    %v316 = vld [vmem:[#allocation2 + $0x588] sm:$0xff]
    %v317 = vld [vmem:[#allocation2 + $0x590] sm:$0xff]
    %v318 = vld [vmem:[#allocation2 + $0x598] sm:$0xff]
    %v319 = vld [vmem:[#allocation2 + $0x5a0] sm:$0xff]
    %v320 = vld [vmem:[#allocation2 + $0x5a8] sm:$0xff]
    %v321 = vld [vmem:[#allocation2 + $0x5b0] sm:$0xff]
    %v322 = vld [vmem:[#allocation2 + $0x5b8] sm:$0xff]
    %v323 = vld [vmem:[#allocation2 + $0x5c0] sm:$0xff]
    %v324 = vld [vmem:[#allocation2 + $0x5c8] sm:$0xff]
    %v325 = vld [vmem:[#allocation2 + $0x5d0] sm:$0xff]
    %v326 = vld [vmem:[#allocation2 + $0x5d8] sm:$0xff]
    %v327 = vld [vmem:[#allocation2 + $0x5e0] sm:$0xff]
    %v328 = vld [vmem:[#allocation2 + $0x5e8] sm:$0xff]
    %v329 = vld [vmem:[#allocation2 + $0x5f0] sm:$0xff]
    %v330 = vld [vmem:[#allocation2 + $0x5f8] sm:$0xff]
    %v331 = vld [vmem:[#allocation2 + $0x600] sm:$0xff]
    %v332 = vld [vmem:[#allocation2 + $0x608] sm:$0xff]
    %v333 = vld [vmem:[#allocation2 + $0x610] sm:$0xff]
    %v334 = vld [vmem:[#allocation2 + $0x618] sm:$0xff]
    %v335 = vld [vmem:[#allocation2 + $0x620] sm:$0xff]
    %v336 = vld [vmem:[#allocation2 + $0x628] sm:$0xff]
    %v337 = vld [vmem:[#allocation2 + $0x630] sm:$0xff]
    %v338 = vld [vmem:[#allocation2 + $0x638] sm:$0xff]
    %v339 = vld [vmem:[#allocation2 + $0x640] sm:$0xff]
    %v340 = vld [vmem:[#allocation2 + $0x648] sm:$0xff]
    %v341 = vld [vmem:[#allocation2 + $0x650] sm:$0xff]
    %v342 = vld [vmem:[#allocation2 + $0x658] sm:$0xff]
    %v343 = vld [vmem:[#allocation2 + $0x660] sm:$0xff]
    %v344 = vld [vmem:[#allocation2 + $0x668] sm:$0xff]
    %v345 = vld [vmem:[#allocation2 + $0x670] sm:$0xff]
    %v346 = vld [vmem:[#allocation2 + $0x678] sm:$0xff]
    %v347 = vld [vmem:[#allocation2 + $0x680] sm:$0xff]
    %v348 = vld [vmem:[#allocation2 + $0x688] sm:$0xff]
    %v349 = vld [vmem:[#allocation2 + $0x690] sm:$0xff]
    %v350 = vld [vmem:[#allocation2 + $0x698] sm:$0xff]
    %v351 = vld [vmem:[#allocation2 + $0x6a0] sm:$0xff]
    %v352 = vld [vmem:[#allocation2 + $0x6a8] sm:$0xff]
    %v353 = vld [vmem:[#allocation2 + $0x6b0] sm:$0xff]
    %v354 = vld [vmem:[#allocation2 + $0x6b8] sm:$0xff]
    %v355 = vld [vmem:[#allocation2 + $0x6c0] sm:$0xff]
    %v356 = vld [vmem:[#allocation2 + $0x6c8] sm:$0xff]
    %v357 = vld [vmem:[#allocation2 + $0x6d0] sm:$0xff]
    %v358 = vld [vmem:[#allocation2 + $0x6d8] sm:$0xff]
    %v359 = vld [vmem:[#allocation2 + $0x6e0] sm:$0xff]
    %v360 = vld [vmem:[#allocation2 + $0x6e8] sm:$0xff]
    %v361 = vld [vmem:[#allocation2 + $0x6f0] sm:$0xff]
    %v362 = vld [vmem:[#allocation2 + $0x6f8] sm:$0xff]
    %v363 = vld [vmem:[#allocation2 + $0x700] sm:$0xff]
    %v364 = vld [vmem:[#allocation2 + $0x708] sm:$0xff]
    %v365 = vld [vmem:[#allocation2 + $0x710] sm:$0xff]
    %v366 = vld [vmem:[#allocation2 + $0x718] sm:$0xff]
    %v367 = vld [vmem:[#allocation2 + $0x720] sm:$0xff]
    %v368 = vld [vmem:[#allocation2 + $0x728] sm:$0xff]
    %v369 = vld [vmem:[#allocation2 + $0x730] sm:$0xff]
    %v370 = vld [vmem:[#allocation2 + $0x738] sm:$0xff]
    %v371 = vld [vmem:[#allocation2 + $0x740] sm:$0xff]
    %v372 = vld [vmem:[#allocation2 + $0x748] sm:$0xff]
    %v373 = vld [vmem:[#allocation2 + $0x750] sm:$0xff]
    %v374 = vld [vmem:[#allocation2 + $0x758] sm:$0xff]
    %v375 = vld [vmem:[#allocation2 + $0x760] sm:$0xff]
    %v376 = vld [vmem:[#allocation2 + $0x768] sm:$0xff]
    %v377 = vld [vmem:[#allocation2 + $0x770] sm:$0xff]
    %v378 = vld [vmem:[#allocation2 + $0x778] sm:$0xff]
    %v379 = vld [vmem:[#allocation2 + $0x780] sm:$0xff]
    %v380 = vld [vmem:[#allocation2 + $0x788] sm:$0xff]
    %v381 = vld [vmem:[#allocation2 + $0x790] sm:$0xff]
    %v382 = vld [vmem:[#allocation2 + $0x798] sm:$0xff]
    %v383 = vld [vmem:[#allocation2 + $0x7a0] sm:$0xff]
    %v384 = vld [vmem:[#allocation2 + $0x7a8] sm:$0xff]
    %v385 = vld [vmem:[#allocation2 + $0x7b0] sm:$0xff]
    %v386 = vld [vmem:[#allocation2 + $0x7b8] sm:$0xff]
    %v387 = vld [vmem:[#allocation2 + $0x7c0] sm:$0xff]
    %v388 = vld [vmem:[#allocation2 + $0x7c8] sm:$0xff]
    %v389 = vld [vmem:[#allocation2 + $0x7d0] sm:$0xff]
    %v390 = vld [vmem:[#allocation2 + $0x7d8] sm:$0xff]
    %v391 = vld [vmem:[#allocation2 + $0x7e0] sm:$0xff]
    %v392 = vld [vmem:[#allocation2 + $0x7e8] sm:$0xff]
    %v393 = vld [vmem:[#allocation2 + $0x7f0] sm:$0xff]
    %v394 = vld [vmem:[#allocation2 + $0x7f8] sm:$0xff]
    %v395 = vld [vmem:[%s3] sm:$0xf]
    %v397 = vlaneseq
    %v398 = vshrl.u32 %v397, 7
    %v399 = vsub.s32 0, %v398
    %v400 = vrot.slane %v395, %v399
    %v401 = vlaneseq
    %v402 = vshrl.u32 %v401, 7
    %v403 = vsub.s32 1, %v402
    %v404 = vrot.slane %v395, %v403
    %v405 = vlaneseq
    %v406 = vshrl.u32 %v405, 7
    %v407 = vsub.s32 2, %v406
    %v408 = vrot.slane %v395, %v407
    %v409 = vlaneseq
    %v410 = vshrl.u32 %v409, 7
    %v411 = vsub.s32 3, %v410
    %v412 = vrot.slane %v395, %v411
    %v673 = vunpack.c.l.b16 %v139
    %v674 = vunpack.c.h.b16 %v139
    %v675 = vunpack.c.l.b16 %v140
    %v676 = vunpack.c.h.b16 %v140
    %v677 = vunpack.c.l.b16 %v141
    %v678 = vunpack.c.h.b16 %v141
    %v679 = vunpack.c.l.b16 %v142
    %v680 = vunpack.c.h.b16 %v142
    %v681 = vunpack.c.l.b16 %v143
    %v682 = vunpack.c.h.b16 %v143
    %v683 = vunpack.c.l.b16 %v144
    %v684 = vunpack.c.h.b16 %v144
    %v685 = vunpack.c.l.b16 %v145
    %v686 = vunpack.c.h.b16 %v145
    %v687 = vunpack.c.l.b16 %v146
    %v688 = vunpack.c.h.b16 %v146
    %v689 = vunpack.c.l.b16 %v147
    %v690 = vunpack.c.h.b16 %v147
    %v691 = vunpack.c.l.b16 %v148
    %v692 = vunpack.c.h.b16 %v148
    %v693 = vunpack.c.l.b16 %v149
    %v694 = vunpack.c.h.b16 %v149
    %v695 = vunpack.c.l.b16 %v150
    %v696 = vunpack.c.h.b16 %v150
    %v697 = vunpack.c.l.b16 %v151
    %v698 = vunpack.c.h.b16 %v151
    %v699 = vunpack.c.l.b16 %v152
    %v700 = vunpack.c.h.b16 %v152
    %v701 = vunpack.c.l.b16 %v153
    %v702 = vunpack.c.h.b16 %v153
    %v703 = vunpack.c.l.b16 %v154
    %v704 = vunpack.c.h.b16 %v154
    %v705 = vunpack.c.l.b16 %v155
    %v706 = vunpack.c.h.b16 %v155
    %v707 = vunpack.c.l.b16 %v156
    %v708 = vunpack.c.h.b16 %v156
    %v709 = vunpack.c.l.b16 %v157
    %v710 = vunpack.c.h.b16 %v157
    %v711 = vunpack.c.l.b16 %v158
    %v712 = vunpack.c.h.b16 %v158
    %v713 = vunpack.c.l.b16 %v159
    %v714 = vunpack.c.h.b16 %v159
    %v715 = vunpack.c.l.b16 %v160
    %v716 = vunpack.c.h.b16 %v160
    %v717 = vunpack.c.l.b16 %v161
    %v718 = vunpack.c.h.b16 %v161
    %v719 = vunpack.c.l.b16 %v162
    %v720 = vunpack.c.h.b16 %v162
    %v721 = vunpack.c.l.b16 %v163
    %v722 = vunpack.c.h.b16 %v163
    %v723 = vunpack.c.l.b16 %v164
    %v724 = vunpack.c.h.b16 %v164
    %v725 = vunpack.c.l.b16 %v165
    %v726 = vunpack.c.h.b16 %v165
    %v727 = vunpack.c.l.b16 %v166
    %v728 = vunpack.c.h.b16 %v166
    %v729 = vunpack.c.l.b16 %v167
    %v730 = vunpack.c.h.b16 %v167
    %v731 = vunpack.c.l.b16 %v168
    %v732 = vunpack.c.h.b16 %v168
    %v733 = vunpack.c.l.b16 %v169
    %v734 = vunpack.c.h.b16 %v169
    %v735 = vunpack.c.l.b16 %v170
    %v736 = vunpack.c.h.b16 %v170
    %v737 = vunpack.c.l.b16 %v171
    %v738 = vunpack.c.h.b16 %v171
    %v739 = vunpack.c.l.b16 %v172
    %v740 = vunpack.c.h.b16 %v172
    %v741 = vunpack.c.l.b16 %v173
    %v742 = vunpack.c.h.b16 %v173
    %v743 = vunpack.c.l.b16 %v174
    %v744 = vunpack.c.h.b16 %v174
    %v745 = vunpack.c.l.b16 %v175
    %v746 = vunpack.c.h.b16 %v175
    %v747 = vunpack.c.l.b16 %v176
    %v748 = vunpack.c.h.b16 %v176
    %v749 = vunpack.c.l.b16 %v177
    %v750 = vunpack.c.h.b16 %v177
    %v751 = vunpack.c.l.b16 %v178
    %v752 = vunpack.c.h.b16 %v178
    %v753 = vunpack.c.l.b16 %v179
    %v754 = vunpack.c.h.b16 %v179
    %v755 = vunpack.c.l.b16 %v180
    %v756 = vunpack.c.h.b16 %v180
    %v757 = vunpack.c.l.b16 %v181
    %v758 = vunpack.c.h.b16 %v181
    %v759 = vunpack.c.l.b16 %v182
    %v760 = vunpack.c.h.b16 %v182
    %v761 = vunpack.c.l.b16 %v183
    %v762 = vunpack.c.h.b16 %v183
    %v763 = vunpack.c.l.b16 %v184
    %v764 = vunpack.c.h.b16 %v184
    %v765 = vunpack.c.l.b16 %v185
    %v766 = vunpack.c.h.b16 %v185
    %v767 = vunpack.c.l.b16 %v186
    %v768 = vunpack.c.h.b16 %v186
    %v769 = vunpack.c.l.b16 %v187
    %v770 = vunpack.c.h.b16 %v187
    %v771 = vunpack.c.l.b16 %v188
    %v772 = vunpack.c.h.b16 %v188
    %v773 = vunpack.c.l.b16 %v189
    %v774 = vunpack.c.h.b16 %v189
    %v775 = vunpack.c.l.b16 %v190
    %v776 = vunpack.c.h.b16 %v190
    %v777 = vunpack.c.l.b16 %v191
    %v778 = vunpack.c.h.b16 %v191
    %v779 = vunpack.c.l.b16 %v192
    %v780 = vunpack.c.h.b16 %v192
    %v781 = vunpack.c.l.b16 %v193
    %v782 = vunpack.c.h.b16 %v193
    %v783 = vunpack.c.l.b16 %v194
    %v784 = vunpack.c.h.b16 %v194
    %v785 = vunpack.c.l.b16 %v195
    %v786 = vunpack.c.h.b16 %v195
    %v787 = vunpack.c.l.b16 %v196
    %v788 = vunpack.c.h.b16 %v196
    %v789 = vunpack.c.l.b16 %v197
    %v790 = vunpack.c.h.b16 %v197
    %v791 = vunpack.c.l.b16 %v198
    %v792 = vunpack.c.h.b16 %v198
    %v793 = vunpack.c.l.b16 %v199
    %v794 = vunpack.c.h.b16 %v199
    %v795 = vunpack.c.l.b16 %v200
    %v796 = vunpack.c.h.b16 %v200
    %v797 = vunpack.c.l.b16 %v201
    %v798 = vunpack.c.h.b16 %v201
    %v799 = vunpack.c.l.b16 %v202
    %v800 = vunpack.c.h.b16 %v202
    %v801 = vunpack.c.l.b16 %v203
    %v802 = vunpack.c.h.b16 %v203
    %v803 = vunpack.c.l.b16 %v204
    %v804 = vunpack.c.h.b16 %v204
    %v805 = vunpack.c.l.b16 %v205
    %v806 = vunpack.c.h.b16 %v205
    %v807 = vunpack.c.l.b16 %v206
    %v808 = vunpack.c.h.b16 %v206
    %v809 = vunpack.c.l.b16 %v207
    %v810 = vunpack.c.h.b16 %v207
    %v811 = vunpack.c.l.b16 %v208
    %v812 = vunpack.c.h.b16 %v208
    %v813 = vunpack.c.l.b16 %v209
    %v814 = vunpack.c.h.b16 %v209
    %v815 = vunpack.c.l.b16 %v210
    %v816 = vunpack.c.h.b16 %v210
    %v817 = vunpack.c.l.b16 %v211
    %v818 = vunpack.c.h.b16 %v211
    %v819 = vunpack.c.l.b16 %v212
    %v820 = vunpack.c.h.b16 %v212
    %v821 = vunpack.c.l.b16 %v213
    %v822 = vunpack.c.h.b16 %v213
    %v823 = vunpack.c.l.b16 %v214
    %v824 = vunpack.c.h.b16 %v214
    %v825 = vunpack.c.l.b16 %v215
    %v826 = vunpack.c.h.b16 %v215
    %v827 = vunpack.c.l.b16 %v216
    %v828 = vunpack.c.h.b16 %v216
    %v829 = vunpack.c.l.b16 %v217
    %v830 = vunpack.c.h.b16 %v217
    %v831 = vunpack.c.l.b16 %v218
    %v832 = vunpack.c.h.b16 %v218
    %v833 = vunpack.c.l.b16 %v219
    %v834 = vunpack.c.h.b16 %v219
    %v835 = vunpack.c.l.b16 %v220
    %v836 = vunpack.c.h.b16 %v220
    %v837 = vunpack.c.l.b16 %v221
    %v838 = vunpack.c.h.b16 %v221
    %v839 = vunpack.c.l.b16 %v222
    %v840 = vunpack.c.h.b16 %v222
    %v841 = vunpack.c.l.b16 %v223
    %v842 = vunpack.c.h.b16 %v223
    %v843 = vunpack.c.l.b16 %v224
    %v844 = vunpack.c.h.b16 %v224
    %v845 = vunpack.c.l.b16 %v225
    %v846 = vunpack.c.h.b16 %v225
    %v847 = vunpack.c.l.b16 %v226
    %v848 = vunpack.c.h.b16 %v226
    %v849 = vunpack.c.l.b16 %v227
    %v850 = vunpack.c.h.b16 %v227
    %v851 = vunpack.c.l.b16 %v228
    %v852 = vunpack.c.h.b16 %v228
    %v853 = vunpack.c.l.b16 %v229
    %v854 = vunpack.c.h.b16 %v229
    %v855 = vunpack.c.l.b16 %v230
    %v856 = vunpack.c.h.b16 %v230
    %v857 = vunpack.c.l.b16 %v231
    %v858 = vunpack.c.h.b16 %v231
    %v859 = vunpack.c.l.b16 %v232
    %v860 = vunpack.c.h.b16 %v232
    %v861 = vunpack.c.l.b16 %v233
    %v862 = vunpack.c.h.b16 %v233
    %v863 = vunpack.c.l.b16 %v234
    %v864 = vunpack.c.h.b16 %v234
    %v865 = vunpack.c.l.b16 %v235
    %v866 = vunpack.c.h.b16 %v235
    %v867 = vunpack.c.l.b16 %v236
    %v868 = vunpack.c.h.b16 %v236
    %v869 = vunpack.c.l.b16 %v237
    %v870 = vunpack.c.h.b16 %v237
    %v871 = vunpack.c.l.b16 %v238
    %v872 = vunpack.c.h.b16 %v238
    %v873 = vunpack.c.l.b16 %v239
    %v874 = vunpack.c.h.b16 %v239
    %v875 = vunpack.c.l.b16 %v240
    %v876 = vunpack.c.h.b16 %v240
    %v877 = vunpack.c.l.b16 %v241
    %v878 = vunpack.c.h.b16 %v241
    %v879 = vunpack.c.l.b16 %v242
    %v880 = vunpack.c.h.b16 %v242
    %v881 = vunpack.c.l.b16 %v243
    %v882 = vunpack.c.h.b16 %v243
    %v883 = vunpack.c.l.b16 %v244
    %v884 = vunpack.c.h.b16 %v244
    %v885 = vunpack.c.l.b16 %v245
    %v886 = vunpack.c.h.b16 %v245
    %v887 = vunpack.c.l.b16 %v246
    %v888 = vunpack.c.h.b16 %v246
    %v889 = vunpack.c.l.b16 %v247
    %v890 = vunpack.c.h.b16 %v247
    %v891 = vunpack.c.l.b16 %v248
    %v892 = vunpack.c.h.b16 %v248
    %v893 = vunpack.c.l.b16 %v249
    %v894 = vunpack.c.h.b16 %v249
    %v895 = vunpack.c.l.b16 %v250
    %v896 = vunpack.c.h.b16 %v250
    %v897 = vunpack.c.l.b16 %v251
    %v898 = vunpack.c.h.b16 %v251
    %v899 = vunpack.c.l.b16 %v252
    %v900 = vunpack.c.h.b16 %v252
    %v901 = vunpack.c.l.b16 %v253
    %v902 = vunpack.c.h.b16 %v253
    %v903 = vunpack.c.l.b16 %v254
    %v904 = vunpack.c.h.b16 %v254
    %v905 = vunpack.c.l.b16 %v255
    %v906 = vunpack.c.h.b16 %v255
    %v907 = vunpack.c.l.b16 %v256
    %v908 = vunpack.c.h.b16 %v256
    %v909 = vunpack.c.l.b16 %v257
    %v910 = vunpack.c.h.b16 %v257
    %v911 = vunpack.c.l.b16 %v258
    %v912 = vunpack.c.h.b16 %v258
    %v913 = vunpack.c.l.b16 %v259
    %v914 = vunpack.c.h.b16 %v259
    %v915 = vunpack.c.l.b16 %v260
    %v916 = vunpack.c.h.b16 %v260
    %v917 = vunpack.c.l.b16 %v261
    %v918 = vunpack.c.h.b16 %v261
    %v919 = vunpack.c.l.b16 %v262
    %v920 = vunpack.c.h.b16 %v262
    %v921 = vunpack.c.l.b16 %v263
    %v922 = vunpack.c.h.b16 %v263
    %v923 = vunpack.c.l.b16 %v264
    %v924 = vunpack.c.h.b16 %v264
    %v925 = vunpack.c.l.b16 %v265
    %v926 = vunpack.c.h.b16 %v265
    %v927 = vunpack.c.l.b16 %v266
    %v928 = vunpack.c.h.b16 %v266
    %v929 = vunpack.c.l.b16 %v267
    %v930 = vunpack.c.h.b16 %v267
    %v931 = vunpack.c.l.b16 %v268
    %v932 = vunpack.c.h.b16 %v268
    %v933 = vunpack.c.l.b16 %v269
    %v934 = vunpack.c.h.b16 %v269
    %v935 = vunpack.c.l.b16 %v270
    %v936 = vunpack.c.h.b16 %v270
    %v937 = vunpack.c.l.b16 %v271
    %v938 = vunpack.c.h.b16 %v271
    %v939 = vunpack.c.l.b16 %v272
    %v940 = vunpack.c.h.b16 %v272
    %v941 = vunpack.c.l.b16 %v273
    %v942 = vunpack.c.h.b16 %v273
    %v943 = vunpack.c.l.b16 %v274
    %v944 = vunpack.c.h.b16 %v274
    %v945 = vunpack.c.l.b16 %v275
    %v946 = vunpack.c.h.b16 %v275
    %v947 = vunpack.c.l.b16 %v276
    %v948 = vunpack.c.h.b16 %v276
    %v949 = vunpack.c.l.b16 %v277
    %v950 = vunpack.c.h.b16 %v277
    %v951 = vunpack.c.l.b16 %v278
    %v952 = vunpack.c.h.b16 %v278
    %v953 = vunpack.c.l.b16 %v279
    %v954 = vunpack.c.h.b16 %v279
    %v955 = vunpack.c.l.b16 %v280
    %v956 = vunpack.c.h.b16 %v280
    %v957 = vunpack.c.l.b16 %v281
    %v958 = vunpack.c.h.b16 %v281
    %v959 = vunpack.c.l.b16 %v282
    %v960 = vunpack.c.h.b16 %v282
    %v961 = vunpack.c.l.b16 %v283
    %v962 = vunpack.c.h.b16 %v283
    %v963 = vunpack.c.l.b16 %v284
    %v964 = vunpack.c.h.b16 %v284
    %v965 = vunpack.c.l.b16 %v285
    %v966 = vunpack.c.h.b16 %v285
    %v967 = vunpack.c.l.b16 %v286
    %v968 = vunpack.c.h.b16 %v286
    %v969 = vunpack.c.l.b16 %v287
    %v970 = vunpack.c.h.b16 %v287
    %v971 = vunpack.c.l.b16 %v288
    %v972 = vunpack.c.h.b16 %v288
    %v973 = vunpack.c.l.b16 %v289
    %v974 = vunpack.c.h.b16 %v289
    %v975 = vunpack.c.l.b16 %v290
    %v976 = vunpack.c.h.b16 %v290
    %v977 = vunpack.c.l.b16 %v291
    %v978 = vunpack.c.h.b16 %v291
    %v979 = vunpack.c.l.b16 %v292
    %v980 = vunpack.c.h.b16 %v292
    %v981 = vunpack.c.l.b16 %v293
    %v982 = vunpack.c.h.b16 %v293
    %v983 = vunpack.c.l.b16 %v294
    %v984 = vunpack.c.h.b16 %v294
    %v985 = vunpack.c.l.b16 %v295
    %v986 = vunpack.c.h.b16 %v295
    %v987 = vunpack.c.l.b16 %v296
    %v988 = vunpack.c.h.b16 %v296
    %v989 = vunpack.c.l.b16 %v297
    %v990 = vunpack.c.h.b16 %v297
    %v991 = vunpack.c.l.b16 %v298
    %v992 = vunpack.c.h.b16 %v298
    %v993 = vunpack.c.l.b16 %v299
    %v994 = vunpack.c.h.b16 %v299
    %v995 = vunpack.c.l.b16 %v300
    %v996 = vunpack.c.h.b16 %v300
    %v997 = vunpack.c.l.b16 %v301
    %v998 = vunpack.c.h.b16 %v301
    %v999 = vunpack.c.l.b16 %v302
    %v1000 = vunpack.c.h.b16 %v302
    %v1001 = vunpack.c.l.b16 %v303
    %v1002 = vunpack.c.h.b16 %v303
    %v1003 = vunpack.c.l.b16 %v304
    %v1004 = vunpack.c.h.b16 %v304
    %v1005 = vunpack.c.l.b16 %v305
    %v1006 = vunpack.c.h.b16 %v305
    %v1007 = vunpack.c.l.b16 %v306
    %v1008 = vunpack.c.h.b16 %v306
    %v1009 = vunpack.c.l.b16 %v307
    %v1010 = vunpack.c.h.b16 %v307
    %v1011 = vunpack.c.l.b16 %v308
    %v1012 = vunpack.c.h.b16 %v308
    %v1013 = vunpack.c.l.b16 %v309
    %v1014 = vunpack.c.h.b16 %v309
    %v1015 = vunpack.c.l.b16 %v310
    %v1016 = vunpack.c.h.b16 %v310
    %v1017 = vunpack.c.l.b16 %v311
    %v1018 = vunpack.c.h.b16 %v311
    %v1019 = vunpack.c.l.b16 %v312
    %v1020 = vunpack.c.h.b16 %v312
    %v1021 = vunpack.c.l.b16 %v313
    %v1022 = vunpack.c.h.b16 %v313
    %v1023 = vunpack.c.l.b16 %v314
    %v1024 = vunpack.c.h.b16 %v314
    %v1025 = vunpack.c.l.b16 %v315
    %v1026 = vunpack.c.h.b16 %v315
    %v1027 = vunpack.c.l.b16 %v316
    %v1028 = vunpack.c.h.b16 %v316
    %v1029 = vunpack.c.l.b16 %v317
    %v1030 = vunpack.c.h.b16 %v317
    %v1031 = vunpack.c.l.b16 %v318
    %v1032 = vunpack.c.h.b16 %v318
    %v1033 = vunpack.c.l.b16 %v319
    %v1034 = vunpack.c.h.b16 %v319
    %v1035 = vunpack.c.l.b16 %v320
    %v1036 = vunpack.c.h.b16 %v320
    %v1037 = vunpack.c.l.b16 %v321
    %v1038 = vunpack.c.h.b16 %v321
    %v1039 = vunpack.c.l.b16 %v322
    %v1040 = vunpack.c.h.b16 %v322
    %v1041 = vunpack.c.l.b16 %v323
    %v1042 = vunpack.c.h.b16 %v323
    %v1043 = vunpack.c.l.b16 %v324
    %v1044 = vunpack.c.h.b16 %v324
    %v1045 = vunpack.c.l.b16 %v325
    %v1046 = vunpack.c.h.b16 %v325
    %v1047 = vunpack.c.l.b16 %v326
    %v1048 = vunpack.c.h.b16 %v326
    %v1049 = vunpack.c.l.b16 %v327
    %v1050 = vunpack.c.h.b16 %v327
    %v1051 = vunpack.c.l.b16 %v328
    %v1052 = vunpack.c.h.b16 %v328
    %v1053 = vunpack.c.l.b16 %v329
    %v1054 = vunpack.c.h.b16 %v329
    %v1055 = vunpack.c.l.b16 %v330
    %v1056 = vunpack.c.h.b16 %v330
    %v1057 = vunpack.c.l.b16 %v331
    %v1058 = vunpack.c.h.b16 %v331
    %v1059 = vunpack.c.l.b16 %v332
    %v1060 = vunpack.c.h.b16 %v332
    %v1061 = vunpack.c.l.b16 %v333
    %v1062 = vunpack.c.h.b16 %v333
    %v1063 = vunpack.c.l.b16 %v334
    %v1064 = vunpack.c.h.b16 %v334
    %v1065 = vunpack.c.l.b16 %v335
    %v1066 = vunpack.c.h.b16 %v335
    %v1067 = vunpack.c.l.b16 %v336
    %v1068 = vunpack.c.h.b16 %v336
    %v1069 = vunpack.c.l.b16 %v337
    %v1070 = vunpack.c.h.b16 %v337
    %v1071 = vunpack.c.l.b16 %v338
    %v1072 = vunpack.c.h.b16 %v338
    %v1073 = vunpack.c.l.b16 %v339
    %v1074 = vunpack.c.h.b16 %v339
    %v1075 = vunpack.c.l.b16 %v340
    %v1076 = vunpack.c.h.b16 %v340
    %v1077 = vunpack.c.l.b16 %v341
    %v1078 = vunpack.c.h.b16 %v341
    %v1079 = vunpack.c.l.b16 %v342
    %v1080 = vunpack.c.h.b16 %v342
    %v1081 = vunpack.c.l.b16 %v343
    %v1082 = vunpack.c.h.b16 %v343
    %v1083 = vunpack.c.l.b16 %v344
    %v1084 = vunpack.c.h.b16 %v344
    %v1085 = vunpack.c.l.b16 %v345
    %v1086 = vunpack.c.h.b16 %v345
    %v1087 = vunpack.c.l.b16 %v346
    %v1088 = vunpack.c.h.b16 %v346
    %v1089 = vunpack.c.l.b16 %v347
    %v1090 = vunpack.c.h.b16 %v347
    %v1091 = vunpack.c.l.b16 %v348
    %v1092 = vunpack.c.h.b16 %v348
    %v1093 = vunpack.c.l.b16 %v349
    %v1094 = vunpack.c.h.b16 %v349
    %v1095 = vunpack.c.l.b16 %v350
    %v1096 = vunpack.c.h.b16 %v350
    %v1097 = vunpack.c.l.b16 %v351
    %v1098 = vunpack.c.h.b16 %v351
    %v1099 = vunpack.c.l.b16 %v352
    %v1100 = vunpack.c.h.b16 %v352
    %v1101 = vunpack.c.l.b16 %v353
    %v1102 = vunpack.c.h.b16 %v353
    %v1103 = vunpack.c.l.b16 %v354
    %v1104 = vunpack.c.h.b16 %v354
    %v1105 = vunpack.c.l.b16 %v355
    %v1106 = vunpack.c.h.b16 %v355
    %v1107 = vunpack.c.l.b16 %v356
    %v1108 = vunpack.c.h.b16 %v356
    %v1109 = vunpack.c.l.b16 %v357
    %v1110 = vunpack.c.h.b16 %v357
    %v1111 = vunpack.c.l.b16 %v358
    %v1112 = vunpack.c.h.b16 %v358
    %v1113 = vunpack.c.l.b16 %v359
    %v1114 = vunpack.c.h.b16 %v359
    %v1115 = vunpack.c.l.b16 %v360
    %v1116 = vunpack.c.h.b16 %v360
    %v1117 = vunpack.c.l.b16 %v361
    %v1118 = vunpack.c.h.b16 %v361
    %v1119 = vunpack.c.l.b16 %v362
    %v1120 = vunpack.c.h.b16 %v362
    %v1121 = vunpack.c.l.b16 %v363
    %v1122 = vunpack.c.h.b16 %v363
    %v1123 = vunpack.c.l.b16 %v364
    %v1124 = vunpack.c.h.b16 %v364
    %v1125 = vunpack.c.l.b16 %v365
    %v1126 = vunpack.c.h.b16 %v365
    %v1127 = vunpack.c.l.b16 %v366
    %v1128 = vunpack.c.h.b16 %v366
    %v1129 = vunpack.c.l.b16 %v367
    %v1130 = vunpack.c.h.b16 %v367
    %v1131 = vunpack.c.l.b16 %v368
    %v1132 = vunpack.c.h.b16 %v368
    %v1133 = vunpack.c.l.b16 %v369
    %v1134 = vunpack.c.h.b16 %v369
    %v1135 = vunpack.c.l.b16 %v370
    %v1136 = vunpack.c.h.b16 %v370
    %v1137 = vunpack.c.l.b16 %v371
    %v1138 = vunpack.c.h.b16 %v371
    %v1139 = vunpack.c.l.b16 %v372
    %v1140 = vunpack.c.h.b16 %v372
    %v1141 = vunpack.c.l.b16 %v373
    %v1142 = vunpack.c.h.b16 %v373
    %v1143 = vunpack.c.l.b16 %v374
    %v1144 = vunpack.c.h.b16 %v374
    %v1145 = vunpack.c.l.b16 %v375
    %v1146 = vunpack.c.h.b16 %v375
    %v1147 = vunpack.c.l.b16 %v376
    %v1148 = vunpack.c.h.b16 %v376
    %v1149 = vunpack.c.l.b16 %v377
    %v1150 = vunpack.c.h.b16 %v377
    %v1151 = vunpack.c.l.b16 %v378
    %v1152 = vunpack.c.h.b16 %v378
    %v1153 = vunpack.c.l.b16 %v379
    %v1154 = vunpack.c.h.b16 %v379
    %v1155 = vunpack.c.l.b16 %v380
    %v1156 = vunpack.c.h.b16 %v380
    %v1157 = vunpack.c.l.b16 %v381
    %v1158 = vunpack.c.h.b16 %v381
    %v1159 = vunpack.c.l.b16 %v382
    %v1160 = vunpack.c.h.b16 %v382
    %v1161 = vunpack.c.l.b16 %v383
    %v1162 = vunpack.c.h.b16 %v383
    %v1163 = vunpack.c.l.b16 %v384
    %v1164 = vunpack.c.h.b16 %v384
    %v1165 = vunpack.c.l.b16 %v385
    %v1166 = vunpack.c.h.b16 %v385
    %v1167 = vunpack.c.l.b16 %v386
    %v1168 = vunpack.c.h.b16 %v386
    %v1169 = vunpack.c.l.b16 %v387
    %v1170 = vunpack.c.h.b16 %v387
    %v1171 = vunpack.c.l.b16 %v388
    %v1172 = vunpack.c.h.b16 %v388
    %v1173 = vunpack.c.l.b16 %v389
    %v1174 = vunpack.c.h.b16 %v389
    %v1175 = vunpack.c.l.b16 %v390
    %v1176 = vunpack.c.h.b16 %v390
    %v1177 = vunpack.c.l.b16 %v391
    %v1178 = vunpack.c.h.b16 %v391
    %v1179 = vunpack.c.l.b16 %v392
    %v1180 = vunpack.c.h.b16 %v392
    %v1181 = vunpack.c.l.b16 %v393
    %v1182 = vunpack.c.h.b16 %v393
    %v1183 = vunpack.c.l.b16 %v394
    %v1184 = vunpack.c.h.b16 %v394
    %v1185 = vpack.c.b16 %v677, %v673
    %v1186 = vpack.c.b16 %v678, %v674
    %v1187 = vpack.c.b16 %v679, %v675
    %v1188 = vpack.c.b16 %v680, %v676
    %v1189 = vpack.c.b16 %v685, %v681
    %v1190 = vpack.c.b16 %v686, %v682
    %v1191 = vpack.c.b16 %v687, %v683
    %v1192 = vpack.c.b16 %v688, %v684
    %v1193 = vpack.c.b16 %v693, %v689
    %v1194 = vpack.c.b16 %v694, %v690
    %v1195 = vpack.c.b16 %v695, %v691
    %v1196 = vpack.c.b16 %v696, %v692
    %v1197 = vpack.c.b16 %v701, %v697
    %v1198 = vpack.c.b16 %v702, %v698
    %v1199 = vpack.c.b16 %v703, %v699
    %v1200 = vpack.c.b16 %v704, %v700
    %v1201 = vpack.c.b16 %v709, %v705
    %v1202 = vpack.c.b16 %v710, %v706
    %v1203 = vpack.c.b16 %v711, %v707
    %v1204 = vpack.c.b16 %v712, %v708
    %v1205 = vpack.c.b16 %v717, %v713
    %v1206 = vpack.c.b16 %v718, %v714
    %v1207 = vpack.c.b16 %v719, %v715
    %v1208 = vpack.c.b16 %v720, %v716
    %v1209 = vpack.c.b16 %v725, %v721
    %v1210 = vpack.c.b16 %v726, %v722
    %v1211 = vpack.c.b16 %v727, %v723
    %v1212 = vpack.c.b16 %v728, %v724
    %v1213 = vpack.c.b16 %v733, %v729
    %v1214 = vpack.c.b16 %v734, %v730
    %v1215 = vpack.c.b16 %v735, %v731
    %v1216 = vpack.c.b16 %v736, %v732
    %v1217 = vpack.c.b16 %v741, %v737
    %v1218 = vpack.c.b16 %v742, %v738
    %v1219 = vpack.c.b16 %v743, %v739
    %v1220 = vpack.c.b16 %v744, %v740
    %v1221 = vpack.c.b16 %v749, %v745
    %v1222 = vpack.c.b16 %v750, %v746
    %v1223 = vpack.c.b16 %v751, %v747
    %v1224 = vpack.c.b16 %v752, %v748
    %v1225 = vpack.c.b16 %v757, %v753
    %v1226 = vpack.c.b16 %v758, %v754
    %v1227 = vpack.c.b16 %v759, %v755
    %v1228 = vpack.c.b16 %v760, %v756
    %v1229 = vpack.c.b16 %v765, %v761
    %v1230 = vpack.c.b16 %v766, %v762
    %v1231 = vpack.c.b16 %v767, %v763
    %v1232 = vpack.c.b16 %v768, %v764
    %v1233 = vpack.c.b16 %v773, %v769
    %v1234 = vpack.c.b16 %v774, %v770
    %v1235 = vpack.c.b16 %v775, %v771
    %v1236 = vpack.c.b16 %v776, %v772
    %v1237 = vpack.c.b16 %v781, %v777
    %v1238 = vpack.c.b16 %v782, %v778
    %v1239 = vpack.c.b16 %v783, %v779
    %v1240 = vpack.c.b16 %v784, %v780
    %v1241 = vpack.c.b16 %v789, %v785
    %v1242 = vpack.c.b16 %v790, %v786
    %v1243 = vpack.c.b16 %v791, %v787
    %v1244 = vpack.c.b16 %v792, %v788
    %v1245 = vpack.c.b16 %v797, %v793
    %v1246 = vpack.c.b16 %v798, %v794
    %v1247 = vpack.c.b16 %v799, %v795
    %v1248 = vpack.c.b16 %v800, %v796
    %v1249 = vpack.c.b16 %v805, %v801
    %v1250 = vpack.c.b16 %v806, %v802
    %v1251 = vpack.c.b16 %v807, %v803
    %v1252 = vpack.c.b16 %v808, %v804
    %v1253 = vpack.c.b16 %v813, %v809
    %v1254 = vpack.c.b16 %v814, %v810
    %v1255 = vpack.c.b16 %v815, %v811
    %v1256 = vpack.c.b16 %v816, %v812
    %v1257 = vpack.c.b16 %v821, %v817
    %v1258 = vpack.c.b16 %v822, %v818
    %v1259 = vpack.c.b16 %v823, %v819
    %v1260 = vpack.c.b16 %v824, %v820
    %v1261 = vpack.c.b16 %v829, %v825
    %v1262 = vpack.c.b16 %v830, %v826
    %v1263 = vpack.c.b16 %v831, %v827
    %v1264 = vpack.c.b16 %v832, %v828
    %v1265 = vpack.c.b16 %v837, %v833
    %v1266 = vpack.c.b16 %v838, %v834
    %v1267 = vpack.c.b16 %v839, %v835
    %v1268 = vpack.c.b16 %v840, %v836
    %v1269 = vpack.c.b16 %v845, %v841
    %v1270 = vpack.c.b16 %v846, %v842
    %v1271 = vpack.c.b16 %v847, %v843
    %v1272 = vpack.c.b16 %v848, %v844
    %v1273 = vpack.c.b16 %v853, %v849
    %v1274 = vpack.c.b16 %v854, %v850
    %v1275 = vpack.c.b16 %v855, %v851
    %v1276 = vpack.c.b16 %v856, %v852
    %v1277 = vpack.c.b16 %v861, %v857
    %v1278 = vpack.c.b16 %v862, %v858
    %v1279 = vpack.c.b16 %v863, %v859
    %v1280 = vpack.c.b16 %v864, %v860
    %v1281 = vpack.c.b16 %v869, %v865
    %v1282 = vpack.c.b16 %v870, %v866
    %v1283 = vpack.c.b16 %v871, %v867
    %v1284 = vpack.c.b16 %v872, %v868
    %v1285 = vpack.c.b16 %v877, %v873
    %v1286 = vpack.c.b16 %v878, %v874
    %v1287 = vpack.c.b16 %v879, %v875
    %v1288 = vpack.c.b16 %v880, %v876
    %v1289 = vpack.c.b16 %v885, %v881
    %v1290 = vpack.c.b16 %v886, %v882
    %v1291 = vpack.c.b16 %v887, %v883
    %v1292 = vpack.c.b16 %v888, %v884
    %v1293 = vpack.c.b16 %v893, %v889
    %v1294 = vpack.c.b16 %v894, %v890
    %v1295 = vpack.c.b16 %v895, %v891
    %v1296 = vpack.c.b16 %v896, %v892
    %v1297 = vpack.c.b16 %v901, %v897
    %v1298 = vpack.c.b16 %v902, %v898
    %v1299 = vpack.c.b16 %v903, %v899
    %v1300 = vpack.c.b16 %v904, %v900
    %v1301 = vpack.c.b16 %v909, %v905
    %v1302 = vpack.c.b16 %v910, %v906
    %v1303 = vpack.c.b16 %v911, %v907
    %v1304 = vpack.c.b16 %v912, %v908
    %v1305 = vpack.c.b16 %v917, %v913
    %v1306 = vpack.c.b16 %v918, %v914
    %v1307 = vpack.c.b16 %v919, %v915
    %v1308 = vpack.c.b16 %v920, %v916
    %v1309 = vpack.c.b16 %v925, %v921
    %v1310 = vpack.c.b16 %v926, %v922
    %v1311 = vpack.c.b16 %v927, %v923
    %v1312 = vpack.c.b16 %v928, %v924
    %v1313 = vpack.c.b16 %v933, %v929
    %v1314 = vpack.c.b16 %v934, %v930
    %v1315 = vpack.c.b16 %v935, %v931
    %v1316 = vpack.c.b16 %v936, %v932
    %v1317 = vpack.c.b16 %v941, %v937
    %v1318 = vpack.c.b16 %v942, %v938
    %v1319 = vpack.c.b16 %v943, %v939
    %v1320 = vpack.c.b16 %v944, %v940
    %v1321 = vpack.c.b16 %v949, %v945
    %v1322 = vpack.c.b16 %v950, %v946
    %v1323 = vpack.c.b16 %v951, %v947
    %v1324 = vpack.c.b16 %v952, %v948
    %v1325 = vpack.c.b16 %v957, %v953
    %v1326 = vpack.c.b16 %v958, %v954
    %v1327 = vpack.c.b16 %v959, %v955
    %v1328 = vpack.c.b16 %v960, %v956
    %v1329 = vpack.c.b16 %v965, %v961
    %v1330 = vpack.c.b16 %v966, %v962
    %v1331 = vpack.c.b16 %v967, %v963
    %v1332 = vpack.c.b16 %v968, %v964
    %v1333 = vpack.c.b16 %v973, %v969
    %v1334 = vpack.c.b16 %v974, %v970
    %v1335 = vpack.c.b16 %v975, %v971
    %v1336 = vpack.c.b16 %v976, %v972
    %v1337 = vpack.c.b16 %v981, %v977
    %v1338 = vpack.c.b16 %v982, %v978
    %v1339 = vpack.c.b16 %v983, %v979
    %v1340 = vpack.c.b16 %v984, %v980
    %v1341 = vpack.c.b16 %v989, %v985
    %v1342 = vpack.c.b16 %v990, %v986
    %v1343 = vpack.c.b16 %v991, %v987
    %v1344 = vpack.c.b16 %v992, %v988
    %v1345 = vpack.c.b16 %v997, %v993
    %v1346 = vpack.c.b16 %v998, %v994
    %v1347 = vpack.c.b16 %v999, %v995
    %v1348 = vpack.c.b16 %v1000, %v996
    %v1349 = vpack.c.b16 %v1005, %v1001
    %v1350 = vpack.c.b16 %v1006, %v1002
    %v1351 = vpack.c.b16 %v1007, %v1003
    %v1352 = vpack.c.b16 %v1008, %v1004
    %v1353 = vpack.c.b16 %v1013, %v1009
    %v1354 = vpack.c.b16 %v1014, %v1010
    %v1355 = vpack.c.b16 %v1015, %v1011
    %v1356 = vpack.c.b16 %v1016, %v1012
    %v1357 = vpack.c.b16 %v1021, %v1017
    %v1358 = vpack.c.b16 %v1022, %v1018
    %v1359 = vpack.c.b16 %v1023, %v1019
    %v1360 = vpack.c.b16 %v1024, %v1020
    %v1361 = vpack.c.b16 %v1029, %v1025
    %v1362 = vpack.c.b16 %v1030, %v1026
    %v1363 = vpack.c.b16 %v1031, %v1027
    %v1364 = vpack.c.b16 %v1032, %v1028
    %v1365 = vpack.c.b16 %v1037, %v1033
    %v1366 = vpack.c.b16 %v1038, %v1034
    %v1367 = vpack.c.b16 %v1039, %v1035
    %v1368 = vpack.c.b16 %v1040, %v1036
    %v1369 = vpack.c.b16 %v1045, %v1041
    %v1370 = vpack.c.b16 %v1046, %v1042
    %v1371 = vpack.c.b16 %v1047, %v1043
    %v1372 = vpack.c.b16 %v1048, %v1044
    %v1373 = vpack.c.b16 %v1053, %v1049
    %v1374 = vpack.c.b16 %v1054, %v1050
    %v1375 = vpack.c.b16 %v1055, %v1051
    %v1376 = vpack.c.b16 %v1056, %v1052
    %v1377 = vpack.c.b16 %v1061, %v1057
    %v1378 = vpack.c.b16 %v1062, %v1058
    %v1379 = vpack.c.b16 %v1063, %v1059
    %v1380 = vpack.c.b16 %v1064, %v1060
    %v1381 = vpack.c.b16 %v1069, %v1065
    %v1382 = vpack.c.b16 %v1070, %v1066
    %v1383 = vpack.c.b16 %v1071, %v1067
    %v1384 = vpack.c.b16 %v1072, %v1068
    %v1385 = vpack.c.b16 %v1077, %v1073
    %v1386 = vpack.c.b16 %v1078, %v1074
    %v1387 = vpack.c.b16 %v1079, %v1075
    %v1388 = vpack.c.b16 %v1080, %v1076
    %v1389 = vpack.c.b16 %v1085, %v1081
    %v1390 = vpack.c.b16 %v1086, %v1082
    %v1391 = vpack.c.b16 %v1087, %v1083
    %v1392 = vpack.c.b16 %v1088, %v1084
    %v1393 = vpack.c.b16 %v1093, %v1089
    %v1394 = vpack.c.b16 %v1094, %v1090
    %v1395 = vpack.c.b16 %v1095, %v1091
    %v1396 = vpack.c.b16 %v1096, %v1092
    %v1397 = vpack.c.b16 %v1101, %v1097
    %v1398 = vpack.c.b16 %v1102, %v1098
    %v1399 = vpack.c.b16 %v1103, %v1099
    %v1400 = vpack.c.b16 %v1104, %v1100
    %v1401 = vpack.c.b16 %v1109, %v1105
    %v1402 = vpack.c.b16 %v1110, %v1106
    %v1403 = vpack.c.b16 %v1111, %v1107
    %v1404 = vpack.c.b16 %v1112, %v1108
    %v1405 = vpack.c.b16 %v1117, %v1113
    %v1406 = vpack.c.b16 %v1118, %v1114
    %v1407 = vpack.c.b16 %v1119, %v1115
    %v1408 = vpack.c.b16 %v1120, %v1116
    %v1409 = vpack.c.b16 %v1125, %v1121
    %v1410 = vpack.c.b16 %v1126, %v1122
    %v1411 = vpack.c.b16 %v1127, %v1123
    %v1412 = vpack.c.b16 %v1128, %v1124
    %v1413 = vpack.c.b16 %v1133, %v1129
    %v1414 = vpack.c.b16 %v1134, %v1130
    %v1415 = vpack.c.b16 %v1135, %v1131
    %v1416 = vpack.c.b16 %v1136, %v1132
    %v1417 = vpack.c.b16 %v1141, %v1137
    %v1418 = vpack.c.b16 %v1142, %v1138
    %v1419 = vpack.c.b16 %v1143, %v1139
    %v1420 = vpack.c.b16 %v1144, %v1140
    %v1421 = vpack.c.b16 %v1149, %v1145
    %v1422 = vpack.c.b16 %v1150, %v1146
    %v1423 = vpack.c.b16 %v1151, %v1147
    %v1424 = vpack.c.b16 %v1152, %v1148
    %v1425 = vpack.c.b16 %v1157, %v1153
    %v1426 = vpack.c.b16 %v1158, %v1154
    %v1427 = vpack.c.b16 %v1159, %v1155
    %v1428 = vpack.c.b16 %v1160, %v1156
    %v1429 = vpack.c.b16 %v1165, %v1161
    %v1430 = vpack.c.b16 %v1166, %v1162
    %v1431 = vpack.c.b16 %v1167, %v1163
    %v1432 = vpack.c.b16 %v1168, %v1164
    %v1433 = vpack.c.b16 %v1173, %v1169
    %v1434 = vpack.c.b16 %v1174, %v1170
    %v1435 = vpack.c.b16 %v1175, %v1171
    %v1436 = vpack.c.b16 %v1176, %v1172
    %v1437 = vpack.c.b16 %v1181, %v1177
    %v1438 = vpack.c.b16 %v1182, %v1178
    %v1439 = vpack.c.b16 %v1183, %v1179
    %v1440 = vpack.c.b16 %v1184, %v1180
    %1697 = vmatprep.subr.bf16.mxu0 %v1214
    %1698 = vmatpush1.bf16.msra.mxu0 %v1213
    %1699 = vmatprep.subr.bf16.mxu0 %v1210
    %1700 = vmatpush1.bf16.msra.mxu0 %v1209
    %1701 = vmatprep.subr.bf16.mxu0 %v1206
    %1702 = vmatpush1.bf16.msra.mxu0 %v1205
    %1703 = vmatprep.subr.bf16.mxu0 %v1202
    %1704 = vmatpush1.bf16.msra.mxu0 %v1201
    %1705 = vmatprep.subr.bf16.mxu0 %v1198
    %1706 = vmatpush1.bf16.msra.mxu0 %v1197
    %1707 = vmatprep.subr.bf16.mxu0 %v1194
    %1708 = vmatpush1.bf16.msra.mxu0 %v1193
    %1709 = vmatprep.subr.bf16.mxu0 %v1190
    %1710 = vmatpush1.bf16.msra.mxu0 %v1189
    %1711 = vmatprep.subr.bf16.mxu0 %v1186
    %1712 = vmatpush1.bf16.msra.mxu0 %v1185
    %1713 = vmatprep.subr.bf16.mxu0 %v1246
    %1714 = vmatpush2.bf16.msra.mxu0 %v1245
    %1715 = vmatprep.subr.bf16.mxu0 %v1242
    %1716 = vmatpush2.bf16.msra.mxu0 %v1241
    %1717 = vmatprep.subr.bf16.mxu0 %v1238
    %1718 = vmatpush2.bf16.msra.mxu0 %v1237
    %1719 = vmatprep.subr.bf16.mxu0 %v1234
    %1720 = vmatpush2.bf16.msra.mxu0 %v1233
    %1721 = vmatprep.subr.bf16.mxu0 %v1230
    %1722 = vmatpush2.bf16.msra.mxu0 %v1229
    %1723 = vmatprep.subr.bf16.mxu0 %v1226
    %1724 = vmatpush2.bf16.msra.mxu0 %v1225
    %1725 = vmatprep.subr.bf16.mxu0 %v1222
    %1726 = vmatpush2.bf16.msra.mxu0 %v1221
    %1727 = vmatprep.subr.bf16.mxu0 %v1218
    %1728 = vmatpush2.bf16.msra.mxu0 %v1217
    %1729 = vmatprep.mubr.bf16.mxu0 %v132
    %1730 = vmatmul.mubr.bf16.gmra.mxu0 %v131
    %v1731 = vpop.f32.mrf.mxu0
    %v1732 = vadd.f32 %v400, %v1731
    %v1733 = vpop.f32.mrf.mxu0
    %v1734 = vadd.f32 %v404, %v1733
    %v1735 = vpop.f32.mrf.mxu0
    %v1736 = vpop.f32.mrf.mxu0
    %1737 = vdwg.mxu0
    %1738 = vmatprep.subr.bf16.mxu0 %v1278
    %1739 = vmatpush1.bf16.msra.mxu0 %v1277
    %1740 = vmatprep.subr.bf16.mxu0 %v1274
    %1741 = vmatpush1.bf16.msra.mxu0 %v1273
    %1742 = vmatprep.subr.bf16.mxu0 %v1270
    %1743 = vmatpush1.bf16.msra.mxu0 %v1269
    %1744 = vmatprep.subr.bf16.mxu0 %v1266
    %1745 = vmatpush1.bf16.msra.mxu0 %v1265
    %1746 = vmatprep.subr.bf16.mxu0 %v1262
    %1747 = vmatpush1.bf16.msra.mxu0 %v1261
    %1748 = vmatprep.subr.bf16.mxu0 %v1258
    %1749 = vmatpush1.bf16.msra.mxu0 %v1257
    %1750 = vmatprep.subr.bf16.mxu0 %v1254
    %1751 = vmatpush1.bf16.msra.mxu0 %v1253
    %1752 = vmatprep.subr.bf16.mxu0 %v1250
    %1753 = vmatpush1.bf16.msra.mxu0 %v1249
    %1754 = vmatprep.subr.bf16.mxu0 %v1310
    %1755 = vmatpush2.bf16.msra.mxu0 %v1309
    %1756 = vmatprep.subr.bf16.mxu0 %v1306
    %1757 = vmatpush2.bf16.msra.mxu0 %v1305
    %1758 = vmatprep.subr.bf16.mxu0 %v1302
    %1759 = vmatpush2.bf16.msra.mxu0 %v1301
    %1760 = vmatprep.subr.bf16.mxu0 %v1298
    %1761 = vmatpush2.bf16.msra.mxu0 %v1297
    %1762 = vmatprep.subr.bf16.mxu0 %v1294
    %1763 = vmatpush2.bf16.msra.mxu0 %v1293
    %1764 = vmatprep.subr.bf16.mxu0 %v1290
    %1765 = vmatpush2.bf16.msra.mxu0 %v1289
    %1766 = vmatprep.subr.bf16.mxu0 %v1286
    %1767 = vmatpush2.bf16.msra.mxu0 %v1285
    %1768 = vmatprep.subr.bf16.mxu0 %v1282
    %1769 = vmatpush2.bf16.msra.mxu0 %v1281
    %1770 = vmatprep.mubr.bf16.mxu0 %v134
    %1771 = vmatmul.mubr.bf16.gmra.mxu0 %v133
    %v1772 = vpop.f32.mrf.mxu0
    %v1773 = vadd.f32 %v1732, %v1772
    %v1774 = vpop.f32.mrf.mxu0
    %v1775 = vadd.f32 %v1734, %v1774
    %v1776 = vpop.f32.mrf.mxu0
    %v1777 = vpop.f32.mrf.mxu0
    %1778 = vdwg.mxu0
    %1779 = vmatprep.subr.bf16.mxu0 %v1342
    %1780 = vmatpush1.bf16.msra.mxu0 %v1341
    %1781 = vmatprep.subr.bf16.mxu0 %v1338
    %1782 = vmatpush1.bf16.msra.mxu0 %v1337
    %1783 = vmatprep.subr.bf16.mxu0 %v1334
    %1784 = vmatpush1.bf16.msra.mxu0 %v1333
    %1785 = vmatprep.subr.bf16.mxu0 %v1330
    %1786 = vmatpush1.bf16.msra.mxu0 %v1329
    %1787 = vmatprep.subr.bf16.mxu0 %v1326
    %1788 = vmatpush1.bf16.msra.mxu0 %v1325
    %1789 = vmatprep.subr.bf16.mxu0 %v1322
    %1790 = vmatpush1.bf16.msra.mxu0 %v1321
    %1791 = vmatprep.subr.bf16.mxu0 %v1318
    %1792 = vmatpush1.bf16.msra.mxu0 %v1317
    %1793 = vmatprep.subr.bf16.mxu0 %v1314
    %1794 = vmatpush1.bf16.msra.mxu0 %v1313
    %1795 = vmatprep.subr.bf16.mxu0 %v1374
    %1796 = vmatpush2.bf16.msra.mxu0 %v1373
    %1797 = vmatprep.subr.bf16.mxu0 %v1370
    %1798 = vmatpush2.bf16.msra.mxu0 %v1369
    %1799 = vmatprep.subr.bf16.mxu0 %v1366
    %1800 = vmatpush2.bf16.msra.mxu0 %v1365
    %1801 = vmatprep.subr.bf16.mxu0 %v1362
    %1802 = vmatpush2.bf16.msra.mxu0 %v1361
    %1803 = vmatprep.subr.bf16.mxu0 %v1358
    %1804 = vmatpush2.bf16.msra.mxu0 %v1357
    %1805 = vmatprep.subr.bf16.mxu0 %v1354
    %1806 = vmatpush2.bf16.msra.mxu0 %v1353
    %1807 = vmatprep.subr.bf16.mxu0 %v1350
    %1808 = vmatpush2.bf16.msra.mxu0 %v1349
    %1809 = vmatprep.subr.bf16.mxu0 %v1346
    %1810 = vmatpush2.bf16.msra.mxu0 %v1345
    %1811 = vmatprep.mubr.bf16.mxu0 %v136
    %1812 = vmatmul.mubr.bf16.gmra.mxu0 %v135
    %v1813 = vpop.f32.mrf.mxu0
    %v1814 = vadd.f32 %v1773, %v1813
    %v1815 = vpop.f32.mrf.mxu0
    %v1816 = vadd.f32 %v1775, %v1815
    %v1817 = vpop.f32.mrf.mxu0
    %v1818 = vpop.f32.mrf.mxu0
    %1819 = vdwg.mxu0
    %1820 = vmatprep.subr.bf16.mxu0 %v1406
    %1821 = vmatpush1.bf16.msra.mxu0 %v1405
    %1822 = vmatprep.subr.bf16.mxu0 %v1402
    %1823 = vmatpush1.bf16.msra.mxu0 %v1401
    %1824 = vmatprep.subr.bf16.mxu0 %v1398
    %1825 = vmatpush1.bf16.msra.mxu0 %v1397
    %1826 = vmatprep.subr.bf16.mxu0 %v1394
    %1827 = vmatpush1.bf16.msra.mxu0 %v1393
    %1828 = vmatprep.subr.bf16.mxu0 %v1390
    %1829 = vmatpush1.bf16.msra.mxu0 %v1389
    %1830 = vmatprep.subr.bf16.mxu0 %v1386
    %1831 = vmatpush1.bf16.msra.mxu0 %v1385
    %1832 = vmatprep.subr.bf16.mxu0 %v1382
    %1833 = vmatpush1.bf16.msra.mxu0 %v1381
    %1834 = vmatprep.subr.bf16.mxu0 %v1378
    %1835 = vmatpush1.bf16.msra.mxu0 %v1377
    %1836 = vmatprep.subr.bf16.mxu0 %v1438
    %1837 = vmatpush2.bf16.msra.mxu0 %v1437
    %1838 = vmatprep.subr.bf16.mxu0 %v1434
    %1839 = vmatpush2.bf16.msra.mxu0 %v1433
    %1840 = vmatprep.subr.bf16.mxu0 %v1430
    %1841 = vmatpush2.bf16.msra.mxu0 %v1429
    %1842 = vmatprep.subr.bf16.mxu0 %v1426
    %1843 = vmatpush2.bf16.msra.mxu0 %v1425
    %1844 = vmatprep.subr.bf16.mxu0 %v1422
    %1845 = vmatpush2.bf16.msra.mxu0 %v1421
    %1846 = vmatprep.subr.bf16.mxu0 %v1418
    %1847 = vmatpush2.bf16.msra.mxu0 %v1417
    %1848 = vmatprep.subr.bf16.mxu0 %v1414
    %1849 = vmatpush2.bf16.msra.mxu0 %v1413
    %1850 = vmatprep.subr.bf16.mxu0 %v1410
    %1851 = vmatpush2.bf16.msra.mxu0 %v1409
    %1852 = vmatprep.mubr.bf16.mxu0 %v138
    %1853 = vmatmul.mubr.bf16.gmra.mxu0 %v137
    %v1854 = vpop.f32.mrf.mxu0
    %v1855 = vadd.f32 %v1814, %v1854
    %v1856 = vpop.f32.mrf.mxu0
    %v1857 = vadd.f32 %v1816, %v1856
    %v1858 = vpop.f32.mrf.mxu0
    %v1859 = vpop.f32.mrf.mxu0
    %1860 = vdwg.mxu0
    %1861 = vmatprep.subr.bf16.mxu0 %v1216
    %1862 = vmatpush1.bf16.msra.mxu0 %v1215
    %1863 = vmatprep.subr.bf16.mxu0 %v1212
    %1864 = vmatpush1.bf16.msra.mxu0 %v1211
    %1865 = vmatprep.subr.bf16.mxu0 %v1208
    %1866 = vmatpush1.bf16.msra.mxu0 %v1207
    %1867 = vmatprep.subr.bf16.mxu0 %v1204
    %1868 = vmatpush1.bf16.msra.mxu0 %v1203
    %1869 = vmatprep.subr.bf16.mxu0 %v1200
    %1870 = vmatpush1.bf16.msra.mxu0 %v1199
    %1871 = vmatprep.subr.bf16.mxu0 %v1196
    %1872 = vmatpush1.bf16.msra.mxu0 %v1195
    %1873 = vmatprep.subr.bf16.mxu0 %v1192
    %1874 = vmatpush1.bf16.msra.mxu0 %v1191
    %1875 = vmatprep.subr.bf16.mxu0 %v1188
    %1876 = vmatpush1.bf16.msra.mxu0 %v1187
    %1877 = vmatprep.subr.bf16.mxu0 %v1248
    %1878 = vmatpush2.bf16.msra.mxu0 %v1247
    %1879 = vmatprep.subr.bf16.mxu0 %v1244
    %1880 = vmatpush2.bf16.msra.mxu0 %v1243
    %1881 = vmatprep.subr.bf16.mxu0 %v1240
    %1882 = vmatpush2.bf16.msra.mxu0 %v1239
    %1883 = vmatprep.subr.bf16.mxu0 %v1236
    %1884 = vmatpush2.bf16.msra.mxu0 %v1235
    %1885 = vmatprep.subr.bf16.mxu0 %v1232
    %1886 = vmatpush2.bf16.msra.mxu0 %v1231
    %1887 = vmatprep.subr.bf16.mxu0 %v1228
    %1888 = vmatpush2.bf16.msra.mxu0 %v1227
    %1889 = vmatprep.subr.bf16.mxu0 %v1224
    %1890 = vmatpush2.bf16.msra.mxu0 %v1223
    %1891 = vmatprep.subr.bf16.mxu0 %v1220
    %1892 = vmatpush2.bf16.msra.mxu0 %v1219
    %1893 = vmatprep.mubr.bf16.mxu0 %v132
    %1894 = vmatmul.mubr.bf16.gmra.mxu0 %v131
    %v1895 = vpop.f32.mrf.mxu0
    %v1896 = vadd.f32 %v408, %v1895
    %v1897 = vpop.f32.mrf.mxu0
    %v1898 = vadd.f32 %v412, %v1897
    %v1899 = vpop.f32.mrf.mxu0
    %v1900 = vpop.f32.mrf.mxu0
    %1901 = vdwg.mxu0
    %1902 = vmatprep.subr.bf16.mxu0 %v1280
    %1903 = vmatpush1.bf16.msra.mxu0 %v1279
    %1904 = vmatprep.subr.bf16.mxu0 %v1276
    %1905 = vmatpush1.bf16.msra.mxu0 %v1275
    %1906 = vmatprep.subr.bf16.mxu0 %v1272
    %1907 = vmatpush1.bf16.msra.mxu0 %v1271
    %1908 = vmatprep.subr.bf16.mxu0 %v1268
    %1909 = vmatpush1.bf16.msra.mxu0 %v1267
    %1910 = vmatprep.subr.bf16.mxu0 %v1264
    %1911 = vmatpush1.bf16.msra.mxu0 %v1263
    %1912 = vmatprep.subr.bf16.mxu0 %v1260
    %1913 = vmatpush1.bf16.msra.mxu0 %v1259
    %1914 = vmatprep.subr.bf16.mxu0 %v1256
    %1915 = vmatpush1.bf16.msra.mxu0 %v1255
    %1916 = vmatprep.subr.bf16.mxu0 %v1252
    %1917 = vmatpush1.bf16.msra.mxu0 %v1251
    %1918 = vmatprep.subr.bf16.mxu0 %v1312
    %1919 = vmatpush2.bf16.msra.mxu0 %v1311
    %1920 = vmatprep.subr.bf16.mxu0 %v1308
    %1921 = vmatpush2.bf16.msra.mxu0 %v1307
    %1922 = vmatprep.subr.bf16.mxu0 %v1304
    %1923 = vmatpush2.bf16.msra.mxu0 %v1303
    %1924 = vmatprep.subr.bf16.mxu0 %v1300
    %1925 = vmatpush2.bf16.msra.mxu0 %v1299
    %1926 = vmatprep.subr.bf16.mxu0 %v1296
    %1927 = vmatpush2.bf16.msra.mxu0 %v1295
    %1928 = vmatprep.subr.bf16.mxu0 %v1292
    %1929 = vmatpush2.bf16.msra.mxu0 %v1291
    %1930 = vmatprep.subr.bf16.mxu0 %v1288
    %1931 = vmatpush2.bf16.msra.mxu0 %v1287
    %1932 = vmatprep.subr.bf16.mxu0 %v1284
    %1933 = vmatpush2.bf16.msra.mxu0 %v1283
    %1934 = vmatprep.mubr.bf16.mxu0 %v134
    %1935 = vmatmul.mubr.bf16.gmra.mxu0 %v133
    %v1936 = vpop.f32.mrf.mxu0
    %v1937 = vadd.f32 %v1896, %v1936
    %v1938 = vpop.f32.mrf.mxu0
    %v1939 = vadd.f32 %v1898, %v1938
    %v1940 = vpop.f32.mrf.mxu0
    %v1941 = vpop.f32.mrf.mxu0
    %1942 = vdwg.mxu0
    %1943 = vmatprep.subr.bf16.mxu0 %v1344
    %1944 = vmatpush1.bf16.msra.mxu0 %v1343
    %1945 = vmatprep.subr.bf16.mxu0 %v1340
    %1946 = vmatpush1.bf16.msra.mxu0 %v1339
    %1947 = vmatprep.subr.bf16.mxu0 %v1336
    %1948 = vmatpush1.bf16.msra.mxu0 %v1335
    %1949 = vmatprep.subr.bf16.mxu0 %v1332
    %1950 = vmatpush1.bf16.msra.mxu0 %v1331
    %1951 = vmatprep.subr.bf16.mxu0 %v1328
    %1952 = vmatpush1.bf16.msra.mxu0 %v1327
    %1953 = vmatprep.subr.bf16.mxu0 %v1324
    %1954 = vmatpush1.bf16.msra.mxu0 %v1323
    %1955 = vmatprep.subr.bf16.mxu0 %v1320
    %1956 = vmatpush1.bf16.msra.mxu0 %v1319
    %1957 = vmatprep.subr.bf16.mxu0 %v1316
    %1958 = vmatpush1.bf16.msra.mxu0 %v1315
    %1959 = vmatprep.subr.bf16.mxu0 %v1376
    %1960 = vmatpush2.bf16.msra.mxu0 %v1375
    %1961 = vmatprep.subr.bf16.mxu0 %v1372
    %1962 = vmatpush2.bf16.msra.mxu0 %v1371
    %1963 = vmatprep.subr.bf16.mxu0 %v1368
    %1964 = vmatpush2.bf16.msra.mxu0 %v1367
    %1965 = vmatprep.subr.bf16.mxu0 %v1364
    %1966 = vmatpush2.bf16.msra.mxu0 %v1363
    %1967 = vmatprep.subr.bf16.mxu0 %v1360
    %1968 = vmatpush2.bf16.msra.mxu0 %v1359
    %1969 = vmatprep.subr.bf16.mxu0 %v1356
    %1970 = vmatpush2.bf16.msra.mxu0 %v1355
    %1971 = vmatprep.subr.bf16.mxu0 %v1352
    %1972 = vmatpush2.bf16.msra.mxu0 %v1351
    %1973 = vmatprep.subr.bf16.mxu0 %v1348
    %1974 = vmatpush2.bf16.msra.mxu0 %v1347
    %1975 = vmatprep.mubr.bf16.mxu0 %v136
    %1976 = vmatmul.mubr.bf16.gmra.mxu0 %v135
    %v1977 = vpop.f32.mrf.mxu0
    %v1978 = vadd.f32 %v1937, %v1977
    %v1979 = vpop.f32.mrf.mxu0
    %v1980 = vadd.f32 %v1939, %v1979
    %v1981 = vpop.f32.mrf.mxu0
    %v1982 = vpop.f32.mrf.mxu0
    %1983 = vdwg.mxu0
    %1984 = vmatprep.subr.bf16.mxu0 %v1408
    %1985 = vmatpush1.bf16.msra.mxu0 %v1407
    %1986 = vmatprep.subr.bf16.mxu0 %v1404
    %1987 = vmatpush1.bf16.msra.mxu0 %v1403
    %1988 = vmatprep.subr.bf16.mxu0 %v1400
    %1989 = vmatpush1.bf16.msra.mxu0 %v1399
    %1990 = vmatprep.subr.bf16.mxu0 %v1396
    %1991 = vmatpush1.bf16.msra.mxu0 %v1395
    %1992 = vmatprep.subr.bf16.mxu0 %v1392
    %1993 = vmatpush1.bf16.msra.mxu0 %v1391
    %1994 = vmatprep.subr.bf16.mxu0 %v1388
    %1995 = vmatpush1.bf16.msra.mxu0 %v1387
    %1996 = vmatprep.subr.bf16.mxu0 %v1384
    %1997 = vmatpush1.bf16.msra.mxu0 %v1383
    %1998 = vmatprep.subr.bf16.mxu0 %v1380
    %1999 = vmatpush1.bf16.msra.mxu0 %v1379
    %2000 = vmatprep.subr.bf16.mxu0 %v1440
    %2001 = vmatpush2.bf16.msra.mxu0 %v1439
    %2002 = vmatprep.subr.bf16.mxu0 %v1436
    %2003 = vmatpush2.bf16.msra.mxu0 %v1435
    %2004 = vmatprep.subr.bf16.mxu0 %v1432
    %2005 = vmatpush2.bf16.msra.mxu0 %v1431
    %2006 = vmatprep.subr.bf16.mxu0 %v1428
    %2007 = vmatpush2.bf16.msra.mxu0 %v1427
    %2008 = vmatprep.subr.bf16.mxu0 %v1424
    %2009 = vmatpush2.bf16.msra.mxu0 %v1423
    %2010 = vmatprep.subr.bf16.mxu0 %v1420
    %2011 = vmatpush2.bf16.msra.mxu0 %v1419
    %2012 = vmatprep.subr.bf16.mxu0 %v1416
    %2013 = vmatpush2.bf16.msra.mxu0 %v1415
    %2014 = vmatprep.subr.bf16.mxu0 %v1412
    %2015 = vmatpush2.bf16.msra.mxu0 %v1411
    %2016 = vmatprep.mubr.bf16.mxu0 %v138
    %2017 = vmatmul.mubr.bf16.gmra.mxu0 %v137
    %v2018 = vpop.f32.mrf.mxu0
    %v2019 = vadd.f32 %v1978, %v2018
    %v2020 = vpop.f32.mrf.mxu0
    %v2021 = vadd.f32 %v1980, %v2020
    %v2022 = vpop.f32.mrf.mxu0
    %v2023 = vpop.f32.mrf.mxu0
    %2024 = vdwg.mxu0
    %v2025 = vmax.f32 %v1855, 0.0
    %v2026 = vmax.f32 %v1857, 0.0
    %v2027 = vmax.f32 %v2019, 0.0
    %v2028 = vmax.f32 %v2021, 0.0
    %v2029 = vpack.c.bf16 %v2025, %v2025
    %v2030 = vpack.c.bf16 %v2026, %v2026
    %v2031 = vpack.c.bf16 %v2027, %v2027
    %v2032 = vpack.c.bf16 %v2028, %v2028
    %v2033 = vld [vmem:[#allocation4] sm:$0xff]
    %v2034 = vld [vmem:[#allocation4 + $0x8] sm:$0xff]
    %v2035 = vld [vmem:[#allocation4 + $0x10] sm:$0xff]
    %v2036 = vld [vmem:[#allocation4 + $0x18] sm:$0xff]
    %v2037 = vld [vmem:[#allocation4 + $0x20] sm:$0xff]
    %v2038 = vld [vmem:[#allocation4 + $0x28] sm:$0xff]
    %v2039 = vld [vmem:[#allocation4 + $0x30] sm:$0xff]
    %v2040 = vld [vmem:[#allocation4 + $0x38] sm:$0xff]
    %v2041 = vld [vmem:[#allocation4 + $0x40] sm:$0xff]
    %v2042 = vld [vmem:[#allocation4 + $0x48] sm:$0xff]
    %v2043 = vld [vmem:[#allocation4 + $0x50] sm:$0xff]
    %v2044 = vld [vmem:[#allocation4 + $0x58] sm:$0xff]
    %v2045 = vld [vmem:[#allocation4 + $0x60] sm:$0xff]
    %v2046 = vld [vmem:[#allocation4 + $0x68] sm:$0xff]
    %v2047 = vld [vmem:[#allocation4 + $0x70] sm:$0xff]
    %v2048 = vld [vmem:[#allocation4 + $0x78] sm:$0xff]
    %v2049 = vld [vmem:[#allocation4 + $0x80] sm:$0xff]
    %v2050 = vld [vmem:[#allocation4 + $0x88] sm:$0xff]
    %v2051 = vld [vmem:[#allocation4 + $0x90] sm:$0xff]
    %v2052 = vld [vmem:[#allocation4 + $0x98] sm:$0xff]
    %v2053 = vld [vmem:[#allocation4 + $0xa0] sm:$0xff]
    %v2054 = vld [vmem:[#allocation4 + $0xa8] sm:$0xff]
    %v2055 = vld [vmem:[#allocation4 + $0xb0] sm:$0xff]
    %v2056 = vld [vmem:[#allocation4 + $0xb8] sm:$0xff]
    %v2057 = vld [vmem:[#allocation4 + $0xc0] sm:$0xff]
    %v2058 = vld [vmem:[#allocation4 + $0xc8] sm:$0xff]
    %v2059 = vld [vmem:[#allocation4 + $0xd0] sm:$0xff]
    %v2060 = vld [vmem:[#allocation4 + $0xd8] sm:$0xff]
    %v2061 = vld [vmem:[#allocation4 + $0xe0] sm:$0xff]
    %v2062 = vld [vmem:[#allocation4 + $0xe8] sm:$0xff]
    %v2063 = vld [vmem:[#allocation4 + $0xf0] sm:$0xff]
    %v2064 = vld [vmem:[#allocation4 + $0xf8] sm:$0xff]
    %v2065 = vld [vmem:[#allocation4 + $0x100] sm:$0xff]
    %v2066 = vld [vmem:[#allocation4 + $0x108] sm:$0xff]
    %v2067 = vld [vmem:[#allocation4 + $0x110] sm:$0xff]
    %v2068 = vld [vmem:[#allocation4 + $0x118] sm:$0xff]
    %v2069 = vld [vmem:[#allocation4 + $0x120] sm:$0xff]
    %v2070 = vld [vmem:[#allocation4 + $0x128] sm:$0xff]
    %v2071 = vld [vmem:[#allocation4 + $0x130] sm:$0xff]
    %v2072 = vld [vmem:[#allocation4 + $0x138] sm:$0xff]
    %v2073 = vld [vmem:[#allocation4 + $0x140] sm:$0xff]
    %v2074 = vld [vmem:[#allocation4 + $0x148] sm:$0xff]
    %v2075 = vld [vmem:[#allocation4 + $0x150] sm:$0xff]
    %v2076 = vld [vmem:[#allocation4 + $0x158] sm:$0xff]
    %v2077 = vld [vmem:[#allocation4 + $0x160] sm:$0xff]
    %v2078 = vld [vmem:[#allocation4 + $0x168] sm:$0xff]
    %v2079 = vld [vmem:[#allocation4 + $0x170] sm:$0xff]
    %v2080 = vld [vmem:[#allocation4 + $0x178] sm:$0xff]
    %v2081 = vld [vmem:[#allocation4 + $0x180] sm:$0xff]
    %v2082 = vld [vmem:[#allocation4 + $0x188] sm:$0xff]
    %v2083 = vld [vmem:[#allocation4 + $0x190] sm:$0xff]
    %v2084 = vld [vmem:[#allocation4 + $0x198] sm:$0xff]
    %v2085 = vld [vmem:[#allocation4 + $0x1a0] sm:$0xff]
    %v2086 = vld [vmem:[#allocation4 + $0x1a8] sm:$0xff]
    %v2087 = vld [vmem:[#allocation4 + $0x1b0] sm:$0xff]
    %v2088 = vld [vmem:[#allocation4 + $0x1b8] sm:$0xff]
    %v2089 = vld [vmem:[#allocation4 + $0x1c0] sm:$0xff]
    %v2090 = vld [vmem:[#allocation4 + $0x1c8] sm:$0xff]
    %v2091 = vld [vmem:[#allocation4 + $0x1d0] sm:$0xff]
    %v2092 = vld [vmem:[#allocation4 + $0x1d8] sm:$0xff]
    %v2093 = vld [vmem:[#allocation4 + $0x1e0] sm:$0xff]
    %v2094 = vld [vmem:[#allocation4 + $0x1e8] sm:$0xff]
    %v2095 = vld [vmem:[#allocation4 + $0x1f0] sm:$0xff]
    %v2096 = vld [vmem:[#allocation4 + $0x1f8] sm:$0xff]
    %v2097 = vld [vmem:[%s5] sm:$0x3]
    %v2099 = vlaneseq
    %v2100 = vshrl.u32 %v2099, 7
    %v2101 = vsub.s32 0, %v2100
    %v2102 = vrot.slane %v2097, %v2101
    %v2103 = vlaneseq
    %v2104 = vshrl.u32 %v2103, 7
    %v2105 = vsub.s32 1, %v2104
    %v2106 = vrot.slane %v2097, %v2105
    %v2173 = vunpack.c.l.b16 %v2033
    %v2174 = vunpack.c.h.b16 %v2033
    %v2175 = vunpack.c.l.b16 %v2034
    %v2176 = vunpack.c.h.b16 %v2034
    %v2177 = vunpack.c.l.b16 %v2035
    %v2178 = vunpack.c.h.b16 %v2035
    %v2179 = vunpack.c.l.b16 %v2036
    %v2180 = vunpack.c.h.b16 %v2036
    %v2181 = vunpack.c.l.b16 %v2037
    %v2182 = vunpack.c.h.b16 %v2037
    %v2183 = vunpack.c.l.b16 %v2038
    %v2184 = vunpack.c.h.b16 %v2038
    %v2185 = vunpack.c.l.b16 %v2039
    %v2186 = vunpack.c.h.b16 %v2039
    %v2187 = vunpack.c.l.b16 %v2040
    %v2188 = vunpack.c.h.b16 %v2040
    %v2189 = vunpack.c.l.b16 %v2041
    %v2190 = vunpack.c.h.b16 %v2041
    %v2191 = vunpack.c.l.b16 %v2042
    %v2192 = vunpack.c.h.b16 %v2042
    %v2193 = vunpack.c.l.b16 %v2043
    %v2194 = vunpack.c.h.b16 %v2043
    %v2195 = vunpack.c.l.b16 %v2044
    %v2196 = vunpack.c.h.b16 %v2044
    %v2197 = vunpack.c.l.b16 %v2045
    %v2198 = vunpack.c.h.b16 %v2045
    %v2199 = vunpack.c.l.b16 %v2046
    %v2200 = vunpack.c.h.b16 %v2046
    %v2201 = vunpack.c.l.b16 %v2047
    %v2202 = vunpack.c.h.b16 %v2047
    %v2203 = vunpack.c.l.b16 %v2048
    %v2204 = vunpack.c.h.b16 %v2048
    %v2205 = vunpack.c.l.b16 %v2049
    %v2206 = vunpack.c.h.b16 %v2049
    %v2207 = vunpack.c.l.b16 %v2050
    %v2208 = vunpack.c.h.b16 %v2050
    %v2209 = vunpack.c.l.b16 %v2051
    %v2210 = vunpack.c.h.b16 %v2051
    %v2211 = vunpack.c.l.b16 %v2052
    %v2212 = vunpack.c.h.b16 %v2052
    %v2213 = vunpack.c.l.b16 %v2053
    %v2214 = vunpack.c.h.b16 %v2053
    %v2215 = vunpack.c.l.b16 %v2054
    %v2216 = vunpack.c.h.b16 %v2054
    %v2217 = vunpack.c.l.b16 %v2055
    %v2218 = vunpack.c.h.b16 %v2055
    %v2219 = vunpack.c.l.b16 %v2056
    %v2220 = vunpack.c.h.b16 %v2056
    %v2221 = vunpack.c.l.b16 %v2057
    %v2222 = vunpack.c.h.b16 %v2057
    %v2223 = vunpack.c.l.b16 %v2058
    %v2224 = vunpack.c.h.b16 %v2058
    %v2225 = vunpack.c.l.b16 %v2059
    %v2226 = vunpack.c.h.b16 %v2059
    %v2227 = vunpack.c.l.b16 %v2060
    %v2228 = vunpack.c.h.b16 %v2060
    %v2229 = vunpack.c.l.b16 %v2061
    %v2230 = vunpack.c.h.b16 %v2061
    %v2231 = vunpack.c.l.b16 %v2062
    %v2232 = vunpack.c.h.b16 %v2062
    %v2233 = vunpack.c.l.b16 %v2063
    %v2234 = vunpack.c.h.b16 %v2063
    %v2235 = vunpack.c.l.b16 %v2064
    %v2236 = vunpack.c.h.b16 %v2064
    %v2237 = vunpack.c.l.b16 %v2065
    %v2238 = vunpack.c.h.b16 %v2065
    %v2239 = vunpack.c.l.b16 %v2066
    %v2240 = vunpack.c.h.b16 %v2066
    %v2241 = vunpack.c.l.b16 %v2067
    %v2242 = vunpack.c.h.b16 %v2067
    %v2243 = vunpack.c.l.b16 %v2068
    %v2244 = vunpack.c.h.b16 %v2068
    %v2245 = vunpack.c.l.b16 %v2069
    %v2246 = vunpack.c.h.b16 %v2069
    %v2247 = vunpack.c.l.b16 %v2070
    %v2248 = vunpack.c.h.b16 %v2070
    %v2249 = vunpack.c.l.b16 %v2071
    %v2250 = vunpack.c.h.b16 %v2071
    %v2251 = vunpack.c.l.b16 %v2072
    %v2252 = vunpack.c.h.b16 %v2072
    %v2253 = vunpack.c.l.b16 %v2073
    %v2254 = vunpack.c.h.b16 %v2073
    %v2255 = vunpack.c.l.b16 %v2074
    %v2256 = vunpack.c.h.b16 %v2074
    %v2257 = vunpack.c.l.b16 %v2075
    %v2258 = vunpack.c.h.b16 %v2075
    %v2259 = vunpack.c.l.b16 %v2076
    %v2260 = vunpack.c.h.b16 %v2076
    %v2261 = vunpack.c.l.b16 %v2077
    %v2262 = vunpack.c.h.b16 %v2077
    %v2263 = vunpack.c.l.b16 %v2078
    %v2264 = vunpack.c.h.b16 %v2078
    %v2265 = vunpack.c.l.b16 %v2079
    %v2266 = vunpack.c.h.b16 %v2079
    %v2267 = vunpack.c.l.b16 %v2080
    %v2268 = vunpack.c.h.b16 %v2080
    %v2269 = vunpack.c.l.b16 %v2081
    %v2270 = vunpack.c.h.b16 %v2081
    %v2271 = vunpack.c.l.b16 %v2082
    %v2272 = vunpack.c.h.b16 %v2082
    %v2273 = vunpack.c.l.b16 %v2083
    %v2274 = vunpack.c.h.b16 %v2083
    %v2275 = vunpack.c.l.b16 %v2084
    %v2276 = vunpack.c.h.b16 %v2084
    %v2277 = vunpack.c.l.b16 %v2085
    %v2278 = vunpack.c.h.b16 %v2085
    %v2279 = vunpack.c.l.b16 %v2086
    %v2280 = vunpack.c.h.b16 %v2086
    %v2281 = vunpack.c.l.b16 %v2087
    %v2282 = vunpack.c.h.b16 %v2087
    %v2283 = vunpack.c.l.b16 %v2088
    %v2284 = vunpack.c.h.b16 %v2088
    %v2285 = vunpack.c.l.b16 %v2089
    %v2286 = vunpack.c.h.b16 %v2089
    %v2287 = vunpack.c.l.b16 %v2090
    %v2288 = vunpack.c.h.b16 %v2090
    %v2289 = vunpack.c.l.b16 %v2091
    %v2290 = vunpack.c.h.b16 %v2091
    %v2291 = vunpack.c.l.b16 %v2092
    %v2292 = vunpack.c.h.b16 %v2092
    %v2293 = vunpack.c.l.b16 %v2093
    %v2294 = vunpack.c.h.b16 %v2093
    %v2295 = vunpack.c.l.b16 %v2094
    %v2296 = vunpack.c.h.b16 %v2094
    %v2297 = vunpack.c.l.b16 %v2095
    %v2298 = vunpack.c.h.b16 %v2095
    %v2299 = vunpack.c.l.b16 %v2096
    %v2300 = vunpack.c.h.b16 %v2096
    %v2301 = vpack.c.b16 %v2175, %v2173
    %v2302 = vpack.c.b16 %v2176, %v2174
    %v2303 = vpack.c.b16 %v2179, %v2177
    %v2304 = vpack.c.b16 %v2180, %v2178
    %v2305 = vpack.c.b16 %v2183, %v2181
    %v2306 = vpack.c.b16 %v2184, %v2182
    %v2307 = vpack.c.b16 %v2187, %v2185
    %v2308 = vpack.c.b16 %v2188, %v2186
    %v2309 = vpack.c.b16 %v2191, %v2189
    %v2310 = vpack.c.b16 %v2192, %v2190
    %v2311 = vpack.c.b16 %v2195, %v2193
    %v2312 = vpack.c.b16 %v2196, %v2194
    %v2313 = vpack.c.b16 %v2199, %v2197
    %v2314 = vpack.c.b16 %v2200, %v2198
    %v2315 = vpack.c.b16 %v2203, %v2201
    %v2316 = vpack.c.b16 %v2204, %v2202
    %v2317 = vpack.c.b16 %v2207, %v2205
    %v2318 = vpack.c.b16 %v2208, %v2206
    %v2319 = vpack.c.b16 %v2211, %v2209
    %v2320 = vpack.c.b16 %v2212, %v2210
    %v2321 = vpack.c.b16 %v2215, %v2213
    %v2322 = vpack.c.b16 %v2216, %v2214
    %v2323 = vpack.c.b16 %v2219, %v2217
    %v2324 = vpack.c.b16 %v2220, %v2218
    %v2325 = vpack.c.b16 %v2223, %v2221
    %v2326 = vpack.c.b16 %v2224, %v2222
    %v2327 = vpack.c.b16 %v2227, %v2225
    %v2328 = vpack.c.b16 %v2228, %v2226
    %v2329 = vpack.c.b16 %v2231, %v2229
    %v2330 = vpack.c.b16 %v2232, %v2230
    %v2331 = vpack.c.b16 %v2235, %v2233
    %v2332 = vpack.c.b16 %v2236, %v2234
    %v2333 = vpack.c.b16 %v2239, %v2237
    %v2334 = vpack.c.b16 %v2240, %v2238
    %v2335 = vpack.c.b16 %v2243, %v2241
    %v2336 = vpack.c.b16 %v2244, %v2242
    %v2337 = vpack.c.b16 %v2247, %v2245
    %v2338 = vpack.c.b16 %v2248, %v2246
    %v2339 = vpack.c.b16 %v2251, %v2249
    %v2340 = vpack.c.b16 %v2252, %v2250
    %v2341 = vpack.c.b16 %v2255, %v2253
    %v2342 = vpack.c.b16 %v2256, %v2254
    %v2343 = vpack.c.b16 %v2259, %v2257
    %v2344 = vpack.c.b16 %v2260, %v2258
    %v2345 = vpack.c.b16 %v2263, %v2261
    %v2346 = vpack.c.b16 %v2264, %v2262
    %v2347 = vpack.c.b16 %v2267, %v2265
    %v2348 = vpack.c.b16 %v2268, %v2266
    %v2349 = vpack.c.b16 %v2271, %v2269
    %v2350 = vpack.c.b16 %v2272, %v2270
    %v2351 = vpack.c.b16 %v2275, %v2273
    %v2352 = vpack.c.b16 %v2276, %v2274
    %v2353 = vpack.c.b16 %v2279, %v2277
    %v2354 = vpack.c.b16 %v2280, %v2278
    %v2355 = vpack.c.b16 %v2283, %v2281
    %v2356 = vpack.c.b16 %v2284, %v2282
    %v2357 = vpack.c.b16 %v2287, %v2285
    %v2358 = vpack.c.b16 %v2288, %v2286
    %v2359 = vpack.c.b16 %v2291, %v2289
    %v2360 = vpack.c.b16 %v2292, %v2290
    %v2361 = vpack.c.b16 %v2295, %v2293
    %v2362 = vpack.c.b16 %v2296, %v2294
    %v2363 = vpack.c.b16 %v2299, %v2297
    %v2364 = vpack.c.b16 %v2300, %v2298
    %2429 = vmatprep.subr.bf16.mxu0 %v2316
    %2430 = vmatpush1.bf16.msra.mxu0 %v2315
    %2431 = vmatprep.subr.bf16.mxu0 %v2314
    %2432 = vmatpush1.bf16.msra.mxu0 %v2313
    %2433 = vmatprep.subr.bf16.mxu0 %v2312
    %2434 = vmatpush1.bf16.msra.mxu0 %v2311
    %2435 = vmatprep.subr.bf16.mxu0 %v2310
    %2436 = vmatpush1.bf16.msra.mxu0 %v2309
    %2437 = vmatprep.subr.bf16.mxu0 %v2308
    %2438 = vmatpush1.bf16.msra.mxu0 %v2307
    %2439 = vmatprep.subr.bf16.mxu0 %v2306
    %2440 = vmatpush1.bf16.msra.mxu0 %v2305
    %2441 = vmatprep.subr.bf16.mxu0 %v2304
    %2442 = vmatpush1.bf16.msra.mxu0 %v2303
    %2443 = vmatprep.subr.bf16.mxu0 %v2302
    %2444 = vmatpush1.bf16.msra.mxu0 %v2301
    %2445 = vmatprep.subr.bf16.mxu0 %v2332
    %2446 = vmatpush2.bf16.msra.mxu0 %v2331
    %2447 = vmatprep.subr.bf16.mxu0 %v2330
    %2448 = vmatpush2.bf16.msra.mxu0 %v2329
    %2449 = vmatprep.subr.bf16.mxu0 %v2328
    %2450 = vmatpush2.bf16.msra.mxu0 %v2327
    %2451 = vmatprep.subr.bf16.mxu0 %v2326
    %2452 = vmatpush2.bf16.msra.mxu0 %v2325
    %2453 = vmatprep.subr.bf16.mxu0 %v2324
    %2454 = vmatpush2.bf16.msra.mxu0 %v2323
    %2455 = vmatprep.subr.bf16.mxu0 %v2322
    %2456 = vmatpush2.bf16.msra.mxu0 %v2321
    %2457 = vmatprep.subr.bf16.mxu0 %v2320
    %2458 = vmatpush2.bf16.msra.mxu0 %v2319
    %2459 = vmatprep.subr.bf16.mxu0 %v2318
    %2460 = vmatpush2.bf16.msra.mxu0 %v2317
    %2461 = vmatprep.mubr.bf16.mxu0 %v2030
    %2462 = vmatmul.mubr.bf16.gmra.mxu0 %v2029
    %v2463 = vpop.f32.mrf.mxu0
    %v2464 = vadd.f32 %v2102, %v2463
    %v2465 = vpop.f32.mrf.mxu0
    %v2466 = vadd.f32 %v2106, %v2465
    %v2467 = vpop.f32.mrf.mxu0
    %v2468 = vpop.f32.mrf.mxu0
    %2469 = vdwg.mxu0
    %2470 = vmatprep.subr.bf16.mxu0 %v2348
    %2471 = vmatpush1.bf16.msra.mxu0 %v2347
    %2472 = vmatprep.subr.bf16.mxu0 %v2346
    %2473 = vmatpush1.bf16.msra.mxu0 %v2345
    %2474 = vmatprep.subr.bf16.mxu0 %v2344
    %2475 = vmatpush1.bf16.msra.mxu0 %v2343
    %2476 = vmatprep.subr.bf16.mxu0 %v2342
    %2477 = vmatpush1.bf16.msra.mxu0 %v2341
    %2478 = vmatprep.subr.bf16.mxu0 %v2340
    %2479 = vmatpush1.bf16.msra.mxu0 %v2339
    %2480 = vmatprep.subr.bf16.mxu0 %v2338
    %2481 = vmatpush1.bf16.msra.mxu0 %v2337
    %2482 = vmatprep.subr.bf16.mxu0 %v2336
    %2483 = vmatpush1.bf16.msra.mxu0 %v2335
    %2484 = vmatprep.subr.bf16.mxu0 %v2334
    %2485 = vmatpush1.bf16.msra.mxu0 %v2333
    %2486 = vmatprep.subr.bf16.mxu0 %v2364
    %2487 = vmatpush2.bf16.msra.mxu0 %v2363
    %2488 = vmatprep.subr.bf16.mxu0 %v2362
    %2489 = vmatpush2.bf16.msra.mxu0 %v2361
    %2490 = vmatprep.subr.bf16.mxu0 %v2360
    %2491 = vmatpush2.bf16.msra.mxu0 %v2359
    %2492 = vmatprep.subr.bf16.mxu0 %v2358
    %2493 = vmatpush2.bf16.msra.mxu0 %v2357
    %2494 = vmatprep.subr.bf16.mxu0 %v2356
    %2495 = vmatpush2.bf16.msra.mxu0 %v2355
    %2496 = vmatprep.subr.bf16.mxu0 %v2354
    %2497 = vmatpush2.bf16.msra.mxu0 %v2353
    %2498 = vmatprep.subr.bf16.mxu0 %v2352
    %2499 = vmatpush2.bf16.msra.mxu0 %v2351
    %2500 = vmatprep.subr.bf16.mxu0 %v2350
    %2501 = vmatpush2.bf16.msra.mxu0 %v2349
    %2502 = vmatprep.mubr.bf16.mxu0 %v2032
    %2503 = vmatmul.mubr.bf16.gmra.mxu0 %v2031
    %v2504 = vpop.f32.mrf.mxu0
    %v2505 = vadd.f32 %v2464, %v2504
    %v2506 = vpop.f32.mrf.mxu0
    %v2507 = vadd.f32 %v2466, %v2506
    %v2508 = vpop.f32.mrf.mxu0
    %v2509 = vpop.f32.mrf.mxu0
    %2510 = vdwg.mxu0
    %v2511 = vmax.f32 %v2505, 0.0
    %v2512 = vmax.f32 %v2507, 0.0
    %v2513 = vpack.c.bf16 %v2511, %v2511
    %v2514 = vpack.c.bf16 %v2512, %v2512
    %v2515 = vld [vmem:[%s6] sm:$0xf]
    %v2516 = vld [vmem:[%s6 + $0x4] sm:$0xf]
    %v2517 = vld [vmem:[%s6 + $0x8] sm:$0xf]
    %v2518 = vld [vmem:[%s6 + $0xc] sm:$0xf]
    %v2519 = vld [vmem:[%s6 + $0x10] sm:$0xf]
    %v2520 = vld [vmem:[%s6 + $0x14] sm:$0xf]
    %v2521 = vld [vmem:[%s6 + $0x18] sm:$0xf]
    %v2522 = vld [vmem:[%s6 + $0x1c] sm:$0xf]
    %v2523 = vld [vmem:[%s6 + $0x20] sm:$0xf]
    %v2524 = vld [vmem:[%s6 + $0x24] sm:$0xf]
    %v2525 = vld [vmem:[%s6 + $0x28] sm:$0xf]
    %v2526 = vld [vmem:[%s6 + $0x2c] sm:$0xf]
    %v2527 = vld [vmem:[%s6 + $0x30] sm:$0xf]
    %v2528 = vld [vmem:[%s6 + $0x34] sm:$0xf]
    %v2529 = vld [vmem:[%s6 + $0x38] sm:$0xf]
    %v2530 = vld [vmem:[%s6 + $0x3c] sm:$0xf]
    %v2531 = vld [vmem:[%s6 + $0x40] sm:$0xf]
    %v2532 = vld [vmem:[%s6 + $0x44] sm:$0xf]
    %v2533 = vld [vmem:[%s6 + $0x48] sm:$0xf]
    %v2534 = vld [vmem:[%s6 + $0x4c] sm:$0xf]
    %v2535 = vld [vmem:[%s6 + $0x50] sm:$0xf]
    %v2536 = vld [vmem:[%s6 + $0x54] sm:$0xf]
    %v2537 = vld [vmem:[%s6 + $0x58] sm:$0xf]
    %v2538 = vld [vmem:[%s6 + $0x5c] sm:$0xf]
    %v2539 = vld [vmem:[%s6 + $0x60] sm:$0xf]
    %v2540 = vld [vmem:[%s6 + $0x64] sm:$0xf]
    %v2541 = vld [vmem:[%s6 + $0x68] sm:$0xf]
    %v2542 = vld [vmem:[%s6 + $0x6c] sm:$0xf]
    %v2543 = vld [vmem:[%s6 + $0x70] sm:$0xf]
    %v2544 = vld [vmem:[%s6 + $0x74] sm:$0xf]
    %v2545 = vld [vmem:[%s6 + $0x78] sm:$0xf]
    %v2546 = vld [vmem:[%s6 + $0x7c] sm:$0xf]
    %v2547 = vld [vmem:[%s7] sm:$0x1]
    %v2549 = vlaneseq
    %v2550 = vshrl.u32 %v2549, 7
    %v2551 = vsub.s32 0, %v2550
    %v2552 = vrot.slane %v2547, %v2551
    %v2586 = vunpack.c.l.b16 %v2515
    %v2587 = vunpack.c.l.b16 %v2516
    %v2588 = vunpack.c.l.b16 %v2517
    %v2589 = vunpack.c.l.b16 %v2518
    %v2590 = vunpack.c.l.b16 %v2519
    %v2591 = vunpack.c.l.b16 %v2520
    %v2592 = vunpack.c.l.b16 %v2521
    %v2593 = vunpack.c.l.b16 %v2522
    %v2594 = vunpack.c.l.b16 %v2523
    %v2595 = vunpack.c.l.b16 %v2524
    %v2596 = vunpack.c.l.b16 %v2525
    %v2597 = vunpack.c.l.b16 %v2526
    %v2598 = vunpack.c.l.b16 %v2527
    %v2599 = vunpack.c.l.b16 %v2528
    %v2600 = vunpack.c.l.b16 %v2529
    %v2601 = vunpack.c.l.b16 %v2530
    %v2602 = vunpack.c.l.b16 %v2531
    %v2603 = vunpack.c.l.b16 %v2532
    %v2604 = vunpack.c.l.b16 %v2533
    %v2605 = vunpack.c.l.b16 %v2534
    %v2606 = vunpack.c.l.b16 %v2535
    %v2607 = vunpack.c.l.b16 %v2536
    %v2608 = vunpack.c.l.b16 %v2537
    %v2609 = vunpack.c.l.b16 %v2538
    %v2610 = vunpack.c.l.b16 %v2539
    %v2611 = vunpack.c.l.b16 %v2540
    %v2612 = vunpack.c.l.b16 %v2541
    %v2613 = vunpack.c.l.b16 %v2542
    %v2614 = vunpack.c.l.b16 %v2543
    %v2615 = vunpack.c.l.b16 %v2544
    %v2616 = vunpack.c.l.b16 %v2545
    %v2617 = vunpack.c.l.b16 %v2546
    %v2618 = vpack.c.b16 %v2587, %v2586
    %v2619 = vpack.c.b16 %v2589, %v2588
    %v2620 = vpack.c.b16 %v2591, %v2590
    %v2621 = vpack.c.b16 %v2593, %v2592
    %v2622 = vpack.c.b16 %v2595, %v2594
    %v2623 = vpack.c.b16 %v2597, %v2596
    %v2624 = vpack.c.b16 %v2599, %v2598
    %v2625 = vpack.c.b16 %v2601, %v2600
    %v2626 = vpack.c.b16 %v2603, %v2602
    %v2627 = vpack.c.b16 %v2605, %v2604
    %v2628 = vpack.c.b16 %v2607, %v2606
    %v2629 = vpack.c.b16 %v2609, %v2608
    %v2630 = vpack.c.b16 %v2611, %v2610
    %v2631 = vpack.c.b16 %v2613, %v2612
    %v2632 = vpack.c.b16 %v2615, %v2614
    %v2633 = vpack.c.b16 %v2617, %v2616
    %2650 = vmatprep.subr.bf16.mxu0 0
    %2651 = vmatpush1.bf16.msra.mxu0 %v2625
    %2652 = vmatprep.subr.bf16.mxu0 0
    %2653 = vmatpush1.bf16.msra.mxu0 %v2624
    %2654 = vmatprep.subr.bf16.mxu0 0
    %2655 = vmatpush1.bf16.msra.mxu0 %v2623
    %2656 = vmatprep.subr.bf16.mxu0 0
    %2657 = vmatpush1.bf16.msra.mxu0 %v2622
    %2658 = vmatprep.subr.bf16.mxu0 0
    %2659 = vmatpush1.bf16.msra.mxu0 %v2621
    %2660 = vmatprep.subr.bf16.mxu0 0
    %2661 = vmatpush1.bf16.msra.mxu0 %v2620
    %2662 = vmatprep.subr.bf16.mxu0 0
    %2663 = vmatpush1.bf16.msra.mxu0 %v2619
    %2664 = vmatprep.subr.bf16.mxu0 0
    %2665 = vmatpush1.bf16.msra.mxu0 %v2618
    %2666 = vmatprep.subr.bf16.mxu0 0
    %2667 = vmatpush2.bf16.msra.mxu0 %v2633
    %2668 = vmatprep.subr.bf16.mxu0 0
    %2669 = vmatpush2.bf16.msra.mxu0 %v2632
    %2670 = vmatprep.subr.bf16.mxu0 0
    %2671 = vmatpush2.bf16.msra.mxu0 %v2631
    %2672 = vmatprep.subr.bf16.mxu0 0
    %2673 = vmatpush2.bf16.msra.mxu0 %v2630
    %2674 = vmatprep.subr.bf16.mxu0 0
    %2675 = vmatpush2.bf16.msra.mxu0 %v2629
    %2676 = vmatprep.subr.bf16.mxu0 0
    %2677 = vmatpush2.bf16.msra.mxu0 %v2628
    %2678 = vmatprep.subr.bf16.mxu0 0
    %2679 = vmatpush2.bf16.msra.mxu0 %v2627
    %2680 = vmatprep.subr.bf16.mxu0 0
    %2681 = vmatpush2.bf16.msra.mxu0 %v2626
    %2682 = vmatprep.mubr.bf16.mxu0 %v2514
    %2683 = vmatmul.mubr.bf16.gmra.mxu0 %v2513
    %v2684 = vpop.f32.mrf.mxu0
    %v2685 = vadd.f32 %v2552, %v2684
    %v2686 = vpop.f32.mrf.mxu0
    %v2687 = vpop.f32.mrf.mxu0
    %v2688 = vpop.f32.mrf.mxu0
    %2689 = vdwg.mxu0
    %vm2690 = vcmask 517120
    %2691 = vst.msk [vmem:[%s13] sm:$0x3] %vm2690, %v2685
    %v2692 = vmax.f32 %v2685, -10.0
    %v2693 = vmin.f32 %v2692, 10.0
    %v2694 = vmul.f32 %v2693, 0.5
    %v2695 = vmul.f32 %v2694, 1.442695
    %v2696 = vpow.pop %v2695
    %v2697 = vadd.f32 %v2696, 1e-06
    %v2698 = vld [vmem:[%s1] sm:$0x3]
    %2700 = vrot.lane.b32.xlu0 %v2697, 96
    %v2701 = vpop.permute.xlu0 %2700
    %v2703 = vmul.f32 %v2698, %v2701
    %v2704 = vadd.f32 %v2703, %v2685
    %v2705 = vpack.c.bf16 %v2704, %v2704
    %v2706 = vld [vmem:[%s8] sm:$0xff]
    %v2707 = vld [vmem:[%s8 + $0x8] sm:$0xff]
    %v2708 = vld [vmem:[%s8 + $0x10] sm:$0xff]
    %v2709 = vld [vmem:[%s8 + $0x18] sm:$0xff]
    %v2710 = vld [vmem:[%s9] sm:$0x3]
    %v2712 = vlaneseq
    %v2713 = vshrl.u32 %v2712, 7
    %v2714 = vsub.s32 0, %v2713
    %v2715 = vrot.slane %v2710, %v2714
    %v2716 = vlaneseq
    %v2717 = vshrl.u32 %v2716, 7
    %v2718 = vsub.s32 1, %v2717
    %v2719 = vrot.slane %v2710, %v2718
    %v2726 = vunpack.c.l.b16 %v2706
    %v2727 = vunpack.c.h.b16 %v2706
    %v2728 = vunpack.c.l.b16 %v2707
    %v2729 = vunpack.c.h.b16 %v2707
    %v2730 = vunpack.c.l.b16 %v2708
    %v2731 = vunpack.c.h.b16 %v2708
    %v2732 = vunpack.c.l.b16 %v2709
    %v2733 = vunpack.c.h.b16 %v2709
    %v2734 = vpack.c.b16 %v2728, %v2726
    %v2735 = vpack.c.b16 %v2729, %v2727
    %v2736 = vpack.c.b16 %v2732, %v2730
    %v2737 = vpack.c.b16 %v2733, %v2731
    %vm2742 = vcmask 261120
    %v2744 = vsel %vm2742, %v2705, 0
    %2746 = vmatprep.subr.bf16.mxu0 0
    %2747 = vmatpush1.bf16.msra.mxu0 0
    %2748 = vmatprep.subr.bf16.mxu0 0
    %2749 = vmatpush1.bf16.msra.mxu0 0
    %2750 = vmatprep.subr.bf16.mxu0 0
    %2751 = vmatpush1.bf16.msra.mxu0 0
    %2752 = vmatprep.subr.bf16.mxu0 0
    %2753 = vmatpush1.bf16.msra.mxu0 0
    %2754 = vmatprep.subr.bf16.mxu0 0
    %2755 = vmatpush1.bf16.msra.mxu0 0
    %2756 = vmatprep.subr.bf16.mxu0 0
    %2757 = vmatpush1.bf16.msra.mxu0 0
    %2758 = vmatprep.subr.bf16.mxu0 %v2737
    %2759 = vmatpush1.bf16.msra.mxu0 %v2736
    %2760 = vmatprep.subr.bf16.mxu0 %v2735
    %2761 = vmatpush1.bf16.msra.mxu0 %v2734
    %2762 = vmatprep.subr.bf16.mxu0 0
    %2763 = vmatpush2.bf16.msra.mxu0 0
    %2764 = vmatprep.subr.bf16.mxu0 0
    %2765 = vmatpush2.bf16.msra.mxu0 0
    %2766 = vmatprep.subr.bf16.mxu0 0
    %2767 = vmatpush2.bf16.msra.mxu0 0
    %2768 = vmatprep.subr.bf16.mxu0 0
    %2769 = vmatpush2.bf16.msra.mxu0 0
    %2770 = vmatprep.subr.bf16.mxu0 0
    %2771 = vmatpush2.bf16.msra.mxu0 0
    %2772 = vmatprep.subr.bf16.mxu0 0
    %2773 = vmatpush2.bf16.msra.mxu0 0
    %2774 = vmatprep.subr.bf16.mxu0 0
    %2775 = vmatpush2.bf16.msra.mxu0 0
    %2776 = vmatprep.subr.bf16.mxu0 0
    %2777 = vmatpush2.bf16.msra.mxu0 0
    %2778 = vmatprep.mubr.bf16.mxu0 0
    %2779 = vmatmul.mubr.bf16.gmra.mxu0 %v2744
    %v2780 = vpop.f32.mrf.mxu0
    %v2781 = vadd.f32 %v2715, %v2780
    %v2782 = vpop.f32.mrf.mxu0
    %v2783 = vadd.f32 %v2719, %v2782
    %v2784 = vpop.f32.mrf.mxu0
    %v2785 = vpop.f32.mrf.mxu0
    %2786 = vdwg.mxu0
    %v2787 = vmax.f32 %v2781, 0.0
    %v2788 = vmax.f32 %v2783, 0.0
    %v2789 = vpack.c.bf16 %v2787, %v2787
    %v2790 = vpack.c.bf16 %v2788, %v2788
    %v2791 = vld [vmem:[#allocation6] sm:$0xff]
    %v2792 = vld [vmem:[#allocation6 + $0x8] sm:$0xff]
    %v2793 = vld [vmem:[#allocation6 + $0x10] sm:$0xff]
    %v2794 = vld [vmem:[#allocation6 + $0x18] sm:$0xff]
    %v2795 = vld [vmem:[#allocation6 + $0x20] sm:$0xff]
    %v2796 = vld [vmem:[#allocation6 + $0x28] sm:$0xff]
    %v2797 = vld [vmem:[#allocation6 + $0x30] sm:$0xff]
    %v2798 = vld [vmem:[#allocation6 + $0x38] sm:$0xff]
    %v2799 = vld [vmem:[#allocation6 + $0x40] sm:$0xff]
    %v2800 = vld [vmem:[#allocation6 + $0x48] sm:$0xff]
    %v2801 = vld [vmem:[#allocation6 + $0x50] sm:$0xff]
    %v2802 = vld [vmem:[#allocation6 + $0x58] sm:$0xff]
    %v2803 = vld [vmem:[#allocation6 + $0x60] sm:$0xff]
    %v2804 = vld [vmem:[#allocation6 + $0x68] sm:$0xff]
    %v2805 = vld [vmem:[#allocation6 + $0x70] sm:$0xff]
    %v2806 = vld [vmem:[#allocation6 + $0x78] sm:$0xff]
    %v2807 = vld [vmem:[#allocation6 + $0x80] sm:$0xff]
    %v2808 = vld [vmem:[#allocation6 + $0x88] sm:$0xff]
    %v2809 = vld [vmem:[#allocation6 + $0x90] sm:$0xff]
    %v2810 = vld [vmem:[#allocation6 + $0x98] sm:$0xff]
    %v2811 = vld [vmem:[#allocation6 + $0xa0] sm:$0xff]
    %v2812 = vld [vmem:[#allocation6 + $0xa8] sm:$0xff]
    %v2813 = vld [vmem:[#allocation6 + $0xb0] sm:$0xff]
    %v2814 = vld [vmem:[#allocation6 + $0xb8] sm:$0xff]
    %v2815 = vld [vmem:[#allocation6 + $0xc0] sm:$0xff]
    %v2816 = vld [vmem:[#allocation6 + $0xc8] sm:$0xff]
    %v2817 = vld [vmem:[#allocation6 + $0xd0] sm:$0xff]
    %v2818 = vld [vmem:[#allocation6 + $0xd8] sm:$0xff]
    %v2819 = vld [vmem:[#allocation6 + $0xe0] sm:$0xff]
    %v2820 = vld [vmem:[#allocation6 + $0xe8] sm:$0xff]
    %v2821 = vld [vmem:[#allocation6 + $0xf0] sm:$0xff]
    %v2822 = vld [vmem:[#allocation6 + $0xf8] sm:$0xff]
    %v2823 = vld [vmem:[#allocation6 + $0x100] sm:$0xff]
    %v2824 = vld [vmem:[#allocation6 + $0x108] sm:$0xff]
    %v2825 = vld [vmem:[#allocation6 + $0x110] sm:$0xff]
    %v2826 = vld [vmem:[#allocation6 + $0x118] sm:$0xff]
    %v2827 = vld [vmem:[#allocation6 + $0x120] sm:$0xff]
    %v2828 = vld [vmem:[#allocation6 + $0x128] sm:$0xff]
    %v2829 = vld [vmem:[#allocation6 + $0x130] sm:$0xff]
    %v2830 = vld [vmem:[#allocation6 + $0x138] sm:$0xff]
    %v2831 = vld [vmem:[#allocation6 + $0x140] sm:$0xff]
    %v2832 = vld [vmem:[#allocation6 + $0x148] sm:$0xff]
    %v2833 = vld [vmem:[#allocation6 + $0x150] sm:$0xff]
    %v2834 = vld [vmem:[#allocation6 + $0x158] sm:$0xff]
    %v2835 = vld [vmem:[#allocation6 + $0x160] sm:$0xff]
    %v2836 = vld [vmem:[#allocation6 + $0x168] sm:$0xff]
    %v2837 = vld [vmem:[#allocation6 + $0x170] sm:$0xff]
    %v2838 = vld [vmem:[#allocation6 + $0x178] sm:$0xff]
    %v2839 = vld [vmem:[#allocation6 + $0x180] sm:$0xff]
    %v2840 = vld [vmem:[#allocation6 + $0x188] sm:$0xff]
    %v2841 = vld [vmem:[#allocation6 + $0x190] sm:$0xff]
    %v2842 = vld [vmem:[#allocation6 + $0x198] sm:$0xff]
    %v2843 = vld [vmem:[#allocation6 + $0x1a0] sm:$0xff]
    %v2844 = vld [vmem:[#allocation6 + $0x1a8] sm:$0xff]
    %v2845 = vld [vmem:[#allocation6 + $0x1b0] sm:$0xff]
    %v2846 = vld [vmem:[#allocation6 + $0x1b8] sm:$0xff]
    %v2847 = vld [vmem:[#allocation6 + $0x1c0] sm:$0xff]
    %v2848 = vld [vmem:[#allocation6 + $0x1c8] sm:$0xff]
    %v2849 = vld [vmem:[#allocation6 + $0x1d0] sm:$0xff]
    %v2850 = vld [vmem:[#allocation6 + $0x1d8] sm:$0xff]
    %v2851 = vld [vmem:[#allocation6 + $0x1e0] sm:$0xff]
    %v2852 = vld [vmem:[#allocation6 + $0x1e8] sm:$0xff]
    %v2853 = vld [vmem:[#allocation6 + $0x1f0] sm:$0xff]
    %v2854 = vld [vmem:[#allocation6 + $0x1f8] sm:$0xff]
    %v2855 = vld [vmem:[#allocation6 + $0x200] sm:$0xff]
    %v2856 = vld [vmem:[#allocation6 + $0x208] sm:$0xff]
    %v2857 = vld [vmem:[#allocation6 + $0x210] sm:$0xff]
    %v2858 = vld [vmem:[#allocation6 + $0x218] sm:$0xff]
    %v2859 = vld [vmem:[#allocation6 + $0x220] sm:$0xff]
    %v2860 = vld [vmem:[#allocation6 + $0x228] sm:$0xff]
    %v2861 = vld [vmem:[#allocation6 + $0x230] sm:$0xff]
    %v2862 = vld [vmem:[#allocation6 + $0x238] sm:$0xff]
    %v2863 = vld [vmem:[#allocation6 + $0x240] sm:$0xff]
    %v2864 = vld [vmem:[#allocation6 + $0x248] sm:$0xff]
    %v2865 = vld [vmem:[#allocation6 + $0x250] sm:$0xff]
    %v2866 = vld [vmem:[#allocation6 + $0x258] sm:$0xff]
    %v2867 = vld [vmem:[#allocation6 + $0x260] sm:$0xff]
    %v2868 = vld [vmem:[#allocation6 + $0x268] sm:$0xff]
    %v2869 = vld [vmem:[#allocation6 + $0x270] sm:$0xff]
    %v2870 = vld [vmem:[#allocation6 + $0x278] sm:$0xff]
    %v2871 = vld [vmem:[#allocation6 + $0x280] sm:$0xff]
    %v2872 = vld [vmem:[#allocation6 + $0x288] sm:$0xff]
    %v2873 = vld [vmem:[#allocation6 + $0x290] sm:$0xff]
    %v2874 = vld [vmem:[#allocation6 + $0x298] sm:$0xff]
    %v2875 = vld [vmem:[#allocation6 + $0x2a0] sm:$0xff]
    %v2876 = vld [vmem:[#allocation6 + $0x2a8] sm:$0xff]
    %v2877 = vld [vmem:[#allocation6 + $0x2b0] sm:$0xff]
    %v2878 = vld [vmem:[#allocation6 + $0x2b8] sm:$0xff]
    %v2879 = vld [vmem:[#allocation6 + $0x2c0] sm:$0xff]
    %v2880 = vld [vmem:[#allocation6 + $0x2c8] sm:$0xff]
    %v2881 = vld [vmem:[#allocation6 + $0x2d0] sm:$0xff]
    %v2882 = vld [vmem:[#allocation6 + $0x2d8] sm:$0xff]
    %v2883 = vld [vmem:[#allocation6 + $0x2e0] sm:$0xff]
    %v2884 = vld [vmem:[#allocation6 + $0x2e8] sm:$0xff]
    %v2885 = vld [vmem:[#allocation6 + $0x2f0] sm:$0xff]
    %v2886 = vld [vmem:[#allocation6 + $0x2f8] sm:$0xff]
    %v2887 = vld [vmem:[#allocation6 + $0x300] sm:$0xff]
    %v2888 = vld [vmem:[#allocation6 + $0x308] sm:$0xff]
    %v2889 = vld [vmem:[#allocation6 + $0x310] sm:$0xff]
    %v2890 = vld [vmem:[#allocation6 + $0x318] sm:$0xff]
    %v2891 = vld [vmem:[#allocation6 + $0x320] sm:$0xff]
    %v2892 = vld [vmem:[#allocation6 + $0x328] sm:$0xff]
    %v2893 = vld [vmem:[#allocation6 + $0x330] sm:$0xff]
    %v2894 = vld [vmem:[#allocation6 + $0x338] sm:$0xff]
    %v2895 = vld [vmem:[#allocation6 + $0x340] sm:$0xff]
    %v2896 = vld [vmem:[#allocation6 + $0x348] sm:$0xff]
    %v2897 = vld [vmem:[#allocation6 + $0x350] sm:$0xff]
    %v2898 = vld [vmem:[#allocation6 + $0x358] sm:$0xff]
    %v2899 = vld [vmem:[#allocation6 + $0x360] sm:$0xff]
    %v2900 = vld [vmem:[#allocation6 + $0x368] sm:$0xff]
    %v2901 = vld [vmem:[#allocation6 + $0x370] sm:$0xff]
    %v2902 = vld [vmem:[#allocation6 + $0x378] sm:$0xff]
    %v2903 = vld [vmem:[#allocation6 + $0x380] sm:$0xff]
    %v2904 = vld [vmem:[#allocation6 + $0x388] sm:$0xff]
    %v2905 = vld [vmem:[#allocation6 + $0x390] sm:$0xff]
    %v2906 = vld [vmem:[#allocation6 + $0x398] sm:$0xff]
    %v2907 = vld [vmem:[#allocation6 + $0x3a0] sm:$0xff]
    %v2908 = vld [vmem:[#allocation6 + $0x3a8] sm:$0xff]
    %v2909 = vld [vmem:[#allocation6 + $0x3b0] sm:$0xff]
    %v2910 = vld [vmem:[#allocation6 + $0x3b8] sm:$0xff]
    %v2911 = vld [vmem:[#allocation6 + $0x3c0] sm:$0xff]
    %v2912 = vld [vmem:[#allocation6 + $0x3c8] sm:$0xff]
    %v2913 = vld [vmem:[#allocation6 + $0x3d0] sm:$0xff]
    %v2914 = vld [vmem:[#allocation6 + $0x3d8] sm:$0xff]
    %v2915 = vld [vmem:[#allocation6 + $0x3e0] sm:$0xff]
    %v2916 = vld [vmem:[#allocation6 + $0x3e8] sm:$0xff]
    %v2917 = vld [vmem:[#allocation6 + $0x3f0] sm:$0xff]
    %v2918 = vld [vmem:[#allocation6 + $0x3f8] sm:$0xff]
    %v2919 = vld [vmem:[%s11] sm:$0xff]
    %v2921 = vlaneseq
    %v2922 = vshrl.u32 %v2921, 7
    %v2923 = vsub.s32 0, %v2922
    %v2924 = vrot.slane %v2919, %v2923
    %v2925 = vlaneseq
    %v2926 = vshrl.u32 %v2925, 7
    %v2927 = vsub.s32 1, %v2926
    %v2928 = vrot.slane %v2919, %v2927
    %v2929 = vlaneseq
    %v2930 = vshrl.u32 %v2929, 7
    %v2931 = vsub.s32 2, %v2930
    %v2932 = vrot.slane %v2919, %v2931
    %v2933 = vlaneseq
    %v2934 = vshrl.u32 %v2933, 7
    %v2935 = vsub.s32 3, %v2934
    %v2936 = vrot.slane %v2919, %v2935
    %v2937 = vlaneseq
    %v2938 = vshrl.u32 %v2937, 7
    %v2939 = vsub.s32 4, %v2938
    %v2940 = vrot.slane %v2919, %v2939
    %v2941 = vlaneseq
    %v2942 = vshrl.u32 %v2941, 7
    %v2943 = vsub.s32 5, %v2942
    %v2944 = vrot.slane %v2919, %v2943
    %v2945 = vlaneseq
    %v2946 = vshrl.u32 %v2945, 7
    %v2947 = vsub.s32 6, %v2946
    %v2948 = vrot.slane %v2919, %v2947
    %v2949 = vlaneseq
    %v2950 = vshrl.u32 %v2949, 7
    %v2951 = vsub.s32 7, %v2950
    %v2952 = vrot.slane %v2919, %v2951
    %v3089 = vunpack.c.l.b16 %v2791
    %v3090 = vunpack.c.h.b16 %v2791
    %v3091 = vunpack.c.l.b16 %v2792
    %v3092 = vunpack.c.h.b16 %v2792
    %v3093 = vunpack.c.l.b16 %v2793
    %v3094 = vunpack.c.h.b16 %v2793
    %v3095 = vunpack.c.l.b16 %v2794
    %v3096 = vunpack.c.h.b16 %v2794
    %v3097 = vunpack.c.l.b16 %v2795
    %v3098 = vunpack.c.h.b16 %v2795
    %v3099 = vunpack.c.l.b16 %v2796
    %v3100 = vunpack.c.h.b16 %v2796
    %v3101 = vunpack.c.l.b16 %v2797
    %v3102 = vunpack.c.h.b16 %v2797
    %v3103 = vunpack.c.l.b16 %v2798
    %v3104 = vunpack.c.h.b16 %v2798
    %v3105 = vunpack.c.l.b16 %v2799
    %v3106 = vunpack.c.h.b16 %v2799
    %v3107 = vunpack.c.l.b16 %v2800
    %v3108 = vunpack.c.h.b16 %v2800
    %v3109 = vunpack.c.l.b16 %v2801
    %v3110 = vunpack.c.h.b16 %v2801
    %v3111 = vunpack.c.l.b16 %v2802
    %v3112 = vunpack.c.h.b16 %v2802
    %v3113 = vunpack.c.l.b16 %v2803
    %v3114 = vunpack.c.h.b16 %v2803
    %v3115 = vunpack.c.l.b16 %v2804
    %v3116 = vunpack.c.h.b16 %v2804
    %v3117 = vunpack.c.l.b16 %v2805
    %v3118 = vunpack.c.h.b16 %v2805
    %v3119 = vunpack.c.l.b16 %v2806
    %v3120 = vunpack.c.h.b16 %v2806
    %v3121 = vunpack.c.l.b16 %v2807
    %v3122 = vunpack.c.h.b16 %v2807
    %v3123 = vunpack.c.l.b16 %v2808
    %v3124 = vunpack.c.h.b16 %v2808
    %v3125 = vunpack.c.l.b16 %v2809
    %v3126 = vunpack.c.h.b16 %v2809
    %v3127 = vunpack.c.l.b16 %v2810
    %v3128 = vunpack.c.h.b16 %v2810
    %v3129 = vunpack.c.l.b16 %v2811
    %v3130 = vunpack.c.h.b16 %v2811
    %v3131 = vunpack.c.l.b16 %v2812
    %v3132 = vunpack.c.h.b16 %v2812
    %v3133 = vunpack.c.l.b16 %v2813
    %v3134 = vunpack.c.h.b16 %v2813
    %v3135 = vunpack.c.l.b16 %v2814
    %v3136 = vunpack.c.h.b16 %v2814
    %v3137 = vunpack.c.l.b16 %v2815
    %v3138 = vunpack.c.h.b16 %v2815
    %v3139 = vunpack.c.l.b16 %v2816
    %v3140 = vunpack.c.h.b16 %v2816
    %v3141 = vunpack.c.l.b16 %v2817
    %v3142 = vunpack.c.h.b16 %v2817
    %v3143 = vunpack.c.l.b16 %v2818
    %v3144 = vunpack.c.h.b16 %v2818
    %v3145 = vunpack.c.l.b16 %v2819
    %v3146 = vunpack.c.h.b16 %v2819
    %v3147 = vunpack.c.l.b16 %v2820
    %v3148 = vunpack.c.h.b16 %v2820
    %v3149 = vunpack.c.l.b16 %v2821
    %v3150 = vunpack.c.h.b16 %v2821
    %v3151 = vunpack.c.l.b16 %v2822
    %v3152 = vunpack.c.h.b16 %v2822
    %v3153 = vunpack.c.l.b16 %v2823
    %v3154 = vunpack.c.h.b16 %v2823
    %v3155 = vunpack.c.l.b16 %v2824
    %v3156 = vunpack.c.h.b16 %v2824
    %v3157 = vunpack.c.l.b16 %v2825
    %v3158 = vunpack.c.h.b16 %v2825
    %v3159 = vunpack.c.l.b16 %v2826
    %v3160 = vunpack.c.h.b16 %v2826
    %v3161 = vunpack.c.l.b16 %v2827
    %v3162 = vunpack.c.h.b16 %v2827
    %v3163 = vunpack.c.l.b16 %v2828
    %v3164 = vunpack.c.h.b16 %v2828
    %v3165 = vunpack.c.l.b16 %v2829
    %v3166 = vunpack.c.h.b16 %v2829
    %v3167 = vunpack.c.l.b16 %v2830
    %v3168 = vunpack.c.h.b16 %v2830
    %v3169 = vunpack.c.l.b16 %v2831
    %v3170 = vunpack.c.h.b16 %v2831
    %v3171 = vunpack.c.l.b16 %v2832
    %v3172 = vunpack.c.h.b16 %v2832
    %v3173 = vunpack.c.l.b16 %v2833
    %v3174 = vunpack.c.h.b16 %v2833
    %v3175 = vunpack.c.l.b16 %v2834
    %v3176 = vunpack.c.h.b16 %v2834
    %v3177 = vunpack.c.l.b16 %v2835
    %v3178 = vunpack.c.h.b16 %v2835
    %v3179 = vunpack.c.l.b16 %v2836
    %v3180 = vunpack.c.h.b16 %v2836
    %v3181 = vunpack.c.l.b16 %v2837
    %v3182 = vunpack.c.h.b16 %v2837
    %v3183 = vunpack.c.l.b16 %v2838
    %v3184 = vunpack.c.h.b16 %v2838
    %v3185 = vunpack.c.l.b16 %v2839
    %v3186 = vunpack.c.h.b16 %v2839
    %v3187 = vunpack.c.l.b16 %v2840
    %v3188 = vunpack.c.h.b16 %v2840
    %v3189 = vunpack.c.l.b16 %v2841
    %v3190 = vunpack.c.h.b16 %v2841
    %v3191 = vunpack.c.l.b16 %v2842
    %v3192 = vunpack.c.h.b16 %v2842
    %v3193 = vunpack.c.l.b16 %v2843
    %v3194 = vunpack.c.h.b16 %v2843
    %v3195 = vunpack.c.l.b16 %v2844
    %v3196 = vunpack.c.h.b16 %v2844
    %v3197 = vunpack.c.l.b16 %v2845
    %v3198 = vunpack.c.h.b16 %v2845
    %v3199 = vunpack.c.l.b16 %v2846
    %v3200 = vunpack.c.h.b16 %v2846
    %v3201 = vunpack.c.l.b16 %v2847
    %v3202 = vunpack.c.h.b16 %v2847
    %v3203 = vunpack.c.l.b16 %v2848
    %v3204 = vunpack.c.h.b16 %v2848
    %v3205 = vunpack.c.l.b16 %v2849
    %v3206 = vunpack.c.h.b16 %v2849
    %v3207 = vunpack.c.l.b16 %v2850
    %v3208 = vunpack.c.h.b16 %v2850
    %v3209 = vunpack.c.l.b16 %v2851
    %v3210 = vunpack.c.h.b16 %v2851
    %v3211 = vunpack.c.l.b16 %v2852
    %v3212 = vunpack.c.h.b16 %v2852
    %v3213 = vunpack.c.l.b16 %v2853
    %v3214 = vunpack.c.h.b16 %v2853
    %v3215 = vunpack.c.l.b16 %v2854
    %v3216 = vunpack.c.h.b16 %v2854
    %v3217 = vunpack.c.l.b16 %v2855
    %v3218 = vunpack.c.h.b16 %v2855
    %v3219 = vunpack.c.l.b16 %v2856
    %v3220 = vunpack.c.h.b16 %v2856
    %v3221 = vunpack.c.l.b16 %v2857
    %v3222 = vunpack.c.h.b16 %v2857
    %v3223 = vunpack.c.l.b16 %v2858
    %v3224 = vunpack.c.h.b16 %v2858
    %v3225 = vunpack.c.l.b16 %v2859
    %v3226 = vunpack.c.h.b16 %v2859
    %v3227 = vunpack.c.l.b16 %v2860
    %v3228 = vunpack.c.h.b16 %v2860
    %v3229 = vunpack.c.l.b16 %v2861
    %v3230 = vunpack.c.h.b16 %v2861
    %v3231 = vunpack.c.l.b16 %v2862
    %v3232 = vunpack.c.h.b16 %v2862
    %v3233 = vunpack.c.l.b16 %v2863
    %v3234 = vunpack.c.h.b16 %v2863
    %v3235 = vunpack.c.l.b16 %v2864
    %v3236 = vunpack.c.h.b16 %v2864
    %v3237 = vunpack.c.l.b16 %v2865
    %v3238 = vunpack.c.h.b16 %v2865
    %v3239 = vunpack.c.l.b16 %v2866
    %v3240 = vunpack.c.h.b16 %v2866
    %v3241 = vunpack.c.l.b16 %v2867
    %v3242 = vunpack.c.h.b16 %v2867
    %v3243 = vunpack.c.l.b16 %v2868
    %v3244 = vunpack.c.h.b16 %v2868
    %v3245 = vunpack.c.l.b16 %v2869
    %v3246 = vunpack.c.h.b16 %v2869
    %v3247 = vunpack.c.l.b16 %v2870
    %v3248 = vunpack.c.h.b16 %v2870
    %v3249 = vunpack.c.l.b16 %v2871
    %v3250 = vunpack.c.h.b16 %v2871
    %v3251 = vunpack.c.l.b16 %v2872
    %v3252 = vunpack.c.h.b16 %v2872
    %v3253 = vunpack.c.l.b16 %v2873
    %v3254 = vunpack.c.h.b16 %v2873
    %v3255 = vunpack.c.l.b16 %v2874
    %v3256 = vunpack.c.h.b16 %v2874
    %v3257 = vunpack.c.l.b16 %v2875
    %v3258 = vunpack.c.h.b16 %v2875
    %v3259 = vunpack.c.l.b16 %v2876
    %v3260 = vunpack.c.h.b16 %v2876
    %v3261 = vunpack.c.l.b16 %v2877
    %v3262 = vunpack.c.h.b16 %v2877
    %v3263 = vunpack.c.l.b16 %v2878
    %v3264 = vunpack.c.h.b16 %v2878
    %v3265 = vunpack.c.l.b16 %v2879
    %v3266 = vunpack.c.h.b16 %v2879
    %v3267 = vunpack.c.l.b16 %v2880
    %v3268 = vunpack.c.h.b16 %v2880
    %v3269 = vunpack.c.l.b16 %v2881
    %v3270 = vunpack.c.h.b16 %v2881
    %v3271 = vunpack.c.l.b16 %v2882
    %v3272 = vunpack.c.h.b16 %v2882
    %v3273 = vunpack.c.l.b16 %v2883
    %v3274 = vunpack.c.h.b16 %v2883
    %v3275 = vunpack.c.l.b16 %v2884
    %v3276 = vunpack.c.h.b16 %v2884
    %v3277 = vunpack.c.l.b16 %v2885
    %v3278 = vunpack.c.h.b16 %v2885
    %v3279 = vunpack.c.l.b16 %v2886
    %v3280 = vunpack.c.h.b16 %v2886
    %v3281 = vunpack.c.l.b16 %v2887
    %v3282 = vunpack.c.h.b16 %v2887
    %v3283 = vunpack.c.l.b16 %v2888
    %v3284 = vunpack.c.h.b16 %v2888
    %v3285 = vunpack.c.l.b16 %v2889
    %v3286 = vunpack.c.h.b16 %v2889
    %v3287 = vunpack.c.l.b16 %v2890
    %v3288 = vunpack.c.h.b16 %v2890
    %v3289 = vunpack.c.l.b16 %v2891
    %v3290 = vunpack.c.h.b16 %v2891
    %v3291 = vunpack.c.l.b16 %v2892
    %v3292 = vunpack.c.h.b16 %v2892
    %v3293 = vunpack.c.l.b16 %v2893
    %v3294 = vunpack.c.h.b16 %v2893
    %v3295 = vunpack.c.l.b16 %v2894
    %v3296 = vunpack.c.h.b16 %v2894
    %v3297 = vunpack.c.l.b16 %v2895
    %v3298 = vunpack.c.h.b16 %v2895
    %v3299 = vunpack.c.l.b16 %v2896
    %v3300 = vunpack.c.h.b16 %v2896
    %v3301 = vunpack.c.l.b16 %v2897
    %v3302 = vunpack.c.h.b16 %v2897
    %v3303 = vunpack.c.l.b16 %v2898
    %v3304 = vunpack.c.h.b16 %v2898
    %v3305 = vunpack.c.l.b16 %v2899
    %v3306 = vunpack.c.h.b16 %v2899
    %v3307 = vunpack.c.l.b16 %v2900
    %v3308 = vunpack.c.h.b16 %v2900
    %v3309 = vunpack.c.l.b16 %v2901
    %v3310 = vunpack.c.h.b16 %v2901
    %v3311 = vunpack.c.l.b16 %v2902
    %v3312 = vunpack.c.h.b16 %v2902
    %v3313 = vunpack.c.l.b16 %v2903
    %v3314 = vunpack.c.h.b16 %v2903
    %v3315 = vunpack.c.l.b16 %v2904
    %v3316 = vunpack.c.h.b16 %v2904
    %v3317 = vunpack.c.l.b16 %v2905
    %v3318 = vunpack.c.h.b16 %v2905
    %v3319 = vunpack.c.l.b16 %v2906
    %v3320 = vunpack.c.h.b16 %v2906
    %v3321 = vunpack.c.l.b16 %v2907
    %v3322 = vunpack.c.h.b16 %v2907
    %v3323 = vunpack.c.l.b16 %v2908
    %v3324 = vunpack.c.h.b16 %v2908
    %v3325 = vunpack.c.l.b16 %v2909
    %v3326 = vunpack.c.h.b16 %v2909
    %v3327 = vunpack.c.l.b16 %v2910
    %v3328 = vunpack.c.h.b16 %v2910
    %v3329 = vunpack.c.l.b16 %v2911
    %v3330 = vunpack.c.h.b16 %v2911
    %v3331 = vunpack.c.l.b16 %v2912
    %v3332 = vunpack.c.h.b16 %v2912
    %v3333 = vunpack.c.l.b16 %v2913
    %v3334 = vunpack.c.h.b16 %v2913
    %v3335 = vunpack.c.l.b16 %v2914
    %v3336 = vunpack.c.h.b16 %v2914
    %v3337 = vunpack.c.l.b16 %v2915
    %v3338 = vunpack.c.h.b16 %v2915
    %v3339 = vunpack.c.l.b16 %v2916
    %v3340 = vunpack.c.h.b16 %v2916
    %v3341 = vunpack.c.l.b16 %v2917
    %v3342 = vunpack.c.h.b16 %v2917
    %v3343 = vunpack.c.l.b16 %v2918
    %v3344 = vunpack.c.h.b16 %v2918
    %v3345 = vpack.c.b16 %v3097, %v3089
    %v3346 = vpack.c.b16 %v3098, %v3090
    %v3347 = vpack.c.b16 %v3099, %v3091
    %v3348 = vpack.c.b16 %v3100, %v3092
    %v3349 = vpack.c.b16 %v3101, %v3093
    %v3350 = vpack.c.b16 %v3102, %v3094
    %v3351 = vpack.c.b16 %v3103, %v3095
    %v3352 = vpack.c.b16 %v3104, %v3096
    %v3353 = vpack.c.b16 %v3113, %v3105
    %v3354 = vpack.c.b16 %v3114, %v3106
    %v3355 = vpack.c.b16 %v3115, %v3107
    %v3356 = vpack.c.b16 %v3116, %v3108
    %v3357 = vpack.c.b16 %v3117, %v3109
    %v3358 = vpack.c.b16 %v3118, %v3110
    %v3359 = vpack.c.b16 %v3119, %v3111
    %v3360 = vpack.c.b16 %v3120, %v3112
    %v3361 = vpack.c.b16 %v3129, %v3121
    %v3362 = vpack.c.b16 %v3130, %v3122
    %v3363 = vpack.c.b16 %v3131, %v3123
    %v3364 = vpack.c.b16 %v3132, %v3124
    %v3365 = vpack.c.b16 %v3133, %v3125
    %v3366 = vpack.c.b16 %v3134, %v3126
    %v3367 = vpack.c.b16 %v3135, %v3127
    %v3368 = vpack.c.b16 %v3136, %v3128
    %v3369 = vpack.c.b16 %v3145, %v3137
    %v3370 = vpack.c.b16 %v3146, %v3138
    %v3371 = vpack.c.b16 %v3147, %v3139
    %v3372 = vpack.c.b16 %v3148, %v3140
    %v3373 = vpack.c.b16 %v3149, %v3141
    %v3374 = vpack.c.b16 %v3150, %v3142
    %v3375 = vpack.c.b16 %v3151, %v3143
    %v3376 = vpack.c.b16 %v3152, %v3144
    %v3377 = vpack.c.b16 %v3161, %v3153
    %v3378 = vpack.c.b16 %v3162, %v3154
    %v3379 = vpack.c.b16 %v3163, %v3155
    %v3380 = vpack.c.b16 %v3164, %v3156
    %v3381 = vpack.c.b16 %v3165, %v3157
    %v3382 = vpack.c.b16 %v3166, %v3158
    %v3383 = vpack.c.b16 %v3167, %v3159
    %v3384 = vpack.c.b16 %v3168, %v3160
    %v3385 = vpack.c.b16 %v3177, %v3169
    %v3386 = vpack.c.b16 %v3178, %v3170
    %v3387 = vpack.c.b16 %v3179, %v3171
    %v3388 = vpack.c.b16 %v3180, %v3172
    %v3389 = vpack.c.b16 %v3181, %v3173
    %v3390 = vpack.c.b16 %v3182, %v3174
    %v3391 = vpack.c.b16 %v3183, %v3175
    %v3392 = vpack.c.b16 %v3184, %v3176
    %v3393 = vpack.c.b16 %v3193, %v3185
    %v3394 = vpack.c.b16 %v3194, %v3186
    %v3395 = vpack.c.b16 %v3195, %v3187
    %v3396 = vpack.c.b16 %v3196, %v3188
    %v3397 = vpack.c.b16 %v3197, %v3189
    %v3398 = vpack.c.b16 %v3198, %v3190
    %v3399 = vpack.c.b16 %v3199, %v3191
    %v3400 = vpack.c.b16 %v3200, %v3192
    %v3401 = vpack.c.b16 %v3209, %v3201
    %v3402 = vpack.c.b16 %v3210, %v3202
    %v3403 = vpack.c.b16 %v3211, %v3203
    %v3404 = vpack.c.b16 %v3212, %v3204
    %v3405 = vpack.c.b16 %v3213, %v3205
    %v3406 = vpack.c.b16 %v3214, %v3206
    %v3407 = vpack.c.b16 %v3215, %v3207
    %v3408 = vpack.c.b16 %v3216, %v3208
    %v3409 = vpack.c.b16 %v3225, %v3217
    %v3410 = vpack.c.b16 %v3226, %v3218
    %v3411 = vpack.c.b16 %v3227, %v3219
    %v3412 = vpack.c.b16 %v3228, %v3220
    %v3413 = vpack.c.b16 %v3229, %v3221
    %v3414 = vpack.c.b16 %v3230, %v3222
    %v3415 = vpack.c.b16 %v3231, %v3223
    %v3416 = vpack.c.b16 %v3232, %v3224
    %v3417 = vpack.c.b16 %v3241, %v3233
    %v3418 = vpack.c.b16 %v3242, %v3234
    %v3419 = vpack.c.b16 %v3243, %v3235
    %v3420 = vpack.c.b16 %v3244, %v3236
    %v3421 = vpack.c.b16 %v3245, %v3237
    %v3422 = vpack.c.b16 %v3246, %v3238
    %v3423 = vpack.c.b16 %v3247, %v3239
    %v3424 = vpack.c.b16 %v3248, %v3240
    %v3425 = vpack.c.b16 %v3257, %v3249
    %v3426 = vpack.c.b16 %v3258, %v3250
    %v3427 = vpack.c.b16 %v3259, %v3251
    %v3428 = vpack.c.b16 %v3260, %v3252
    %v3429 = vpack.c.b16 %v3261, %v3253
    %v3430 = vpack.c.b16 %v3262, %v3254
    %v3431 = vpack.c.b16 %v3263, %v3255
    %v3432 = vpack.c.b16 %v3264, %v3256
    %v3433 = vpack.c.b16 %v3273, %v3265
    %v3434 = vpack.c.b16 %v3274, %v3266
    %v3435 = vpack.c.b16 %v3275, %v3267
    %v3436 = vpack.c.b16 %v3276, %v3268
    %v3437 = vpack.c.b16 %v3277, %v3269
    %v3438 = vpack.c.b16 %v3278, %v3270
    %v3439 = vpack.c.b16 %v3279, %v3271
    %v3440 = vpack.c.b16 %v3280, %v3272
    %v3441 = vpack.c.b16 %v3289, %v3281
    %v3442 = vpack.c.b16 %v3290, %v3282
    %v3443 = vpack.c.b16 %v3291, %v3283
    %v3444 = vpack.c.b16 %v3292, %v3284
    %v3445 = vpack.c.b16 %v3293, %v3285
    %v3446 = vpack.c.b16 %v3294, %v3286
    %v3447 = vpack.c.b16 %v3295, %v3287
    %v3448 = vpack.c.b16 %v3296, %v3288
    %v3449 = vpack.c.b16 %v3305, %v3297
    %v3450 = vpack.c.b16 %v3306, %v3298
    %v3451 = vpack.c.b16 %v3307, %v3299
    %v3452 = vpack.c.b16 %v3308, %v3300
    %v3453 = vpack.c.b16 %v3309, %v3301
    %v3454 = vpack.c.b16 %v3310, %v3302
    %v3455 = vpack.c.b16 %v3311, %v3303
    %v3456 = vpack.c.b16 %v3312, %v3304
    %v3457 = vpack.c.b16 %v3321, %v3313
    %v3458 = vpack.c.b16 %v3322, %v3314
    %v3459 = vpack.c.b16 %v3323, %v3315
    %v3460 = vpack.c.b16 %v3324, %v3316
    %v3461 = vpack.c.b16 %v3325, %v3317
    %v3462 = vpack.c.b16 %v3326, %v3318
    %v3463 = vpack.c.b16 %v3327, %v3319
    %v3464 = vpack.c.b16 %v3328, %v3320
    %v3465 = vpack.c.b16 %v3337, %v3329
    %v3466 = vpack.c.b16 %v3338, %v3330
    %v3467 = vpack.c.b16 %v3339, %v3331
    %v3468 = vpack.c.b16 %v3340, %v3332
    %v3469 = vpack.c.b16 %v3341, %v3333
    %v3470 = vpack.c.b16 %v3342, %v3334
    %v3471 = vpack.c.b16 %v3343, %v3335
    %v3472 = vpack.c.b16 %v3344, %v3336
    %3601 = vmatprep.subr.bf16.mxu0 %v3402
    %3602 = vmatpush1.bf16.msra.mxu0 %v3401
    %3603 = vmatprep.subr.bf16.mxu0 %v3394
    %3604 = vmatpush1.bf16.msra.mxu0 %v3393
    %3605 = vmatprep.subr.bf16.mxu0 %v3386
    %3606 = vmatpush1.bf16.msra.mxu0 %v3385
    %3607 = vmatprep.subr.bf16.mxu0 %v3378
    %3608 = vmatpush1.bf16.msra.mxu0 %v3377
    %3609 = vmatprep.subr.bf16.mxu0 %v3370
    %3610 = vmatpush1.bf16.msra.mxu0 %v3369
    %3611 = vmatprep.subr.bf16.mxu0 %v3362
    %3612 = vmatpush1.bf16.msra.mxu0 %v3361
    %3613 = vmatprep.subr.bf16.mxu0 %v3354
    %3614 = vmatpush1.bf16.msra.mxu0 %v3353
    %3615 = vmatprep.subr.bf16.mxu0 %v3346
    %3616 = vmatpush1.bf16.msra.mxu0 %v3345
    %3617 = vmatprep.subr.bf16.mxu0 %v3466
    %3618 = vmatpush2.bf16.msra.mxu0 %v3465
    %3619 = vmatprep.subr.bf16.mxu0 %v3458
    %3620 = vmatpush2.bf16.msra.mxu0 %v3457
    %3621 = vmatprep.subr.bf16.mxu0 %v3450
    %3622 = vmatpush2.bf16.msra.mxu0 %v3449
    %3623 = vmatprep.subr.bf16.mxu0 %v3442
    %3624 = vmatpush2.bf16.msra.mxu0 %v3441
    %3625 = vmatprep.subr.bf16.mxu0 %v3434
    %3626 = vmatpush2.bf16.msra.mxu0 %v3433
    %3627 = vmatprep.subr.bf16.mxu0 %v3426
    %3628 = vmatpush2.bf16.msra.mxu0 %v3425
    %3629 = vmatprep.subr.bf16.mxu0 %v3418
    %3630 = vmatpush2.bf16.msra.mxu0 %v3417
    %3631 = vmatprep.subr.bf16.mxu0 %v3410
    %3632 = vmatpush2.bf16.msra.mxu0 %v3409
    %3633 = vmatprep.mubr.bf16.mxu0 %v2790
    %3634 = vmatmul.mubr.bf16.gmra.mxu0 %v2789
    %v3635 = vpop.f32.mrf.mxu0
    %v3636 = vadd.f32 %v2924, %v3635
    %v3637 = vpop.f32.mrf.mxu0
    %v3638 = vadd.f32 %v2928, %v3637
    %v3639 = vpop.f32.mrf.mxu0
    %v3640 = vpop.f32.mrf.mxu0
    %3641 = vdwg.mxu0
    %3642 = vmatprep.subr.bf16.mxu0 %v3404
    %3643 = vmatpush1.bf16.msra.mxu0 %v3403
    %3644 = vmatprep.subr.bf16.mxu0 %v3396
    %3645 = vmatpush1.bf16.msra.mxu0 %v3395
    %3646 = vmatprep.subr.bf16.mxu0 %v3388
    %3647 = vmatpush1.bf16.msra.mxu0 %v3387
    %3648 = vmatprep.subr.bf16.mxu0 %v3380
    %3649 = vmatpush1.bf16.msra.mxu0 %v3379
    %3650 = vmatprep.subr.bf16.mxu0 %v3372
    %3651 = vmatpush1.bf16.msra.mxu0 %v3371
    %3652 = vmatprep.subr.bf16.mxu0 %v3364
    %3653 = vmatpush1.bf16.msra.mxu0 %v3363
    %3654 = vmatprep.subr.bf16.mxu0 %v3356
    %3655 = vmatpush1.bf16.msra.mxu0 %v3355
    %3656 = vmatprep.subr.bf16.mxu0 %v3348
    %3657 = vmatpush1.bf16.msra.mxu0 %v3347
    %3658 = vmatprep.subr.bf16.mxu0 %v3468
    %3659 = vmatpush2.bf16.msra.mxu0 %v3467
    %3660 = vmatprep.subr.bf16.mxu0 %v3460
    %3661 = vmatpush2.bf16.msra.mxu0 %v3459
    %3662 = vmatprep.subr.bf16.mxu0 %v3452
    %3663 = vmatpush2.bf16.msra.mxu0 %v3451
    %3664 = vmatprep.subr.bf16.mxu0 %v3444
    %3665 = vmatpush2.bf16.msra.mxu0 %v3443
    %3666 = vmatprep.subr.bf16.mxu0 %v3436
    %3667 = vmatpush2.bf16.msra.mxu0 %v3435
    %3668 = vmatprep.subr.bf16.mxu0 %v3428
    %3669 = vmatpush2.bf16.msra.mxu0 %v3427
    %3670 = vmatprep.subr.bf16.mxu0 %v3420
    %3671 = vmatpush2.bf16.msra.mxu0 %v3419
    %3672 = vmatprep.subr.bf16.mxu0 %v3412
    %3673 = vmatpush2.bf16.msra.mxu0 %v3411
    %3674 = vmatprep.mubr.bf16.mxu0 %v2790
    %3675 = vmatmul.mubr.bf16.gmra.mxu0 %v2789
    %v3676 = vpop.f32.mrf.mxu0
    %v3677 = vadd.f32 %v2932, %v3676
    %v3678 = vpop.f32.mrf.mxu0
    %v3679 = vadd.f32 %v2936, %v3678
    %v3680 = vpop.f32.mrf.mxu0
    %v3681 = vpop.f32.mrf.mxu0
    %3682 = vdwg.mxu0
    %3683 = vmatprep.subr.bf16.mxu0 %v3406
    %3684 = vmatpush1.bf16.msra.mxu0 %v3405
    %3685 = vmatprep.subr.bf16.mxu0 %v3398
    %3686 = vmatpush1.bf16.msra.mxu0 %v3397
    %3687 = vmatprep.subr.bf16.mxu0 %v3390
    %3688 = vmatpush1.bf16.msra.mxu0 %v3389
    %3689 = vmatprep.subr.bf16.mxu0 %v3382
    %3690 = vmatpush1.bf16.msra.mxu0 %v3381
    %3691 = vmatprep.subr.bf16.mxu0 %v3374
    %3692 = vmatpush1.bf16.msra.mxu0 %v3373
    %3693 = vmatprep.subr.bf16.mxu0 %v3366
    %3694 = vmatpush1.bf16.msra.mxu0 %v3365
    %3695 = vmatprep.subr.bf16.mxu0 %v3358
    %3696 = vmatpush1.bf16.msra.mxu0 %v3357
    %3697 = vmatprep.subr.bf16.mxu0 %v3350
    %3698 = vmatpush1.bf16.msra.mxu0 %v3349
    %3699 = vmatprep.subr.bf16.mxu0 %v3470
    %3700 = vmatpush2.bf16.msra.mxu0 %v3469
    %3701 = vmatprep.subr.bf16.mxu0 %v3462
    %3702 = vmatpush2.bf16.msra.mxu0 %v3461
    %3703 = vmatprep.subr.bf16.mxu0 %v3454
    %3704 = vmatpush2.bf16.msra.mxu0 %v3453
    %3705 = vmatprep.subr.bf16.mxu0 %v3446
    %3706 = vmatpush2.bf16.msra.mxu0 %v3445
    %3707 = vmatprep.subr.bf16.mxu0 %v3438
    %3708 = vmatpush2.bf16.msra.mxu0 %v3437
    %3709 = vmatprep.subr.bf16.mxu0 %v3430
    %3710 = vmatpush2.bf16.msra.mxu0 %v3429
    %3711 = vmatprep.subr.bf16.mxu0 %v3422
    %3712 = vmatpush2.bf16.msra.mxu0 %v3421
    %3713 = vmatprep.subr.bf16.mxu0 %v3414
    %3714 = vmatpush2.bf16.msra.mxu0 %v3413
    %3715 = vmatprep.mubr.bf16.mxu0 %v2790
    %3716 = vmatmul.mubr.bf16.gmra.mxu0 %v2789
    %v3717 = vpop.f32.mrf.mxu0
    %v3718 = vadd.f32 %v2940, %v3717
    %v3719 = vpop.f32.mrf.mxu0
    %v3720 = vadd.f32 %v2944, %v3719
    %v3721 = vpop.f32.mrf.mxu0
    %v3722 = vpop.f32.mrf.mxu0
    %3723 = vdwg.mxu0
    %3724 = vmatprep.subr.bf16.mxu0 %v3408
    %3725 = vmatpush1.bf16.msra.mxu0 %v3407
    %3726 = vmatprep.subr.bf16.mxu0 %v3400
    %3727 = vmatpush1.bf16.msra.mxu0 %v3399
    %3728 = vmatprep.subr.bf16.mxu0 %v3392
    %3729 = vmatpush1.bf16.msra.mxu0 %v3391
    %3730 = vmatprep.subr.bf16.mxu0 %v3384
    %3731 = vmatpush1.bf16.msra.mxu0 %v3383
    %3732 = vmatprep.subr.bf16.mxu0 %v3376
    %3733 = vmatpush1.bf16.msra.mxu0 %v3375
    %3734 = vmatprep.subr.bf16.mxu0 %v3368
    %3735 = vmatpush1.bf16.msra.mxu0 %v3367
    %3736 = vmatprep.subr.bf16.mxu0 %v3360
    %3737 = vmatpush1.bf16.msra.mxu0 %v3359
    %3738 = vmatprep.subr.bf16.mxu0 %v3352
    %3739 = vmatpush1.bf16.msra.mxu0 %v3351
    %3740 = vmatprep.subr.bf16.mxu0 %v3472
    %3741 = vmatpush2.bf16.msra.mxu0 %v3471
    %3742 = vmatprep.subr.bf16.mxu0 %v3464
    %3743 = vmatpush2.bf16.msra.mxu0 %v3463
    %3744 = vmatprep.subr.bf16.mxu0 %v3456
    %3745 = vmatpush2.bf16.msra.mxu0 %v3455
    %3746 = vmatprep.subr.bf16.mxu0 %v3448
    %3747 = vmatpush2.bf16.msra.mxu0 %v3447
    %3748 = vmatprep.subr.bf16.mxu0 %v3440
    %3749 = vmatpush2.bf16.msra.mxu0 %v3439
    %3750 = vmatprep.subr.bf16.mxu0 %v3432
    %3751 = vmatpush2.bf16.msra.mxu0 %v3431
    %3752 = vmatprep.subr.bf16.mxu0 %v3424
    %3753 = vmatpush2.bf16.msra.mxu0 %v3423
    %3754 = vmatprep.subr.bf16.mxu0 %v3416
    %3755 = vmatpush2.bf16.msra.mxu0 %v3415
    %3756 = vmatprep.mubr.bf16.mxu0 %v2790
    %3757 = vmatmul.mubr.bf16.gmra.mxu0 %v2789
    %v3758 = vpop.f32.mrf.mxu0
    %v3759 = vadd.f32 %v2948, %v3758
    %v3760 = vpop.f32.mrf.mxu0
    %v3761 = vadd.f32 %v2952, %v3760
    %v3762 = vpop.f32.mrf.mxu0
    %v3763 = vpop.f32.mrf.mxu0
    %3764 = vdwg.mxu0
    %v3773 = vcombine.low %v3636, %v3638
    %v3774 = vcombine.low %v3677, %v3679
    %v3776 = vunpack.c.l.s4 1983009808
    %v3777 = vunpack.c.0.s8 %v3776
    %v3778 = vlaneseq
    %v3779 = vshrl.u32 %v3778, 7
    %v3780 = vsub.s32 %v3777, %v3779
    %v3781 = vrot.slane %v3773, %v3780
    %v3783 = vunpack.c.l.s4 1983009808
    %v3784 = vunpack.c.0.s8 %v3783
    %v3785 = vlaneseq
    %v3786 = vshrl.u32 %v3785, 7
    %v3787 = vsub.s32 %v3784, %v3786
    %v3788 = vrot.slane %v3774, %v3787
    %v3789 = vcombine.low %v3781, %v3788
    %v3790 = vcombine.low %v3718, %v3720
    %v3791 = vcombine.low %v3759, %v3761
    %v3793 = vunpack.c.l.s4 1983009808
    %v3794 = vunpack.c.0.s8 %v3793
    %v3795 = vlaneseq
    %v3796 = vshrl.u32 %v3795, 7
    %v3797 = vsub.s32 %v3794, %v3796
    %v3798 = vrot.slane %v3790, %v3797
    %v3800 = vunpack.c.l.s4 1983009808
    %v3801 = vunpack.c.0.s8 %v3800
    %v3802 = vlaneseq
    %v3803 = vshrl.u32 %v3802, 7
    %v3804 = vsub.s32 %v3801, %v3803
    %v3805 = vrot.slane %v3791, %v3804
    %v3806 = vcombine.low %v3798, %v3805
    %3809 = vst [vmem:[%s12] sm:$0xff] %v3789
    %3810 = vst [vmem:[%s12 + $0x8] sm:$0xff] %v3806
    // Predicated region
    $region62: #{vae_cinn_forward.1} parent=1 // pred_check
      _
    $region63: #{vae_cinn_forward.1} parent=1 // pred_check_branch
      %3812 = sbr.rel (0) target = $region65
    $region64: #{vae_cinn_forward.1} parent=1 // pred_region
      _
    $region65: #{vae_cinn_forward.1} parent=1 // pred_fallthru
      _
    // Predicated region
    $region66: #{vae_cinn_forward.1} parent=1 // pred_check
      _
    $region67: #{vae_cinn_forward.1} parent=1 // pred_check_branch
      %3814 = sbr.rel (0) target = $region69
    $region68: #{vae_cinn_forward.1} parent=1 // pred_region
      _
    $region69: #{vae_cinn_forward.1} parent=1 // pred_fallthru
      _
    // Predicated region
    $region70: #{vae_cinn_forward.1} parent=1 // pred_check
      _
    $region71: #{vae_cinn_forward.1} parent=1 // pred_check_branch
      %3816 = sbr.rel (0) target = $region73
    $region72: #{vae_cinn_forward.1} parent=1 // pred_region
      _
    $region73: #{vae_cinn_forward.1} parent=1 // pred_fallthru
      _
    // Predicated region
    $region74: #{vae_cinn_forward.1} parent=1 // pred_check
      _
    $region75: #{vae_cinn_forward.1} parent=1 // pred_check_branch
      %3818 = sbr.rel (0) target = $region77
    $region76: #{vae_cinn_forward.1} parent=1 // pred_region
      _
    $region77: #{vae_cinn_forward.1} parent=1 // pred_fallthru
      _
    %3819 = vsyncpa [#allocation3], 1
    %3820 = vsyncpa [#allocation5], 1

</llo_original>
